<compile_context>
chip_gen: v7x
topology: tpu7x:2x2x1
jax: 0.10.0
libtpu: 0.0.40
codegen_flags: <defaults>
</compile_context>

<pallas_src>
import jax
import jax.numpy as jnp
from jax.experimental import pallas as pl
from jax.experimental.pallas import tpu as pltpu

_D_IN, _D_H1, _D_H2, _D_OUT = 4, 60, 120, 2
_LANE = 128                                                            # lane width
_FLOPS_PER_ROW = 2 * (_D_IN * _D_H1 + _D_H1 * _D_H2 + _D_H2 * _D_OUT)  # 15360
_TANH_PER_ROW = _D_H1 + _D_H2                                          # 180


def _cdiv(a, b):
    return -(-a // b)


def _round_up(n, m):
    return ((n + m - 1) // m) * m


def _device_kind():
    return jax.devices()[0].device_kind.lower()


def _default_compute_dtype():
    kind = _device_kind()
    # bf16 VPU/EUP exists on v6e / v7x; v5e has no bf16 elementwise path.
    if ("v6" in kind) or ("v7" in kind) or ("7x" in kind):
        return jnp.bfloat16
    return jnp.float32


def _is_v7x():
    kind = _device_kind()
    return ("v7" in kind) or ("7x" in kind)


def _mlp_kernel(x_ref, w1_ref, b1_ref, w2_ref, b2_ref, w3t_ref, b3t_ref, ot_ref):
    act = w1_ref.dtype                      # f32 on v5e, bf16 on v6e/v7x
    # f32 MXU slack is huge here -> use HIGHEST for exact-parity matmuls.
    prec = jax.lax.Precision.HIGHEST if act == jnp.float32 else None

    # In-kernel cast of x (free VPU slot; no extra HBM pass in the wrapper).
    xa = x_ref[...].astype(act)

    # Layer 1: (tb,4) @ (4,60) + (1,60) -> tanh (tanh in `act` dtype).
    z1 = jnp.dot(xa, w1_ref[...], preferred_element_type=jnp.float32,
                 precision=prec) + b1_ref[...]
    h1 = jnp.tanh(z1.astype(act))

    # Layer 2: (tb,60) @ (60,120) + (1,120) -> tanh.
    z2 = jnp.dot(h1, w2_ref[...], preferred_element_type=jnp.float32,
                 precision=prec) + b2_ref[...]
    h2 = jnp.tanh(z2.astype(act))

    # Layer 3, computed pre-transposed for a lane-dense store:
    # (2,120) contracted with (tb,120) over the 120 axis -> (2, tb).
    z3t = jax.lax.dot_general(
        w3t_ref[...], h2, (((1,), (1,)), ((), ())),
        preferred_element_type=jnp.float32, precision=prec) + b3t_ref[...]
    ot_ref[...] = z3t.astype(ot_ref.dtype)


def prepare_params(params, compute_dtype=None):
    """Cast weights to the compute dtype and pre-transpose the last layer.

    Do this ONCE outside hot loops; cart_pole_forward also accepts the raw
    param dict and prepares on the fly (fine under jit, wasteful in eager).
    """
    if compute_dtype is None:
        compute_dtype = _default_compute_dtype()
    return {
        "w1": params["w1"].astype(compute_dtype),                    # (4, 60)
        "b1": params["b1"].reshape(1, _D_H1).astype(jnp.float32),
        "w2": params["w2"].astype(compute_dtype),                    # (60, 120)
        "b2": params["b2"].reshape(1, _D_H2).astype(jnp.float32),
        "w3t": params["w3"].T.astype(compute_dtype),                 # (2, 120)
        "b3t": params["b3"].reshape(_D_OUT, 1).astype(jnp.float32),  # (2, 1)
    }


def cart_pole_forward(x, params, *, tile_b=4096, compute_dtype=None):
    """x: (B, 4). params: raw dict (w1..b3, f32, W as (in,out)) or prepare_params output."""
    if "w3t" in params:
        kp = params
    else:
        kp = prepare_params(params, compute_dtype)
    act_dtype = kp["w1"].dtype

    B = x.shape[0]
    tile_b = max(int(tile_b), _LANE)

    # Adaptive tile: minimize padding waste, keep the 128-lane alignment the
    # transposed output store needs (also covers 8/16 sublane alignment of x).
    n_tiles = max(1, _cdiv(B, tile_b))
    if _is_v7x() and B > 2 * _LANE:
        n_tiles = max(n_tiles, 2)           # keep both v7x TensorCores busy
    tb = _round_up(_cdiv(B, n_tiles), _LANE)
    n_tiles = _cdiv(B, tb)
    bp = n_tiles * tb
    if bp != B:
        x = jnp.pad(x, ((0, bp - B), (0, 0)))

    # Weights/biases: full-array blocks, constant index map -> loaded once,
    # VMEM-resident across every grid step (~37 KB).
    resident = lambda a: pl.BlockSpec(a.shape, lambda i: (0, 0))

    act_bytes = jnp.dtype(act_dtype).itemsize
    weight_bytes = (_D_IN * _D_H1 + _D_H1 * _D_H2 + _D_H2 * _D_OUT) * act_bytes \
        + (_D_H1 + _D_H2 + _D_OUT) * 4

    out_t = pl.pallas_call(
        _mlp_kernel,
        out_shape=jax.ShapeDtypeStruct((_D_OUT, bp), jnp.float32),
        grid=(n_tiles,),
        in_specs=[
            pl.BlockSpec((tb, _D_IN), lambda i: (i, 0)),
            resident(kp["w1"]), resident(kp["b1"]),
            resident(kp["w2"]), resident(kp["b2"]),
            resident(kp["w3t"]), resident(kp["b3t"]),
        ],
        out_specs=pl.BlockSpec((_D_OUT, tb), lambda i: (0, i)),
        compiler_params=pltpu.CompilerParams(
            # Batch tiles are independent -> shard across v7x's 2 TensorCores.
            dimension_semantics=("parallel",),
            vmem_limit_bytes=32 * 1024 * 1024,
        ),
        cost_estimate=pl.CostEstimate(
            flops=_FLOPS_PER_ROW * bp,
            transcendentals=_TANH_PER_ROW * bp,
            bytes_accessed=bp * _D_IN * jnp.dtype(x.dtype).itemsize
            + bp * _D_OUT * 4 + weight_bytes,
        ),
    )(x, kp["w1"], kp["b1"], kp["w2"], kp["b2"], kp["w3t"], kp["b3t"])

    # (2, bp) -> (B, 2); the transpose outside the kernel touches only 8*B bytes.
    return out_t[:, :B].T


def init_params(key):
    """PyTorch-style Linear init: U(-1/sqrt(fan_in), 1/sqrt(fan_in))."""
    dims = [(_D_IN, _D_H1), (_D_H1, _D_H2), (_D_H2, _D_OUT)]
    params = {}
    for idx, (fan_in, fan_out) in enumerate(dims, start=1):
        key, kw, kb = jax.random.split(key, 3)
        bound = 1.0 / jnp.sqrt(jnp.float32(fan_in))
        params[f"w{idx}"] = jax.random.uniform(
            kw, (fan_in, fan_out), jnp.float32, minval=-bound, maxval=bound)
        params[f"b{idx}"] = jax.random.uniform(
            kb, (1, fan_out), jnp.float32, minval=-bound, maxval=bound)
    return params


def reference_forward(x, params):
    h1 = jnp.tanh(x @ params["w1"] + params["b1"])
    h2 = jnp.tanh(h1 @ params["w2"] + params["b2"])
    return h2 @ params["w3"] + params["b3"]


if __name__ == "__main__":
    key = jax.random.PRNGKey(0)
    key, kx = jax.random.split(key)
    B = 8
    x = jax.random.normal(kx, (B, 4), jnp.float32)
    params = init_params(key)
    ref = reference_forward(x, params)

    # 1) Explicit f32 path (precision=HIGHEST inside the kernel), tight check.
    out = jax.block_until_ready(
        cart_pole_forward(x, params, compute_dtype=jnp.float32))
    assert out.shape == (B, 2), out.shape
    assert jnp.allclose(out, ref, atol=1e-5, rtol=1e-5), (
        f"f32 max abs err {float(jnp.max(jnp.abs(out - ref)))}")

    # 2) Auto dtype path (bf16 on v6e/v7x, f32 on v5e), params prepared once.
    prepped_auto = prepare_params(params)
    out_auto = jax.block_until_ready(cart_pole_forward(x, prepped_auto))
    assert out_auto.shape == (B, 2), out_auto.shape
    assert jnp.allclose(out_auto, ref, atol=1e-1, rtol=1e-1), (
        f"auto-dtype max abs err {float(jnp.max(jnp.abs(out_auto - ref)))}")

    # 3) Multi-tile + tail-padding path (B not a multiple of the tile).
    key, kx2 = jax.random.split(key)
    B2 = 1000
    x2 = jax.random.normal(kx2, (B2, 4), jnp.float32)
    prepped_f32 = prepare_params(params, jnp.float32)
    out2 = jax.block_until_ready(
        cart_pole_forward(x2, prepped_f32, tile_b=256))
    ref2 = reference_forward(x2, params)
    assert out2.shape == (B2, 2), out2.shape
    assert jnp.allclose(out2, ref2, atol=1e-5, rtol=1e-5), (
        f"tiled max abs err {float(jnp.max(jnp.abs(out2 - ref2)))}")

    print("KERNEL_OK")
</pallas_src>

<mosaic_0001>
module attributes {stable_mosaic.version = 11 : i64} {
  func.func @_mlp_kernel(%arg0: i32, %arg1: memref<128x4xf32, #tpu.memory_space<vmem>>, %arg2: memref<4x60xf32, #tpu.memory_space<vmem>>, %arg3: memref<1x60xf32, #tpu.memory_space<vmem>>, %arg4: memref<60x120xf32, #tpu.memory_space<vmem>>, %arg5: memref<1x120xf32, #tpu.memory_space<vmem>>, %arg6: memref<2x120xf32, #tpu.memory_space<vmem>>, %arg7: memref<2x1xf32, #tpu.memory_space<vmem>>, %arg8: memref<2x128xf32, #tpu.memory_space<vmem>>) attributes {dimension_semantics = [#tpu.dimension_semantics<parallel>], iteration_bounds = array<i64: 1>, scalar_prefetch = 0 : i64, scratch_operands = 0 : i64, tpu.core_type = #tpu.core_type<tc>, window_params = [{transform_indices = @transform_0, window_bounds = array<i64: 128, 4>}, {pipeline_mode = #tpu.pipeline_mode<synchronous>, transform_indices = @transform_1, window_bounds = array<i64: 4, 60>}, {pipeline_mode = #tpu.pipeline_mode<synchronous>, transform_indices = @transform_2, window_bounds = array<i64: 1, 60>}, {pipeline_mode = #tpu.pipeline_mode<synchronous>, transform_indices = @transform_3, window_bounds = array<i64: 60, 120>}, {pipeline_mode = #tpu.pipeline_mode<synchronous>, transform_indices = @transform_4, window_bounds = array<i64: 1, 120>}, {pipeline_mode = #tpu.pipeline_mode<synchronous>, transform_indices = @transform_5, window_bounds = array<i64: 2, 120>}, {pipeline_mode = #tpu.pipeline_mode<synchronous>, transform_indices = @transform_6, window_bounds = array<i64: 2, 1>}, {transform_indices = @transform_7, window_bounds = array<i64: 2, 128>}]} {
    %c0 = arith.constant 0 : index
    %c0_0 = arith.constant 0 : index
    %0 = vector.load %arg1[%c0, %c0_0] : memref<128x4xf32, #tpu.memory_space<vmem>>, vector<128x4xf32>
    %c0_1 = arith.constant 0 : index
    %c0_2 = arith.constant 0 : index
    %1 = vector.load %arg2[%c0_1, %c0_2] : memref<4x60xf32, #tpu.memory_space<vmem>>, vector<4x60xf32>
    %cst = arith.constant dense<0.000000e+00> : vector<128x60xf32>
    %2 = tpu.matmul %0, %1, %cst {dimension_numbers = #tpu.dot_dimension_numbers<[1], [0], [0], [1], [0, 0, 1, 1], [], []>, precision = #tpu.contract_precision<fp32>} : vector<128x4xf32>, vector<4x60xf32>, vector<128x60xf32> -> vector<128x60xf32>
    %c0_3 = arith.constant 0 : index
    %c0_4 = arith.constant 0 : index
    %3 = vector.load %arg3[%c0_3, %c0_4] : memref<1x60xf32, #tpu.memory_space<vmem>>, vector<1x60xf32>
    %4 = vector.broadcast %3 : vector<1x60xf32> to vector<128x60xf32>
    %5 = arith.addf %2, %4 : vector<128x60xf32>
    %6 = math.tanh %5 : vector<128x60xf32>
    %c0_5 = arith.constant 0 : index
    %c0_6 = arith.constant 0 : index
    %7 = vector.load %arg4[%c0_5, %c0_6] : memref<60x120xf32, #tpu.memory_space<vmem>>, vector<60x120xf32>
    %cst_7 = arith.constant dense<0.000000e+00> : vector<128x120xf32>
    %8 = tpu.matmul %6, %7, %cst_7 {dimension_numbers = #tpu.dot_dimension_numbers<[1], [0], [0], [1], [0, 0, 1, 1], [], []>, precision = #tpu.contract_precision<fp32>} : vector<128x60xf32>, vector<60x120xf32>, vector<128x120xf32> -> vector<128x120xf32>
    %c0_8 = arith.constant 0 : index
    %c0_9 = arith.constant 0 : index
    %9 = vector.load %arg5[%c0_8, %c0_9] : memref<1x120xf32, #tpu.memory_space<vmem>>, vector<1x120xf32>
    %10 = vector.broadcast %9 : vector<1x120xf32> to vector<128x120xf32>
    %11 = arith.addf %8, %10 : vector<128x120xf32>
    %12 = math.tanh %11 : vector<128x120xf32>
    %c0_10 = arith.constant 0 : index
    %c0_11 = arith.constant 0 : index
    %13 = vector.load %arg6[%c0_10, %c0_11] : memref<2x120xf32, #tpu.memory_space<vmem>>, vector<2x120xf32>
    %cst_12 = arith.constant dense<0.000000e+00> : vector<2x128xf32>
    %14 = tpu.matmul %13, %12, %cst_12 {dimension_numbers = #tpu.dot_dimension_numbers<[1], [1], [0], [0], [0, 0, 1, 0], [], []>, precision = #tpu.contract_precision<fp32>} : vector<2x120xf32>, vector<128x120xf32>, vector<2x128xf32> -> vector<2x128xf32>
    %c0_13 = arith.constant 0 : index
    %c0_14 = arith.constant 0 : index
    %15 = vector.load %arg7[%c0_13, %c0_14] : memref<2x1xf32, #tpu.memory_space<vmem>>, vector<2x1xf32>
    %16 = vector.broadcast %15 : vector<2x1xf32> to vector<2x128xf32>
    %17 = arith.addf %14, %16 : vector<2x128xf32>
    %c0_15 = arith.constant 0 : index
    %c0_16 = arith.constant 0 : index
    %18 = vector.load %arg8[%c0_15, %c0_16] : memref<2x128xf32, #tpu.memory_space<vmem>>, vector<2x128xf32>
    tpu.vector_store %arg8[%c0_15, %c0_16], %17 {strides = array<i32>} : memref<2x128xf32, #tpu.memory_space<vmem>>, vector<2x128xf32>,
    return
  }
  func.func @transform_0(%arg0: i32) -> (i32, i32) {
    %c0_i32 = arith.constant 0 : i32
    %c0_i32_0 = arith.constant 0 : i32
    return %arg0, %c0_i32 : i32, i32
  }
  func.func @transform_1(%arg0: i32) -> (i32, i32) {
    %c0_i32 = arith.constant 0 : i32
    %c0_i32_0 = arith.constant 0 : i32
    %c0_i32_1 = arith.constant 0 : i32
    return %c0_i32, %c0_i32_0 : i32, i32
  }
  func.func @transform_2(%arg0: i32) -> (i32, i32) {
    %c0_i32 = arith.constant 0 : i32
    %c0_i32_0 = arith.constant 0 : i32
    %c0_i32_1 = arith.constant 0 : i32
    return %c0_i32, %c0_i32_0 : i32, i32
  }
  func.func @transform_3(%arg0: i32) -> (i32, i32) {
    %c0_i32 = arith.constant 0 : i32
    %c0_i32_0 = arith.constant 0 : i32
    %c0_i32_1 = arith.constant 0 : i32
    return %c0_i32, %c0_i32_0 : i32, i32
  }
  func.func @transform_4(%arg0: i32) -> (i32, i32) {
    %c0_i32 = arith.constant 0 : i32
    %c0_i32_0 = arith.constant 0 : i32
    %c0_i32_1 = arith.constant 0 : i32
    return %c0_i32, %c0_i32_0 : i32, i32
  }
  func.func @transform_5(%arg0: i32) -> (i32, i32) {
    %c0_i32 = arith.constant 0 : i32
    %c0_i32_0 = arith.constant 0 : i32
    %c0_i32_1 = arith.constant 0 : i32
    return %c0_i32, %c0_i32_0 : i32, i32
  }
  func.func @transform_6(%arg0: i32) -> (i32, i32) {
    %c0_i32 = arith.constant 0 : i32
    %c0_i32_0 = arith.constant 0 : i32
    %c0_i32_1 = arith.constant 0 : i32
    return %c0_i32, %c0_i32_0 : i32, i32
  }
  func.func @transform_7(%arg0: i32) -> (i32, i32) {
    %c0_i32 = arith.constant 0 : i32
    %c0_i32_0 = arith.constant 0 : i32
    return %c0_i32, %arg0 : i32, i32
  }
}

</mosaic_0001>

<llo_original>
// kernel: tpu_custom_call.1
$region0: #{tpu_custom_call.1}
  #allocation0 [shape = 'u32[]', space=smem, size = 0x4, offset = 0x4, fixed_abs, tag = 'smem constant byte address 0x4 - core index']
  #allocation1 [shape = 'u32[144,128]{1,0:T(1,128)}', space=vmem, size = 0x12000, scoped, tag = 'internal scratch']
  %s0 = inlined_call_operand.vmem [shape: f32[128,4], index: 0, kind: input, shape index: {}]
  %s1 = inlined_call_operand.vmem [shape: f32[4,60], index: 1, kind: input, shape index: {}]
  %s2 = inlined_call_operand.vmem [shape: f32[1,60], index: 2, kind: input, shape index: {}]
  %s3 = inlined_call_operand.vmem [shape: f32[60,120], index: 3, kind: input, shape index: {}]
  %s4 = inlined_call_operand.vmem [shape: f32[1,120], index: 4, kind: input, shape index: {}]
  %s5 = inlined_call_operand.vmem [shape: f32[2,120], index: 5, kind: input, shape index: {}]
  %s6 = inlined_call_operand.vmem [shape: f32[2,1], index: 6, kind: input, shape index: {}]
  %s7 = inlined_call_operand.hbm [shape: f32[2,128], index: 7, kind: output, shape index: {}]
  %s8 = sld [smem:[#allocation0]]
  $region38: #{tpu_custom_call.1} parent=0
    _
  %s10 = ssub.s32 1, %s8
  %s11 = scalar_select 0, %s10, %s8
  $region1: #{tpu_custom_call.1} parent=0
    #allocation2 [shape = 'u8[1024]{0}', space=vmem, size = 0x400, scoped, tag = 'output window, operand 0, single buffered']
    #allocation3 [shape = 's32[1]{0}', space=sflag, size = 0x4, scoped, tag = 'scoped memory for tpu_custom_call.1']
    %12 = vsyncpa [#allocation3], 0
    // Predicated region
    $region2: #{tpu_custom_call.1} parent=1 // pred_check
      _
    $region3: #{tpu_custom_call.1} parent=1 // pred_check_branch
      %14 = sbr.rel (0) target = $region5
    $region4: #{tpu_custom_call.1} parent=1 // pred_region
      _
    $region5: #{tpu_custom_call.1} parent=1 // pred_fallthru
      _
    // Predicated region
    $region6: #{tpu_custom_call.1} parent=1 // pred_check
      _
    $region7: #{tpu_custom_call.1} parent=1 // pred_check_branch
      %16 = sbr.rel (0) target = $region9
    $region8: #{tpu_custom_call.1} parent=1 // pred_region
      _
    $region9: #{tpu_custom_call.1} parent=1 // pred_fallthru
      _
    // Predicated region
    $region10: #{tpu_custom_call.1} parent=1 // pred_check
      _
    $region11: #{tpu_custom_call.1} parent=1 // pred_check_branch
      %18 = sbr.rel (0) target = $region13
    $region12: #{tpu_custom_call.1} parent=1 // pred_region
      _
    $region13: #{tpu_custom_call.1} parent=1 // pred_fallthru
      _
    // Predicated region
    $region14: #{tpu_custom_call.1} parent=1 // pred_check
      _
    $region15: #{tpu_custom_call.1} parent=1 // pred_check_branch
      %20 = sbr.rel (0) target = $region17
    $region16: #{tpu_custom_call.1} parent=1 // pred_region
      _
    $region17: #{tpu_custom_call.1} parent=1 // pred_fallthru
      _
    // Predicated region
    $region18: #{tpu_custom_call.1} parent=1 // pred_check
      _
    $region19: #{tpu_custom_call.1} parent=1 // pred_check_branch
      %22 = sbr.rel (0) target = $region21
    $region20: #{tpu_custom_call.1} parent=1 // pred_region
      _
    $region21: #{tpu_custom_call.1} parent=1 // pred_fallthru
      _
    // Predicated region
    $region22: #{tpu_custom_call.1} parent=1 // pred_check
      _
    $region23: #{tpu_custom_call.1} parent=1 // pred_check_branch
      %24 = sbr.rel (0) target = $region25
    $region24: #{tpu_custom_call.1} parent=1 // pred_region
      _
    $region25: #{tpu_custom_call.1} parent=1 // pred_fallthru
      _
    // Predicated region
    $region26: #{tpu_custom_call.1} parent=1 // pred_check
      _
    $region27: #{tpu_custom_call.1} parent=1 // pred_check_branch
      %26 = sbr.rel (0) target = $region29
    $region28: #{tpu_custom_call.1} parent=1 // pred_region
      _
    $region29: #{tpu_custom_call.1} parent=1 // pred_fallthru
      _
    %v27 = vld [vmem:[%s0] sm:$0xff]
    %v28 = vld [vmem:[%s0 + $0x8] sm:$0xff]
    %v29 = vld [vmem:[%s0 + $0x10] sm:$0xff]
    %v30 = vld [vmem:[%s0 + $0x18] sm:$0xff]
    %v31 = vld [vmem:[%s0 + $0x20] sm:$0xff]
    %v32 = vld [vmem:[%s0 + $0x28] sm:$0xff]
    %v33 = vld [vmem:[%s0 + $0x30] sm:$0xff]
    %v34 = vld [vmem:[%s0 + $0x38] sm:$0xff]
    %v35 = vld [vmem:[%s0 + $0x40] sm:$0xff]
    %v36 = vld [vmem:[%s0 + $0x48] sm:$0xff]
    %v37 = vld [vmem:[%s0 + $0x50] sm:$0xff]
    %v38 = vld [vmem:[%s0 + $0x58] sm:$0xff]
    %v39 = vld [vmem:[%s0 + $0x60] sm:$0xff]
    %v40 = vld [vmem:[%s0 + $0x68] sm:$0xff]
    %v41 = vld [vmem:[%s0 + $0x70] sm:$0xff]
    %v42 = vld [vmem:[%s0 + $0x78] sm:$0xff]
    %v43 = vld [vmem:[%s1] sm:$0xf]
    %v44 = vld [vmem:[%s2] sm:$0x1]
    %v46 = vlaneseq
    %v47 = vshrl.u32 %v46, 7
    %v48 = vsub.s32 0, %v47
    %v49 = vrot.slane %v44, %v48
    %vm51 = vcmask 31744
    %v53 = vsel %vm51, %v27, 0
    %v56 = vsel %vm51, %v28, 0
    %v59 = vsel %vm51, %v29, 0
    %v62 = vsel %vm51, %v30, 0
    %v65 = vsel %vm51, %v31, 0
    %v68 = vsel %vm51, %v32, 0
    %v71 = vsel %vm51, %v33, 0
    %v74 = vsel %vm51, %v34, 0
    %v77 = vsel %vm51, %v35, 0
    %v80 = vsel %vm51, %v36, 0
    %v83 = vsel %vm51, %v37, 0
    %v86 = vsel %vm51, %v38, 0
    %v89 = vsel %vm51, %v39, 0
    %v92 = vsel %vm51, %v40, 0
    %v95 = vsel %vm51, %v41, 0
    %v98 = vsel %vm51, %v42, 0
    %vm100 = vcmask 1043456
    %v102 = vsel %vm100, %v43, 0
    %104 = vmatprep.subr.mxu0 0.0
    %v105 = vand.u32 %v102, 4294901760
    %106 = vmatpush1.msra.mxu0 %v105
    %107 = vmatprep.subr.mxu0 0.0
    %108 = vmatpush1.msra.mxu0 0.0
    %109 = vmatprep.subr.mxu0 0.0
    %110 = vmatpush1.msra.mxu0 0.0
    %111 = vmatprep.subr.mxu0 0.0
    %112 = vmatpush1.msra.mxu0 0.0
    %113 = vmatprep.subr.mxu0 0.0
    %114 = vmatpush1.msra.mxu0 0.0
    %115 = vmatprep.subr.mxu0 0.0
    %116 = vmatpush1.msra.mxu0 0.0
    %117 = vmatprep.subr.mxu0 0.0
    %118 = vmatpush1.msra.mxu0 0.0
    %119 = vmatprep.subr.mxu0 0.0
    %120 = vmatpush1.msra.mxu0 0.0
    %121 = vmatprep.subr.mxu0 0.0
    %122 = vmatpush1.msra.mxu0 0.0
    %123 = vmatprep.subr.mxu0 0.0
    %124 = vmatpush1.msra.mxu0 0.0
    %125 = vmatprep.subr.mxu0 0.0
    %126 = vmatpush1.msra.mxu0 0.0
    %127 = vmatprep.subr.mxu0 0.0
    %128 = vmatpush1.msra.mxu0 0.0
    %129 = vmatprep.subr.mxu0 0.0
    %130 = vmatpush1.msra.mxu0 0.0
    %131 = vmatprep.subr.mxu0 0.0
    %132 = vmatpush1.msra.mxu0 0.0
    %133 = vmatprep.subr.mxu0 0.0
    %134 = vmatpush1.msra.mxu0 0.0
    %135 = vmatprep.subr.mxu0 0.0
    %136 = vmatpush1.msra.mxu0 0.0
    %137 = vmatprep.subr.mxu0 0.0
    %138 = vmatpush1.msra.mxu0 0.0
    %139 = vmatprep.subr.mxu0 0.0
    %140 = vmatpush1.msra.mxu0 0.0
    %141 = vmatprep.subr.mxu0 0.0
    %142 = vmatpush1.msra.mxu0 0.0
    %143 = vmatprep.subr.mxu0 0.0
    %144 = vmatpush1.msra.mxu0 0.0
    %145 = vmatprep.subr.mxu0 0.0
    %146 = vmatpush1.msra.mxu0 0.0
    %147 = vmatprep.subr.mxu0 0.0
    %148 = vmatpush1.msra.mxu0 0.0
    %149 = vmatprep.subr.mxu0 0.0
    %150 = vmatpush1.msra.mxu0 0.0
    %151 = vmatprep.subr.mxu0 0.0
    %152 = vmatpush1.msra.mxu0 0.0
    %153 = vmatprep.subr.mxu0 0.0
    %154 = vmatpush1.msra.mxu0 0.0
    %155 = vmatprep.subr.mxu0 0.0
    %156 = vmatpush1.msra.mxu0 0.0
    %157 = vmatprep.subr.mxu0 0.0
    %158 = vmatpush1.msra.mxu0 0.0
    %159 = vmatprep.subr.mxu0 0.0
    %160 = vmatpush1.msra.mxu0 0.0
    %161 = vmatprep.subr.mxu0 0.0
    %162 = vmatpush1.msra.mxu0 0.0
    %163 = vmatprep.subr.mxu0 0.0
    %164 = vmatpush1.msra.mxu0 0.0
    %165 = vmatprep.subr.mxu0 0.0
    %166 = vmatpush1.msra.mxu0 0.0
    %167 = vmatprep.subr.mxu0 0.0
    %168 = vmatpush1.msra.mxu0 0.0
    %169 = vmatprep.mubr.f32.mxu0 0.0
    %v170 = vand.u32 %v53, 4294901760
    %v171 = vsub.f32 %v53, %v170
    %v172 = vand.u32 %v171, 4294901760
    %v173 = vsub.f32 %v171, %v172
    %v174 = vand.u32 %v173, 4294901760
    %175 = vmatmul.mubr.f32.gmra.mrb[0].mxu0 %v174
    %v176 = vpop.f32.mrb[0].mxu0
    %v177 = vadd.f32 %v49, %v176
    %v178 = vpop.f32.mrb[0].mxu0
    %179 = vmatprep.mubr.f32.mxu0 0.0
    %v180 = vand.u32 %v56, 4294901760
    %v181 = vsub.f32 %v56, %v180
    %v182 = vand.u32 %v181, 4294901760
    %v183 = vsub.f32 %v181, %v182
    %v184 = vand.u32 %v183, 4294901760
    %185 = vmatmul.mubr.f32.gmra.mrb[0].mxu0 %v184
    %v186 = vpop.f32.mrb[0].mxu0
    %v187 = vadd.f32 %v49, %v186
    %v188 = vpop.f32.mrb[0].mxu0
    %189 = vmatprep.mubr.f32.mxu0 0.0
    %v190 = vand.u32 %v59, 4294901760
    %v191 = vsub.f32 %v59, %v190
    %v192 = vand.u32 %v191, 4294901760
    %v193 = vsub.f32 %v191, %v192
    %v194 = vand.u32 %v193, 4294901760
    %195 = vmatmul.mubr.f32.gmra.mrb[0].mxu0 %v194
    %v196 = vpop.f32.mrb[0].mxu0
    %v197 = vadd.f32 %v49, %v196
    %v198 = vpop.f32.mrb[0].mxu0
    %199 = vmatprep.mubr.f32.mxu0 0.0
    %v200 = vand.u32 %v62, 4294901760
    %v201 = vsub.f32 %v62, %v200
    %v202 = vand.u32 %v201, 4294901760
    %v203 = vsub.f32 %v201, %v202
    %v204 = vand.u32 %v203, 4294901760
    %205 = vmatmul.mubr.f32.gmra.mrb[0].mxu0 %v204
    %v206 = vpop.f32.mrb[0].mxu0
    %v207 = vadd.f32 %v49, %v206
    %v208 = vpop.f32.mrb[0].mxu0
    %209 = vmatprep.mubr.f32.mxu0 0.0
    %v210 = vand.u32 %v65, 4294901760
    %v211 = vsub.f32 %v65, %v210
    %v212 = vand.u32 %v211, 4294901760
    %v213 = vsub.f32 %v211, %v212
    %v214 = vand.u32 %v213, 4294901760
    %215 = vmatmul.mubr.f32.gmra.mrb[0].mxu0 %v214
    %v216 = vpop.f32.mrb[0].mxu0
    %v217 = vadd.f32 %v49, %v216
    %v218 = vpop.f32.mrb[0].mxu0
    %219 = vmatprep.mubr.f32.mxu0 0.0
    %v220 = vand.u32 %v68, 4294901760
    %v221 = vsub.f32 %v68, %v220
    %v222 = vand.u32 %v221, 4294901760
    %v223 = vsub.f32 %v221, %v222
    %v224 = vand.u32 %v223, 4294901760
    %225 = vmatmul.mubr.f32.gmra.mrb[0].mxu0 %v224
    %v226 = vpop.f32.mrb[0].mxu0
    %v227 = vadd.f32 %v49, %v226
    %v228 = vpop.f32.mrb[0].mxu0
    %229 = vmatprep.mubr.f32.mxu0 0.0
    %v230 = vand.u32 %v71, 4294901760
    %v231 = vsub.f32 %v71, %v230
    %v232 = vand.u32 %v231, 4294901760
    %v233 = vsub.f32 %v231, %v232
    %v234 = vand.u32 %v233, 4294901760
    %235 = vmatmul.mubr.f32.gmra.mrb[0].mxu0 %v234
    %v236 = vpop.f32.mrb[0].mxu0
    %v237 = vadd.f32 %v49, %v236
    %v238 = vpop.f32.mrb[0].mxu0
    %239 = vmatprep.mubr.f32.mxu0 0.0
    %v240 = vand.u32 %v74, 4294901760
    %v241 = vsub.f32 %v74, %v240
    %v242 = vand.u32 %v241, 4294901760
    %v243 = vsub.f32 %v241, %v242
    %v244 = vand.u32 %v243, 4294901760
    %245 = vmatmul.mubr.f32.gmra.mrb[0].mxu0 %v244
    %v246 = vpop.f32.mrb[0].mxu0
    %v247 = vadd.f32 %v49, %v246
    %v248 = vpop.f32.mrb[0].mxu0
    %249 = vmatprep.mubr.f32.mxu0 0.0
    %v250 = vand.u32 %v77, 4294901760
    %v251 = vsub.f32 %v77, %v250
    %v252 = vand.u32 %v251, 4294901760
    %v253 = vsub.f32 %v251, %v252
    %v254 = vand.u32 %v253, 4294901760
    %255 = vmatmul.mubr.f32.gmra.mrb[0].mxu0 %v254
    %v256 = vpop.f32.mrb[0].mxu0
    %v257 = vadd.f32 %v49, %v256
    %v258 = vpop.f32.mrb[0].mxu0
    %259 = vmatprep.mubr.f32.mxu0 0.0
    %v260 = vand.u32 %v80, 4294901760
    %v261 = vsub.f32 %v80, %v260
    %v262 = vand.u32 %v261, 4294901760
    %v263 = vsub.f32 %v261, %v262
    %v264 = vand.u32 %v263, 4294901760
    %265 = vmatmul.mubr.f32.gmra.mrb[0].mxu0 %v264
    %v266 = vpop.f32.mrb[0].mxu0
    %v267 = vadd.f32 %v49, %v266
    %v268 = vpop.f32.mrb[0].mxu0
    %269 = vmatprep.mubr.f32.mxu0 0.0
    %v270 = vand.u32 %v83, 4294901760
    %v271 = vsub.f32 %v83, %v270
    %v272 = vand.u32 %v271, 4294901760
    %v273 = vsub.f32 %v271, %v272
    %v274 = vand.u32 %v273, 4294901760
    %275 = vmatmul.mubr.f32.gmra.mrb[0].mxu0 %v274
    %v276 = vpop.f32.mrb[0].mxu0
    %v277 = vadd.f32 %v49, %v276
    %v278 = vpop.f32.mrb[0].mxu0
    %279 = vmatprep.mubr.f32.mxu0 0.0
    %v280 = vand.u32 %v86, 4294901760
    %v281 = vsub.f32 %v86, %v280
    %v282 = vand.u32 %v281, 4294901760
    %v283 = vsub.f32 %v281, %v282
    %v284 = vand.u32 %v283, 4294901760
    %285 = vmatmul.mubr.f32.gmra.mrb[0].mxu0 %v284
    %v286 = vpop.f32.mrb[0].mxu0
    %v287 = vadd.f32 %v49, %v286
    %v288 = vpop.f32.mrb[0].mxu0
    %289 = vmatprep.mubr.f32.mxu0 0.0
    %v290 = vand.u32 %v89, 4294901760
    %v291 = vsub.f32 %v89, %v290
    %v292 = vand.u32 %v291, 4294901760
    %v293 = vsub.f32 %v291, %v292
    %v294 = vand.u32 %v293, 4294901760
    %295 = vmatmul.mubr.f32.gmra.mrb[0].mxu0 %v294
    %v296 = vpop.f32.mrb[0].mxu0
    %v297 = vadd.f32 %v49, %v296
    %v298 = vpop.f32.mrb[0].mxu0
    %299 = vmatprep.mubr.f32.mxu0 0.0
    %v300 = vand.u32 %v92, 4294901760
    %v301 = vsub.f32 %v92, %v300
    %v302 = vand.u32 %v301, 4294901760
    %v303 = vsub.f32 %v301, %v302
    %v304 = vand.u32 %v303, 4294901760
    %305 = vmatmul.mubr.f32.gmra.mrb[0].mxu0 %v304
    %v306 = vpop.f32.mrb[0].mxu0
    %v307 = vadd.f32 %v49, %v306
    %v308 = vpop.f32.mrb[0].mxu0
    %309 = vmatprep.mubr.f32.mxu0 0.0
    %v310 = vand.u32 %v95, 4294901760
    %v311 = vsub.f32 %v95, %v310
    %v312 = vand.u32 %v311, 4294901760
    %v313 = vsub.f32 %v311, %v312
    %v314 = vand.u32 %v313, 4294901760
    %315 = vmatmul.mubr.f32.gmra.mrb[0].mxu0 %v314
    %v316 = vpop.f32.mrb[0].mxu0
    %v317 = vadd.f32 %v49, %v316
    %v318 = vpop.f32.mrb[0].mxu0
    %319 = vmatprep.mubr.f32.mxu0 0.0
    %v320 = vand.u32 %v98, 4294901760
    %v321 = vsub.f32 %v98, %v320
    %v322 = vand.u32 %v321, 4294901760
    %v323 = vsub.f32 %v321, %v322
    %v324 = vand.u32 %v323, 4294901760
    %325 = vmatmul.mubr.f32.gmra.mrb[0].mxu0 %v324
    %v326 = vpop.f32.mrb[0].mxu0
    %v327 = vadd.f32 %v49, %v326
    %v328 = vpop.f32.mrb[0].mxu0
    %329 = vdwg.mxu0
    %330 = vmatprep.subr.mxu0 0.0
    %v331 = vand.u32 %v102, 4294901760
    %v332 = vsub.f32 %v102, %v331
    %v333 = vand.u32 %v332, 4294901760
    %v334 = vsub.f32 %v332, %v333
    %v335 = vand.u32 %v334, 4294901760
    %336 = vmatpush1.msra.mxu0 %v335
    %337 = vmatprep.subr.mxu0 0.0
    %338 = vmatpush1.msra.mxu0 0.0
    %339 = vmatprep.subr.mxu0 0.0
    %340 = vmatpush1.msra.mxu0 0.0
    %341 = vmatprep.subr.mxu0 0.0
    %342 = vmatpush1.msra.mxu0 0.0
    %343 = vmatprep.subr.mxu0 0.0
    %344 = vmatpush1.msra.mxu0 0.0
    %345 = vmatprep.subr.mxu0 0.0
    %346 = vmatpush1.msra.mxu0 0.0
    %347 = vmatprep.subr.mxu0 0.0
    %348 = vmatpush1.msra.mxu0 0.0
    %349 = vmatprep.subr.mxu0 0.0
    %350 = vmatpush1.msra.mxu0 0.0
    %351 = vmatprep.subr.mxu0 0.0
    %352 = vmatpush1.msra.mxu0 0.0
    %353 = vmatprep.subr.mxu0 0.0
    %354 = vmatpush1.msra.mxu0 0.0
    %355 = vmatprep.subr.mxu0 0.0
    %356 = vmatpush1.msra.mxu0 0.0
    %357 = vmatprep.subr.mxu0 0.0
    %358 = vmatpush1.msra.mxu0 0.0
    %359 = vmatprep.subr.mxu0 0.0
    %360 = vmatpush1.msra.mxu0 0.0
    %361 = vmatprep.subr.mxu0 0.0
    %362 = vmatpush1.msra.mxu0 0.0
    %363 = vmatprep.subr.mxu0 0.0
    %364 = vmatpush1.msra.mxu0 0.0
    %365 = vmatprep.subr.mxu0 0.0
    %366 = vmatpush1.msra.mxu0 0.0
    %367 = vmatprep.subr.mxu0 0.0
    %368 = vmatpush1.msra.mxu0 0.0
    %369 = vmatprep.subr.mxu0 0.0
    %370 = vmatpush1.msra.mxu0 0.0
    %371 = vmatprep.subr.mxu0 0.0
    %372 = vmatpush1.msra.mxu0 0.0
    %373 = vmatprep.subr.mxu0 0.0
    %374 = vmatpush1.msra.mxu0 0.0
    %375 = vmatprep.subr.mxu0 0.0
    %376 = vmatpush1.msra.mxu0 0.0
    %377 = vmatprep.subr.mxu0 0.0
    %378 = vmatpush1.msra.mxu0 0.0
    %379 = vmatprep.subr.mxu0 0.0
    %380 = vmatpush1.msra.mxu0 0.0
    %381 = vmatprep.subr.mxu0 0.0
    %382 = vmatpush1.msra.mxu0 0.0
    %383 = vmatprep.subr.mxu0 0.0
    %384 = vmatpush1.msra.mxu0 0.0
    %385 = vmatprep.subr.mxu0 0.0
    %386 = vmatpush1.msra.mxu0 0.0
    %387 = vmatprep.subr.mxu0 0.0
    %388 = vmatpush1.msra.mxu0 0.0
    %389 = vmatprep.subr.mxu0 0.0
    %390 = vmatpush1.msra.mxu0 0.0
    %391 = vmatprep.subr.mxu0 0.0
    %392 = vmatpush1.msra.mxu0 0.0
    %393 = vmatprep.subr.mxu0 0.0
    %394 = vmatpush1.msra.mxu0 0.0
    %395 = vmatprep.subr.mxu0 0.0
    %396 = vmatpush1.msra.mxu0 0.0
    %397 = vmatprep.subr.mxu0 0.0
    %398 = vmatpush1.msra.mxu0 0.0
    %399 = vmatprep.mubr.f32.mxu0 0.0
    %v400 = vand.u32 %v53, 4294901760
    %401 = vmatmul.mubr.f32.gmra.mrb[0].mxu0 %v400
    %v402 = vpop.f32.mrb[0].mxu0
    %v403 = vadd.f32 %v177, %v402
    %v404 = vpop.f32.mrb[0].mxu0
    %405 = vmatprep.mubr.f32.mxu0 0.0
    %v406 = vand.u32 %v56, 4294901760
    %407 = vmatmul.mubr.f32.gmra.mrb[0].mxu0 %v406
    %v408 = vpop.f32.mrb[0].mxu0
    %v409 = vadd.f32 %v187, %v408
    %v410 = vpop.f32.mrb[0].mxu0
    %411 = vmatprep.mubr.f32.mxu0 0.0
    %v412 = vand.u32 %v59, 4294901760
    %413 = vmatmul.mubr.f32.gmra.mrb[0].mxu0 %v412
    %v414 = vpop.f32.mrb[0].mxu0
    %v415 = vadd.f32 %v197, %v414
    %v416 = vpop.f32.mrb[0].mxu0
    %417 = vmatprep.mubr.f32.mxu0 0.0
    %v418 = vand.u32 %v62, 4294901760
    %419 = vmatmul.mubr.f32.gmra.mrb[0].mxu0 %v418
    %v420 = vpop.f32.mrb[0].mxu0
    %v421 = vadd.f32 %v207, %v420
    %v422 = vpop.f32.mrb[0].mxu0
    %423 = vmatprep.mubr.f32.mxu0 0.0
    %v424 = vand.u32 %v65, 4294901760
    %425 = vmatmul.mubr.f32.gmra.mrb[0].mxu0 %v424
    %v426 = vpop.f32.mrb[0].mxu0
    %v427 = vadd.f32 %v217, %v426
    %v428 = vpop.f32.mrb[0].mxu0
    %429 = vmatprep.mubr.f32.mxu0 0.0
    %v430 = vand.u32 %v68, 4294901760
    %431 = vmatmul.mubr.f32.gmra.mrb[0].mxu0 %v430
    %v432 = vpop.f32.mrb[0].mxu0
    %v433 = vadd.f32 %v227, %v432
    %v434 = vpop.f32.mrb[0].mxu0
    %435 = vmatprep.mubr.f32.mxu0 0.0
    %v436 = vand.u32 %v71, 4294901760
    %437 = vmatmul.mubr.f32.gmra.mrb[0].mxu0 %v436
    %v438 = vpop.f32.mrb[0].mxu0
    %v439 = vadd.f32 %v237, %v438
    %v440 = vpop.f32.mrb[0].mxu0
    %441 = vmatprep.mubr.f32.mxu0 0.0
    %v442 = vand.u32 %v74, 4294901760
    %443 = vmatmul.mubr.f32.gmra.mrb[0].mxu0 %v442
    %v444 = vpop.f32.mrb[0].mxu0
    %v445 = vadd.f32 %v247, %v444
    %v446 = vpop.f32.mrb[0].mxu0
    %447 = vmatprep.mubr.f32.mxu0 0.0
    %v448 = vand.u32 %v77, 4294901760
    %449 = vmatmul.mubr.f32.gmra.mrb[0].mxu0 %v448
    %v450 = vpop.f32.mrb[0].mxu0
    %v451 = vadd.f32 %v257, %v450
    %v452 = vpop.f32.mrb[0].mxu0
    %453 = vmatprep.mubr.f32.mxu0 0.0
    %v454 = vand.u32 %v80, 4294901760
    %455 = vmatmul.mubr.f32.gmra.mrb[0].mxu0 %v454
    %v456 = vpop.f32.mrb[0].mxu0
    %v457 = vadd.f32 %v267, %v456
    %v458 = vpop.f32.mrb[0].mxu0
    %459 = vmatprep.mubr.f32.mxu0 0.0
    %v460 = vand.u32 %v83, 4294901760
    %461 = vmatmul.mubr.f32.gmra.mrb[0].mxu0 %v460
    %v462 = vpop.f32.mrb[0].mxu0
    %v463 = vadd.f32 %v277, %v462
    %v464 = vpop.f32.mrb[0].mxu0
    %465 = vmatprep.mubr.f32.mxu0 0.0
    %v466 = vand.u32 %v86, 4294901760
    %467 = vmatmul.mubr.f32.gmra.mrb[0].mxu0 %v466
    %v468 = vpop.f32.mrb[0].mxu0
    %v469 = vadd.f32 %v287, %v468
    %v470 = vpop.f32.mrb[0].mxu0
    %471 = vmatprep.mubr.f32.mxu0 0.0
    %v472 = vand.u32 %v89, 4294901760
    %473 = vmatmul.mubr.f32.gmra.mrb[0].mxu0 %v472
    %v474 = vpop.f32.mrb[0].mxu0
    %v475 = vadd.f32 %v297, %v474
    %v476 = vpop.f32.mrb[0].mxu0
    %477 = vmatprep.mubr.f32.mxu0 0.0
    %v478 = vand.u32 %v92, 4294901760
    %479 = vmatmul.mubr.f32.gmra.mrb[0].mxu0 %v478
    %v480 = vpop.f32.mrb[0].mxu0
    %v481 = vadd.f32 %v307, %v480
    %v482 = vpop.f32.mrb[0].mxu0
    %483 = vmatprep.mubr.f32.mxu0 0.0
    %v484 = vand.u32 %v95, 4294901760
    %485 = vmatmul.mubr.f32.gmra.mrb[0].mxu0 %v484
    %v486 = vpop.f32.mrb[0].mxu0
    %v487 = vadd.f32 %v317, %v486
    %v488 = vpop.f32.mrb[0].mxu0
    %489 = vmatprep.mubr.f32.mxu0 0.0
    %v490 = vand.u32 %v98, 4294901760
    %491 = vmatmul.mubr.f32.gmra.mrb[0].mxu0 %v490
    %v492 = vpop.f32.mrb[0].mxu0
    %v493 = vadd.f32 %v327, %v492
    %v494 = vpop.f32.mrb[0].mxu0
    %495 = vdwg.mxu0
    %496 = vmatprep.subr.mxu0 0.0
    %v497 = vand.u32 %v102, 4294901760
    %v498 = vsub.f32 %v102, %v497
    %499 = vmatpush1.msra.mxu0 %v498
    %500 = vmatprep.subr.mxu0 0.0
    %501 = vmatpush1.msra.mxu0 0.0
    %502 = vmatprep.subr.mxu0 0.0
    %503 = vmatpush1.msra.mxu0 0.0
    %504 = vmatprep.subr.mxu0 0.0
    %505 = vmatpush1.msra.mxu0 0.0
    %506 = vmatprep.subr.mxu0 0.0
    %507 = vmatpush1.msra.mxu0 0.0
    %508 = vmatprep.subr.mxu0 0.0
    %509 = vmatpush1.msra.mxu0 0.0
    %510 = vmatprep.subr.mxu0 0.0
    %511 = vmatpush1.msra.mxu0 0.0
    %512 = vmatprep.subr.mxu0 0.0
    %513 = vmatpush1.msra.mxu0 0.0
    %514 = vmatprep.subr.mxu0 0.0
    %515 = vmatpush1.msra.mxu0 0.0
    %516 = vmatprep.subr.mxu0 0.0
    %517 = vmatpush1.msra.mxu0 0.0
    %518 = vmatprep.subr.mxu0 0.0
    %519 = vmatpush1.msra.mxu0 0.0
    %520 = vmatprep.subr.mxu0 0.0
    %521 = vmatpush1.msra.mxu0 0.0
    %522 = vmatprep.subr.mxu0 0.0
    %523 = vmatpush1.msra.mxu0 0.0
    %524 = vmatprep.subr.mxu0 0.0
    %525 = vmatpush1.msra.mxu0 0.0
    %526 = vmatprep.subr.mxu0 0.0
    %527 = vmatpush1.msra.mxu0 0.0
    %528 = vmatprep.subr.mxu0 0.0
    %529 = vmatpush1.msra.mxu0 0.0
    %530 = vmatprep.subr.mxu0 0.0
    %531 = vmatpush1.msra.mxu0 0.0
    %532 = vmatprep.subr.mxu0 0.0
    %533 = vmatpush1.msra.mxu0 0.0
    %534 = vmatprep.subr.mxu0 0.0
    %535 = vmatpush1.msra.mxu0 0.0
    %536 = vmatprep.subr.mxu0 0.0
    %537 = vmatpush1.msra.mxu0 0.0
    %538 = vmatprep.subr.mxu0 0.0
    %539 = vmatpush1.msra.mxu0 0.0
    %540 = vmatprep.subr.mxu0 0.0
    %541 = vmatpush1.msra.mxu0 0.0
    %542 = vmatprep.subr.mxu0 0.0
    %543 = vmatpush1.msra.mxu0 0.0
    %544 = vmatprep.subr.mxu0 0.0
    %545 = vmatpush1.msra.mxu0 0.0
    %546 = vmatprep.subr.mxu0 0.0
    %547 = vmatpush1.msra.mxu0 0.0
    %548 = vmatprep.subr.mxu0 0.0
    %549 = vmatpush1.msra.mxu0 0.0
    %550 = vmatprep.subr.mxu0 0.0
    %551 = vmatpush1.msra.mxu0 0.0
    %552 = vmatprep.subr.mxu0 0.0
    %553 = vmatpush1.msra.mxu0 0.0
    %554 = vmatprep.subr.mxu0 0.0
    %555 = vmatpush1.msra.mxu0 0.0
    %556 = vmatprep.subr.mxu0 0.0
    %557 = vmatpush1.msra.mxu0 0.0
    %558 = vmatprep.subr.mxu0 0.0
    %559 = vmatpush1.msra.mxu0 0.0
    %560 = vmatprep.subr.mxu0 0.0
    %561 = vmatpush1.msra.mxu0 0.0
    %562 = vmatprep.mubr.f32.mxu0 0.0
    %v563 = vand.u32 %v53, 4294901760
    %v564 = vsub.f32 %v53, %v563
    %565 = vmatmul.mubr.f32.gmra.mrb[0].mxu0 %v564
    %v566 = vpop.f32.mrb[0].mxu0
    %v567 = vadd.f32 %v403, %v566
    %v568 = vpop.f32.mrb[0].mxu0
    %569 = vmatprep.mubr.f32.mxu0 0.0
    %v570 = vand.u32 %v56, 4294901760
    %v571 = vsub.f32 %v56, %v570
    %572 = vmatmul.mubr.f32.gmra.mrb[0].mxu0 %v571
    %v573 = vpop.f32.mrb[0].mxu0
    %v574 = vadd.f32 %v409, %v573
    %v575 = vpop.f32.mrb[0].mxu0
    %576 = vmatprep.mubr.f32.mxu0 0.0
    %v577 = vand.u32 %v59, 4294901760
    %v578 = vsub.f32 %v59, %v577
    %579 = vmatmul.mubr.f32.gmra.mrb[0].mxu0 %v578
    %v580 = vpop.f32.mrb[0].mxu0
    %v581 = vadd.f32 %v415, %v580
    %v582 = vpop.f32.mrb[0].mxu0
    %583 = vmatprep.mubr.f32.mxu0 0.0
    %v584 = vand.u32 %v62, 4294901760
    %v585 = vsub.f32 %v62, %v584
    %586 = vmatmul.mubr.f32.gmra.mrb[0].mxu0 %v585
    %v587 = vpop.f32.mrb[0].mxu0
    %v588 = vadd.f32 %v421, %v587
    %v589 = vpop.f32.mrb[0].mxu0
    %590 = vmatprep.mubr.f32.mxu0 0.0
    %v591 = vand.u32 %v65, 4294901760
    %v592 = vsub.f32 %v65, %v591
    %593 = vmatmul.mubr.f32.gmra.mrb[0].mxu0 %v592
    %v594 = vpop.f32.mrb[0].mxu0
    %v595 = vadd.f32 %v427, %v594
    %v596 = vpop.f32.mrb[0].mxu0
    %597 = vmatprep.mubr.f32.mxu0 0.0
    %v598 = vand.u32 %v68, 4294901760
    %v599 = vsub.f32 %v68, %v598
    %600 = vmatmul.mubr.f32.gmra.mrb[0].mxu0 %v599
    %v601 = vpop.f32.mrb[0].mxu0
    %v602 = vadd.f32 %v433, %v601
    %v603 = vpop.f32.mrb[0].mxu0
    %604 = vmatprep.mubr.f32.mxu0 0.0
    %v605 = vand.u32 %v71, 4294901760
    %v606 = vsub.f32 %v71, %v605
    %607 = vmatmul.mubr.f32.gmra.mrb[0].mxu0 %v606
    %v608 = vpop.f32.mrb[0].mxu0
    %v609 = vadd.f32 %v439, %v608
    %v610 = vpop.f32.mrb[0].mxu0
    %611 = vmatprep.mubr.f32.mxu0 0.0
    %v612 = vand.u32 %v74, 4294901760
    %v613 = vsub.f32 %v74, %v612
    %614 = vmatmul.mubr.f32.gmra.mrb[0].mxu0 %v613
    %v615 = vpop.f32.mrb[0].mxu0
    %v616 = vadd.f32 %v445, %v615
    %v617 = vpop.f32.mrb[0].mxu0
    %618 = vmatprep.mubr.f32.mxu0 0.0
    %v619 = vand.u32 %v77, 4294901760
    %v620 = vsub.f32 %v77, %v619
    %621 = vmatmul.mubr.f32.gmra.mrb[0].mxu0 %v620
    %v622 = vpop.f32.mrb[0].mxu0
    %v623 = vadd.f32 %v451, %v622
    %v624 = vpop.f32.mrb[0].mxu0
    %625 = vmatprep.mubr.f32.mxu0 0.0
    %v626 = vand.u32 %v80, 4294901760
    %v627 = vsub.f32 %v80, %v626
    %628 = vmatmul.mubr.f32.gmra.mrb[0].mxu0 %v627
    %v629 = vpop.f32.mrb[0].mxu0
    %v630 = vadd.f32 %v457, %v629
    %v631 = vpop.f32.mrb[0].mxu0
    %632 = vmatprep.mubr.f32.mxu0 0.0
    %v633 = vand.u32 %v83, 4294901760
    %v634 = vsub.f32 %v83, %v633
    %635 = vmatmul.mubr.f32.gmra.mrb[0].mxu0 %v634
    %v636 = vpop.f32.mrb[0].mxu0
    %v637 = vadd.f32 %v463, %v636
    %v638 = vpop.f32.mrb[0].mxu0
    %639 = vmatprep.mubr.f32.mxu0 0.0
    %v640 = vand.u32 %v86, 4294901760
    %v641 = vsub.f32 %v86, %v640
    %642 = vmatmul.mubr.f32.gmra.mrb[0].mxu0 %v641
    %v643 = vpop.f32.mrb[0].mxu0
    %v644 = vadd.f32 %v469, %v643
    %v645 = vpop.f32.mrb[0].mxu0
    %646 = vmatprep.mubr.f32.mxu0 0.0
    %v647 = vand.u32 %v89, 4294901760
    %v648 = vsub.f32 %v89, %v647
    %649 = vmatmul.mubr.f32.gmra.mrb[0].mxu0 %v648
    %v650 = vpop.f32.mrb[0].mxu0
    %v651 = vadd.f32 %v475, %v650
    %v652 = vpop.f32.mrb[0].mxu0
    %653 = vmatprep.mubr.f32.mxu0 0.0
    %v654 = vand.u32 %v92, 4294901760
    %v655 = vsub.f32 %v92, %v654
    %656 = vmatmul.mubr.f32.gmra.mrb[0].mxu0 %v655
    %v657 = vpop.f32.mrb[0].mxu0
    %v658 = vadd.f32 %v481, %v657
    %v659 = vpop.f32.mrb[0].mxu0
    %660 = vmatprep.mubr.f32.mxu0 0.0
    %v661 = vand.u32 %v95, 4294901760
    %v662 = vsub.f32 %v95, %v661
    %663 = vmatmul.mubr.f32.gmra.mrb[0].mxu0 %v662
    %v664 = vpop.f32.mrb[0].mxu0
    %v665 = vadd.f32 %v487, %v664
    %v666 = vpop.f32.mrb[0].mxu0
    %667 = vmatprep.mubr.f32.mxu0 0.0
    %v668 = vand.u32 %v98, 4294901760
    %v669 = vsub.f32 %v98, %v668
    %670 = vmatmul.mubr.f32.gmra.mrb[0].mxu0 %v669
    %v671 = vpop.f32.mrb[0].mxu0
    %v672 = vadd.f32 %v493, %v671
    %v673 = vpop.f32.mrb[0].mxu0
    %674 = vdwg.mxu0
    %675 = vmatprep.subr.mxu0 0.0
    %v676 = vand.u32 %v102, 4294901760
    %677 = vmatpush1.msra.mxu0 %v676
    %678 = vmatprep.subr.mxu0 0.0
    %679 = vmatpush1.msra.mxu0 0.0
    %680 = vmatprep.subr.mxu0 0.0
    %681 = vmatpush1.msra.mxu0 0.0
    %682 = vmatprep.subr.mxu0 0.0
    %683 = vmatpush1.msra.mxu0 0.0
    %684 = vmatprep.subr.mxu0 0.0
    %685 = vmatpush1.msra.mxu0 0.0
    %686 = vmatprep.subr.mxu0 0.0
    %687 = vmatpush1.msra.mxu0 0.0
    %688 = vmatprep.subr.mxu0 0.0
    %689 = vmatpush1.msra.mxu0 0.0
    %690 = vmatprep.subr.mxu0 0.0
    %691 = vmatpush1.msra.mxu0 0.0
    %692 = vmatprep.subr.mxu0 0.0
    %693 = vmatpush1.msra.mxu0 0.0
    %694 = vmatprep.subr.mxu0 0.0
    %695 = vmatpush1.msra.mxu0 0.0
    %696 = vmatprep.subr.mxu0 0.0
    %697 = vmatpush1.msra.mxu0 0.0
    %698 = vmatprep.subr.mxu0 0.0
    %699 = vmatpush1.msra.mxu0 0.0
    %700 = vmatprep.subr.mxu0 0.0
    %701 = vmatpush1.msra.mxu0 0.0
    %702 = vmatprep.subr.mxu0 0.0
    %703 = vmatpush1.msra.mxu0 0.0
    %704 = vmatprep.subr.mxu0 0.0
    %705 = vmatpush1.msra.mxu0 0.0
    %706 = vmatprep.subr.mxu0 0.0
    %707 = vmatpush1.msra.mxu0 0.0
    %708 = vmatprep.subr.mxu0 0.0
    %709 = vmatpush1.msra.mxu0 0.0
    %710 = vmatprep.subr.mxu0 0.0
    %711 = vmatpush1.msra.mxu0 0.0
    %712 = vmatprep.subr.mxu0 0.0
    %713 = vmatpush1.msra.mxu0 0.0
    %714 = vmatprep.subr.mxu0 0.0
    %715 = vmatpush1.msra.mxu0 0.0
    %716 = vmatprep.subr.mxu0 0.0
    %717 = vmatpush1.msra.mxu0 0.0
    %718 = vmatprep.subr.mxu0 0.0
    %719 = vmatpush1.msra.mxu0 0.0
    %720 = vmatprep.subr.mxu0 0.0
    %721 = vmatpush1.msra.mxu0 0.0
    %722 = vmatprep.subr.mxu0 0.0
    %723 = vmatpush1.msra.mxu0 0.0
    %724 = vmatprep.subr.mxu0 0.0
    %725 = vmatpush1.msra.mxu0 0.0
    %726 = vmatprep.subr.mxu0 0.0
    %727 = vmatpush1.msra.mxu0 0.0
    %728 = vmatprep.subr.mxu0 0.0
    %729 = vmatpush1.msra.mxu0 0.0
    %730 = vmatprep.subr.mxu0 0.0
    %731 = vmatpush1.msra.mxu0 0.0
    %732 = vmatprep.subr.mxu0 0.0
    %733 = vmatpush1.msra.mxu0 0.0
    %734 = vmatprep.subr.mxu0 0.0
    %735 = vmatpush1.msra.mxu0 0.0
    %736 = vmatprep.subr.mxu0 0.0
    %737 = vmatpush1.msra.mxu0 0.0
    %738 = vmatprep.subr.mxu0 0.0
    %739 = vmatpush1.msra.mxu0 0.0
    %740 = vmatprep.mubr.f32.mxu0 0.0
    %v741 = vand.u32 %v53, 4294901760
    %v742 = vsub.f32 %v53, %v741
    %v743 = vand.u32 %v742, 4294901760
    %744 = vmatmul.mubr.f32.gmra.mrb[0].mxu0 %v743
    %v745 = vpop.f32.mrb[0].mxu0
    %v746 = vadd.f32 %v567, %v745
    %v747 = vpop.f32.mrb[0].mxu0
    %748 = vmatprep.mubr.f32.mxu0 0.0
    %v749 = vand.u32 %v56, 4294901760
    %v750 = vsub.f32 %v56, %v749
    %v751 = vand.u32 %v750, 4294901760
    %752 = vmatmul.mubr.f32.gmra.mrb[0].mxu0 %v751
    %v753 = vpop.f32.mrb[0].mxu0
    %v754 = vadd.f32 %v574, %v753
    %v755 = vpop.f32.mrb[0].mxu0
    %756 = vmatprep.mubr.f32.mxu0 0.0
    %v757 = vand.u32 %v59, 4294901760
    %v758 = vsub.f32 %v59, %v757
    %v759 = vand.u32 %v758, 4294901760
    %760 = vmatmul.mubr.f32.gmra.mrb[0].mxu0 %v759
    %v761 = vpop.f32.mrb[0].mxu0
    %v762 = vadd.f32 %v581, %v761
    %v763 = vpop.f32.mrb[0].mxu0
    %764 = vmatprep.mubr.f32.mxu0 0.0
    %v765 = vand.u32 %v62, 4294901760
    %v766 = vsub.f32 %v62, %v765
    %v767 = vand.u32 %v766, 4294901760
    %768 = vmatmul.mubr.f32.gmra.mrb[0].mxu0 %v767
    %v769 = vpop.f32.mrb[0].mxu0
    %v770 = vadd.f32 %v588, %v769
    %v771 = vpop.f32.mrb[0].mxu0
    %772 = vmatprep.mubr.f32.mxu0 0.0
    %v773 = vand.u32 %v65, 4294901760
    %v774 = vsub.f32 %v65, %v773
    %v775 = vand.u32 %v774, 4294901760
    %776 = vmatmul.mubr.f32.gmra.mrb[0].mxu0 %v775
    %v777 = vpop.f32.mrb[0].mxu0
    %v778 = vadd.f32 %v595, %v777
    %v779 = vpop.f32.mrb[0].mxu0
    %780 = vmatprep.mubr.f32.mxu0 0.0
    %v781 = vand.u32 %v68, 4294901760
    %v782 = vsub.f32 %v68, %v781
    %v783 = vand.u32 %v782, 4294901760
    %784 = vmatmul.mubr.f32.gmra.mrb[0].mxu0 %v783
    %v785 = vpop.f32.mrb[0].mxu0
    %v786 = vadd.f32 %v602, %v785
    %v787 = vpop.f32.mrb[0].mxu0
    %788 = vmatprep.mubr.f32.mxu0 0.0
    %v789 = vand.u32 %v71, 4294901760
    %v790 = vsub.f32 %v71, %v789
    %v791 = vand.u32 %v790, 4294901760
    %792 = vmatmul.mubr.f32.gmra.mrb[0].mxu0 %v791
    %v793 = vpop.f32.mrb[0].mxu0
    %v794 = vadd.f32 %v609, %v793
    %v795 = vpop.f32.mrb[0].mxu0
    %796 = vmatprep.mubr.f32.mxu0 0.0
    %v797 = vand.u32 %v74, 4294901760
    %v798 = vsub.f32 %v74, %v797
    %v799 = vand.u32 %v798, 4294901760
    %800 = vmatmul.mubr.f32.gmra.mrb[0].mxu0 %v799
    %v801 = vpop.f32.mrb[0].mxu0
    %v802 = vadd.f32 %v616, %v801
    %v803 = vpop.f32.mrb[0].mxu0
    %804 = vmatprep.mubr.f32.mxu0 0.0
    %v805 = vand.u32 %v77, 4294901760
    %v806 = vsub.f32 %v77, %v805
    %v807 = vand.u32 %v806, 4294901760
    %808 = vmatmul.mubr.f32.gmra.mrb[0].mxu0 %v807
    %v809 = vpop.f32.mrb[0].mxu0
    %v810 = vadd.f32 %v623, %v809
    %v811 = vpop.f32.mrb[0].mxu0
    %812 = vmatprep.mubr.f32.mxu0 0.0
    %v813 = vand.u32 %v80, 4294901760
    %v814 = vsub.f32 %v80, %v813
    %v815 = vand.u32 %v814, 4294901760
    %816 = vmatmul.mubr.f32.gmra.mrb[0].mxu0 %v815
    %v817 = vpop.f32.mrb[0].mxu0
    %v818 = vadd.f32 %v630, %v817
    %v819 = vpop.f32.mrb[0].mxu0
    %820 = vmatprep.mubr.f32.mxu0 0.0
    %v821 = vand.u32 %v83, 4294901760
    %v822 = vsub.f32 %v83, %v821
    %v823 = vand.u32 %v822, 4294901760
    %824 = vmatmul.mubr.f32.gmra.mrb[0].mxu0 %v823
    %v825 = vpop.f32.mrb[0].mxu0
    %v826 = vadd.f32 %v637, %v825
    %v827 = vpop.f32.mrb[0].mxu0
    %828 = vmatprep.mubr.f32.mxu0 0.0
    %v829 = vand.u32 %v86, 4294901760
    %v830 = vsub.f32 %v86, %v829
    %v831 = vand.u32 %v830, 4294901760
    %832 = vmatmul.mubr.f32.gmra.mrb[0].mxu0 %v831
    %v833 = vpop.f32.mrb[0].mxu0
    %v834 = vadd.f32 %v644, %v833
    %v835 = vpop.f32.mrb[0].mxu0
    %836 = vmatprep.mubr.f32.mxu0 0.0
    %v837 = vand.u32 %v89, 4294901760
    %v838 = vsub.f32 %v89, %v837
    %v839 = vand.u32 %v838, 4294901760
    %840 = vmatmul.mubr.f32.gmra.mrb[0].mxu0 %v839
    %v841 = vpop.f32.mrb[0].mxu0
    %v842 = vadd.f32 %v651, %v841
    %v843 = vpop.f32.mrb[0].mxu0
    %844 = vmatprep.mubr.f32.mxu0 0.0
    %v845 = vand.u32 %v92, 4294901760
    %v846 = vsub.f32 %v92, %v845
    %v847 = vand.u32 %v846, 4294901760
    %848 = vmatmul.mubr.f32.gmra.mrb[0].mxu0 %v847
    %v849 = vpop.f32.mrb[0].mxu0
    %v850 = vadd.f32 %v658, %v849
    %v851 = vpop.f32.mrb[0].mxu0
    %852 = vmatprep.mubr.f32.mxu0 0.0
    %v853 = vand.u32 %v95, 4294901760
    %v854 = vsub.f32 %v95, %v853
    %v855 = vand.u32 %v854, 4294901760
    %856 = vmatmul.mubr.f32.gmra.mrb[0].mxu0 %v855
    %v857 = vpop.f32.mrb[0].mxu0
    %v858 = vadd.f32 %v665, %v857
    %v859 = vpop.f32.mrb[0].mxu0
    %860 = vmatprep.mubr.f32.mxu0 0.0
    %v861 = vand.u32 %v98, 4294901760
    %v862 = vsub.f32 %v98, %v861
    %v863 = vand.u32 %v862, 4294901760
    %864 = vmatmul.mubr.f32.gmra.mrb[0].mxu0 %v863
    %v865 = vpop.f32.mrb[0].mxu0
    %v866 = vadd.f32 %v672, %v865
    %v867 = vpop.f32.mrb[0].mxu0
    %868 = vdwg.mxu0
    %869 = vmatprep.subr.mxu0 0.0
    %v870 = vand.u32 %v102, 4294901760
    %v871 = vsub.f32 %v102, %v870
    %v872 = vand.u32 %v871, 4294901760
    %873 = vmatpush1.msra.mxu0 %v872
    %874 = vmatprep.subr.mxu0 0.0
    %875 = vmatpush1.msra.mxu0 0.0
    %876 = vmatprep.subr.mxu0 0.0
    %877 = vmatpush1.msra.mxu0 0.0
    %878 = vmatprep.subr.mxu0 0.0
    %879 = vmatpush1.msra.mxu0 0.0
    %880 = vmatprep.subr.mxu0 0.0
    %881 = vmatpush1.msra.mxu0 0.0
    %882 = vmatprep.subr.mxu0 0.0
    %883 = vmatpush1.msra.mxu0 0.0
    %884 = vmatprep.subr.mxu0 0.0
    %885 = vmatpush1.msra.mxu0 0.0
    %886 = vmatprep.subr.mxu0 0.0
    %887 = vmatpush1.msra.mxu0 0.0
    %888 = vmatprep.subr.mxu0 0.0
    %889 = vmatpush1.msra.mxu0 0.0
    %890 = vmatprep.subr.mxu0 0.0
    %891 = vmatpush1.msra.mxu0 0.0
    %892 = vmatprep.subr.mxu0 0.0
    %893 = vmatpush1.msra.mxu0 0.0
    %894 = vmatprep.subr.mxu0 0.0
    %895 = vmatpush1.msra.mxu0 0.0
    %896 = vmatprep.subr.mxu0 0.0
    %897 = vmatpush1.msra.mxu0 0.0
    %898 = vmatprep.subr.mxu0 0.0
    %899 = vmatpush1.msra.mxu0 0.0
    %900 = vmatprep.subr.mxu0 0.0
    %901 = vmatpush1.msra.mxu0 0.0
    %902 = vmatprep.subr.mxu0 0.0
    %903 = vmatpush1.msra.mxu0 0.0
    %904 = vmatprep.subr.mxu0 0.0
    %905 = vmatpush1.msra.mxu0 0.0
    %906 = vmatprep.subr.mxu0 0.0
    %907 = vmatpush1.msra.mxu0 0.0
    %908 = vmatprep.subr.mxu0 0.0
    %909 = vmatpush1.msra.mxu0 0.0
    %910 = vmatprep.subr.mxu0 0.0
    %911 = vmatpush1.msra.mxu0 0.0
    %912 = vmatprep.subr.mxu0 0.0
    %913 = vmatpush1.msra.mxu0 0.0
    %914 = vmatprep.subr.mxu0 0.0
    %915 = vmatpush1.msra.mxu0 0.0
    %916 = vmatprep.subr.mxu0 0.0
    %917 = vmatpush1.msra.mxu0 0.0
    %918 = vmatprep.subr.mxu0 0.0
    %919 = vmatpush1.msra.mxu0 0.0
    %920 = vmatprep.subr.mxu0 0.0
    %921 = vmatpush1.msra.mxu0 0.0
    %922 = vmatprep.subr.mxu0 0.0
    %923 = vmatpush1.msra.mxu0 0.0
    %924 = vmatprep.subr.mxu0 0.0
    %925 = vmatpush1.msra.mxu0 0.0
    %926 = vmatprep.subr.mxu0 0.0
    %927 = vmatpush1.msra.mxu0 0.0
    %928 = vmatprep.subr.mxu0 0.0
    %929 = vmatpush1.msra.mxu0 0.0
    %930 = vmatprep.subr.mxu0 0.0
    %931 = vmatpush1.msra.mxu0 0.0
    %932 = vmatprep.subr.mxu0 0.0
    %933 = vmatpush1.msra.mxu0 0.0
    %934 = vmatprep.subr.mxu0 0.0
    %935 = vmatpush1.msra.mxu0 0.0
    %936 = vmatprep.mubr.f32.mxu0 0.0
    %v937 = vand.u32 %v53, 4294901760
    %938 = vmatmul.mubr.f32.gmra.mrb[0].mxu0 %v937
    %v939 = vpop.f32.mrb[0].mxu0
    %v940 = vadd.f32 %v746, %v939
    %v941 = vpop.f32.mrb[0].mxu0
    %942 = vmatprep.mubr.f32.mxu0 0.0
    %v943 = vand.u32 %v56, 4294901760
    %944 = vmatmul.mubr.f32.gmra.mrb[0].mxu0 %v943
    %v945 = vpop.f32.mrb[0].mxu0
    %v946 = vadd.f32 %v754, %v945
    %v947 = vpop.f32.mrb[0].mxu0
    %948 = vmatprep.mubr.f32.mxu0 0.0
    %v949 = vand.u32 %v59, 4294901760
    %950 = vmatmul.mubr.f32.gmra.mrb[0].mxu0 %v949
    %v951 = vpop.f32.mrb[0].mxu0
    %v952 = vadd.f32 %v762, %v951
    %v953 = vpop.f32.mrb[0].mxu0
    %954 = vmatprep.mubr.f32.mxu0 0.0
    %v955 = vand.u32 %v62, 4294901760
    %956 = vmatmul.mubr.f32.gmra.mrb[0].mxu0 %v955
    %v957 = vpop.f32.mrb[0].mxu0
    %v958 = vadd.f32 %v770, %v957
    %v959 = vpop.f32.mrb[0].mxu0
    %960 = vmatprep.mubr.f32.mxu0 0.0
    %v961 = vand.u32 %v65, 4294901760
    %962 = vmatmul.mubr.f32.gmra.mrb[0].mxu0 %v961
    %v963 = vpop.f32.mrb[0].mxu0
    %v964 = vadd.f32 %v778, %v963
    %v965 = vpop.f32.mrb[0].mxu0
    %966 = vmatprep.mubr.f32.mxu0 0.0
    %v967 = vand.u32 %v68, 4294901760
    %968 = vmatmul.mubr.f32.gmra.mrb[0].mxu0 %v967
    %v969 = vpop.f32.mrb[0].mxu0
    %v970 = vadd.f32 %v786, %v969
    %v971 = vpop.f32.mrb[0].mxu0
    %972 = vmatprep.mubr.f32.mxu0 0.0
    %v973 = vand.u32 %v71, 4294901760
    %974 = vmatmul.mubr.f32.gmra.mrb[0].mxu0 %v973
    %v975 = vpop.f32.mrb[0].mxu0
    %v976 = vadd.f32 %v794, %v975
    %v977 = vpop.f32.mrb[0].mxu0
    %978 = vmatprep.mubr.f32.mxu0 0.0
    %v979 = vand.u32 %v74, 4294901760
    %980 = vmatmul.mubr.f32.gmra.mrb[0].mxu0 %v979
    %v981 = vpop.f32.mrb[0].mxu0
    %v982 = vadd.f32 %v802, %v981
    %v983 = vpop.f32.mrb[0].mxu0
    %984 = vmatprep.mubr.f32.mxu0 0.0
    %v985 = vand.u32 %v77, 4294901760
    %986 = vmatmul.mubr.f32.gmra.mrb[0].mxu0 %v985
    %v987 = vpop.f32.mrb[0].mxu0
    %v988 = vadd.f32 %v810, %v987
    %v989 = vpop.f32.mrb[0].mxu0
    %990 = vmatprep.mubr.f32.mxu0 0.0
    %v991 = vand.u32 %v80, 4294901760
    %992 = vmatmul.mubr.f32.gmra.mrb[0].mxu0 %v991
    %v993 = vpop.f32.mrb[0].mxu0
    %v994 = vadd.f32 %v818, %v993
    %v995 = vpop.f32.mrb[0].mxu0
    %996 = vmatprep.mubr.f32.mxu0 0.0
    %v997 = vand.u32 %v83, 4294901760
    %998 = vmatmul.mubr.f32.gmra.mrb[0].mxu0 %v997
    %v999 = vpop.f32.mrb[0].mxu0
    %v1000 = vadd.f32 %v826, %v999
    %v1001 = vpop.f32.mrb[0].mxu0
    %1002 = vmatprep.mubr.f32.mxu0 0.0
    %v1003 = vand.u32 %v86, 4294901760
    %1004 = vmatmul.mubr.f32.gmra.mrb[0].mxu0 %v1003
    %v1005 = vpop.f32.mrb[0].mxu0
    %v1006 = vadd.f32 %v834, %v1005
    %v1007 = vpop.f32.mrb[0].mxu0
    %1008 = vmatprep.mubr.f32.mxu0 0.0
    %v1009 = vand.u32 %v89, 4294901760
    %1010 = vmatmul.mubr.f32.gmra.mrb[0].mxu0 %v1009
    %v1011 = vpop.f32.mrb[0].mxu0
    %v1012 = vadd.f32 %v842, %v1011
    %v1013 = vpop.f32.mrb[0].mxu0
    %1014 = vmatprep.mubr.f32.mxu0 0.0
    %v1015 = vand.u32 %v92, 4294901760
    %1016 = vmatmul.mubr.f32.gmra.mrb[0].mxu0 %v1015
    %v1017 = vpop.f32.mrb[0].mxu0
    %v1018 = vadd.f32 %v850, %v1017
    %v1019 = vpop.f32.mrb[0].mxu0
    %1020 = vmatprep.mubr.f32.mxu0 0.0
    %v1021 = vand.u32 %v95, 4294901760
    %1022 = vmatmul.mubr.f32.gmra.mrb[0].mxu0 %v1021
    %v1023 = vpop.f32.mrb[0].mxu0
    %v1024 = vadd.f32 %v858, %v1023
    %v1025 = vpop.f32.mrb[0].mxu0
    %1026 = vmatprep.mubr.f32.mxu0 0.0
    %v1027 = vand.u32 %v98, 4294901760
    %1028 = vmatmul.mubr.f32.gmra.mrb[0].mxu0 %v1027
    %v1029 = vpop.f32.mrb[0].mxu0
    %v1030 = vadd.f32 %v866, %v1029
    %v1031 = vpop.f32.mrb[0].mxu0
    %1032 = vdwg.mxu0
    %1033 = vmatprep.subr.mxu0 0.0
    %v1034 = vand.u32 %v102, 4294901760
    %1035 = vmatpush1.msra.mxu0 %v1034
    %1036 = vmatprep.subr.mxu0 0.0
    %1037 = vmatpush1.msra.mxu0 0.0
    %1038 = vmatprep.subr.mxu0 0.0
    %1039 = vmatpush1.msra.mxu0 0.0
    %1040 = vmatprep.subr.mxu0 0.0
    %1041 = vmatpush1.msra.mxu0 0.0
    %1042 = vmatprep.subr.mxu0 0.0
    %1043 = vmatpush1.msra.mxu0 0.0
    %1044 = vmatprep.subr.mxu0 0.0
    %1045 = vmatpush1.msra.mxu0 0.0
    %1046 = vmatprep.subr.mxu0 0.0
    %1047 = vmatpush1.msra.mxu0 0.0
    %1048 = vmatprep.subr.mxu0 0.0
    %1049 = vmatpush1.msra.mxu0 0.0
    %1050 = vmatprep.subr.mxu0 0.0
    %1051 = vmatpush1.msra.mxu0 0.0
    %1052 = vmatprep.subr.mxu0 0.0
    %1053 = vmatpush1.msra.mxu0 0.0
    %1054 = vmatprep.subr.mxu0 0.0
    %1055 = vmatpush1.msra.mxu0 0.0
    %1056 = vmatprep.subr.mxu0 0.0
    %1057 = vmatpush1.msra.mxu0 0.0
    %1058 = vmatprep.subr.mxu0 0.0
    %1059 = vmatpush1.msra.mxu0 0.0
    %1060 = vmatprep.subr.mxu0 0.0
    %1061 = vmatpush1.msra.mxu0 0.0
    %1062 = vmatprep.subr.mxu0 0.0
    %1063 = vmatpush1.msra.mxu0 0.0
    %1064 = vmatprep.subr.mxu0 0.0
    %1065 = vmatpush1.msra.mxu0 0.0
    %1066 = vmatprep.subr.mxu0 0.0
    %1067 = vmatpush1.msra.mxu0 0.0
    %1068 = vmatprep.subr.mxu0 0.0
    %1069 = vmatpush1.msra.mxu0 0.0
    %1070 = vmatprep.subr.mxu0 0.0
    %1071 = vmatpush1.msra.mxu0 0.0
    %1072 = vmatprep.subr.mxu0 0.0
    %1073 = vmatpush1.msra.mxu0 0.0
    %1074 = vmatprep.subr.mxu0 0.0
    %1075 = vmatpush1.msra.mxu0 0.0
    %1076 = vmatprep.subr.mxu0 0.0
    %1077 = vmatpush1.msra.mxu0 0.0
    %1078 = vmatprep.subr.mxu0 0.0
    %1079 = vmatpush1.msra.mxu0 0.0
    %1080 = vmatprep.subr.mxu0 0.0
    %1081 = vmatpush1.msra.mxu0 0.0
    %1082 = vmatprep.subr.mxu0 0.0
    %1083 = vmatpush1.msra.mxu0 0.0
    %1084 = vmatprep.subr.mxu0 0.0
    %1085 = vmatpush1.msra.mxu0 0.0
    %1086 = vmatprep.subr.mxu0 0.0
    %1087 = vmatpush1.msra.mxu0 0.0
    %1088 = vmatprep.subr.mxu0 0.0
    %1089 = vmatpush1.msra.mxu0 0.0
    %1090 = vmatprep.subr.mxu0 0.0
    %1091 = vmatpush1.msra.mxu0 0.0
    %1092 = vmatprep.subr.mxu0 0.0
    %1093 = vmatpush1.msra.mxu0 0.0
    %1094 = vmatprep.subr.mxu0 0.0
    %1095 = vmatpush1.msra.mxu0 0.0
    %1096 = vmatprep.subr.mxu0 0.0
    %1097 = vmatpush1.msra.mxu0 0.0
    %1098 = vmatprep.mubr.f32.mxu0 0.0
    %v1099 = vand.u32 %v53, 4294901760
    %1100 = vmatmul.mubr.f32.gmra.mrb[0].mxu0 %v1099
    %v1101 = vpop.f32.mrb[0].mxu0
    %v1102 = vadd.f32 %v940, %v1101
    %v1103 = vpop.f32.mrb[0].mxu0
    %1104 = vmatprep.mubr.f32.mxu0 0.0
    %v1105 = vand.u32 %v56, 4294901760
    %1106 = vmatmul.mubr.f32.gmra.mrb[0].mxu0 %v1105
    %v1107 = vpop.f32.mrb[0].mxu0
    %v1108 = vadd.f32 %v946, %v1107
    %v1109 = vpop.f32.mrb[0].mxu0
    %1110 = vmatprep.mubr.f32.mxu0 0.0
    %v1111 = vand.u32 %v59, 4294901760
    %1112 = vmatmul.mubr.f32.gmra.mrb[0].mxu0 %v1111
    %v1113 = vpop.f32.mrb[0].mxu0
    %v1114 = vadd.f32 %v952, %v1113
    %v1115 = vpop.f32.mrb[0].mxu0
    %1116 = vmatprep.mubr.f32.mxu0 0.0
    %v1117 = vand.u32 %v62, 4294901760
    %1118 = vmatmul.mubr.f32.gmra.mrb[0].mxu0 %v1117
    %v1119 = vpop.f32.mrb[0].mxu0
    %v1120 = vadd.f32 %v958, %v1119
    %v1121 = vpop.f32.mrb[0].mxu0
    %1122 = vmatprep.mubr.f32.mxu0 0.0
    %v1123 = vand.u32 %v65, 4294901760
    %1124 = vmatmul.mubr.f32.gmra.mrb[0].mxu0 %v1123
    %v1125 = vpop.f32.mrb[0].mxu0
    %v1126 = vadd.f32 %v964, %v1125
    %v1127 = vpop.f32.mrb[0].mxu0
    %1128 = vmatprep.mubr.f32.mxu0 0.0
    %v1129 = vand.u32 %v68, 4294901760
    %1130 = vmatmul.mubr.f32.gmra.mrb[0].mxu0 %v1129
    %v1131 = vpop.f32.mrb[0].mxu0
    %v1132 = vadd.f32 %v970, %v1131
    %v1133 = vpop.f32.mrb[0].mxu0
    %1134 = vmatprep.mubr.f32.mxu0 0.0
    %v1135 = vand.u32 %v71, 4294901760
    %1136 = vmatmul.mubr.f32.gmra.mrb[0].mxu0 %v1135
    %v1137 = vpop.f32.mrb[0].mxu0
    %v1138 = vadd.f32 %v976, %v1137
    %v1139 = vpop.f32.mrb[0].mxu0
    %1140 = vmatprep.mubr.f32.mxu0 0.0
    %v1141 = vand.u32 %v74, 4294901760
    %1142 = vmatmul.mubr.f32.gmra.mrb[0].mxu0 %v1141
    %v1143 = vpop.f32.mrb[0].mxu0
    %v1144 = vadd.f32 %v982, %v1143
    %v1145 = vpop.f32.mrb[0].mxu0
    %1146 = vmatprep.mubr.f32.mxu0 0.0
    %v1147 = vand.u32 %v77, 4294901760
    %1148 = vmatmul.mubr.f32.gmra.mrb[0].mxu0 %v1147
    %v1149 = vpop.f32.mrb[0].mxu0
    %v1150 = vadd.f32 %v988, %v1149
    %v1151 = vpop.f32.mrb[0].mxu0
    %1152 = vmatprep.mubr.f32.mxu0 0.0
    %v1153 = vand.u32 %v80, 4294901760
    %1154 = vmatmul.mubr.f32.gmra.mrb[0].mxu0 %v1153
    %v1155 = vpop.f32.mrb[0].mxu0
    %v1156 = vadd.f32 %v994, %v1155
    %v1157 = vpop.f32.mrb[0].mxu0
    %1158 = vmatprep.mubr.f32.mxu0 0.0
    %v1159 = vand.u32 %v83, 4294901760
    %1160 = vmatmul.mubr.f32.gmra.mrb[0].mxu0 %v1159
    %v1161 = vpop.f32.mrb[0].mxu0
    %v1162 = vadd.f32 %v1000, %v1161
    %v1163 = vpop.f32.mrb[0].mxu0
    %1164 = vmatprep.mubr.f32.mxu0 0.0
    %v1165 = vand.u32 %v86, 4294901760
    %1166 = vmatmul.mubr.f32.gmra.mrb[0].mxu0 %v1165
    %v1167 = vpop.f32.mrb[0].mxu0
    %v1168 = vadd.f32 %v1006, %v1167
    %v1169 = vpop.f32.mrb[0].mxu0
    %1170 = vmatprep.mubr.f32.mxu0 0.0
    %v1171 = vand.u32 %v89, 4294901760
    %1172 = vmatmul.mubr.f32.gmra.mrb[0].mxu0 %v1171
    %v1173 = vpop.f32.mrb[0].mxu0
    %v1174 = vadd.f32 %v1012, %v1173
    %v1175 = vpop.f32.mrb[0].mxu0
    %1176 = vmatprep.mubr.f32.mxu0 0.0
    %v1177 = vand.u32 %v92, 4294901760
    %1178 = vmatmul.mubr.f32.gmra.mrb[0].mxu0 %v1177
    %v1179 = vpop.f32.mrb[0].mxu0
    %v1180 = vadd.f32 %v1018, %v1179
    %v1181 = vpop.f32.mrb[0].mxu0
    %1182 = vmatprep.mubr.f32.mxu0 0.0
    %v1183 = vand.u32 %v95, 4294901760
    %1184 = vmatmul.mubr.f32.gmra.mrb[0].mxu0 %v1183
    %v1185 = vpop.f32.mrb[0].mxu0
    %v1186 = vadd.f32 %v1024, %v1185
    %v1187 = vpop.f32.mrb[0].mxu0
    %1188 = vmatprep.mubr.f32.mxu0 0.0
    %v1189 = vand.u32 %v98, 4294901760
    %1190 = vmatmul.mubr.f32.gmra.mrb[0].mxu0 %v1189
    %v1191 = vpop.f32.mrb[0].mxu0
    %v1192 = vadd.f32 %v1030, %v1191
    %v1193 = vpop.f32.mrb[0].mxu0
    %1194 = vdwg.mxu0
    %v1195 = vtanh.pop %v1102
    %v1196 = vtanh.pop %v1108
    %v1197 = vtanh.pop %v1114
    %v1198 = vtanh.pop %v1120
    %v1199 = vtanh.pop %v1126
    %v1200 = vtanh.pop %v1132
    %v1201 = vtanh.pop %v1138
    %v1202 = vtanh.pop %v1144
    %v1203 = vtanh.pop %v1150
    %v1204 = vtanh.pop %v1156
    %v1205 = vtanh.pop %v1162
    %v1206 = vtanh.pop %v1168
    %v1207 = vtanh.pop %v1174
    %v1208 = vtanh.pop %v1180
    %v1209 = vtanh.pop %v1186
    %v1210 = vtanh.pop %v1192
    %v1211 = vld [vmem:[%s3] sm:$0xff]
    %v1212 = vld [vmem:[%s3 + $0x8] sm:$0xff]
    %v1213 = vld [vmem:[%s3 + $0x10] sm:$0xff]
    %v1214 = vld [vmem:[%s3 + $0x18] sm:$0xff]
    %v1215 = vld [vmem:[%s3 + $0x20] sm:$0xff]
    %v1216 = vld [vmem:[%s3 + $0x28] sm:$0xff]
    %v1217 = vld [vmem:[%s3 + $0x30] sm:$0xff]
    %v1218 = vld [vmem:[%s3 + $0x38] sm:$0xf]
    %v1219 = vld [vmem:[%s4] sm:$0x1]
    %v1221 = vlaneseq
    %v1222 = vshrl.u32 %v1221, 7
    %v1223 = vsub.s32 0, %v1222
    %v1224 = vrot.slane %v1219, %v1223
    %vm1226 = vcmask 490496
    %v1228 = vsel %vm1226, %v1195, 0
    %v1231 = vsel %vm1226, %v1196, 0
    %v1234 = vsel %vm1226, %v1197, 0
    %v1237 = vsel %vm1226, %v1198, 0
    %v1240 = vsel %vm1226, %v1199, 0
    %v1243 = vsel %vm1226, %v1200, 0
    %v1246 = vsel %vm1226, %v1201, 0
    %v1249 = vsel %vm1226, %v1202, 0
    %v1252 = vsel %vm1226, %v1203, 0
    %v1255 = vsel %vm1226, %v1204, 0
    %v1258 = vsel %vm1226, %v1205, 0
    %v1261 = vsel %vm1226, %v1206, 0
    %v1264 = vsel %vm1226, %v1207, 0
    %v1267 = vsel %vm1226, %v1208, 0
    %v1270 = vsel %vm1226, %v1209, 0
    %v1273 = vsel %vm1226, %v1210, 0
    %v1276 = vsel %vm100, %v1218, 0
    %1278 = vmatprep.subr.mxu0 0.0
    %v1279 = vand.u32 %v1211, 4294901760
    %1280 = vmatpush1.msra.mxu0 %v1279
    %1281 = vmatprep.subr.mxu0 0.0
    %v1282 = vand.u32 %v1212, 4294901760
    %1283 = vmatpush1.msra.mxu0 %v1282
    %1284 = vmatprep.subr.mxu0 0.0
    %v1285 = vand.u32 %v1213, 4294901760
    %1286 = vmatpush1.msra.mxu0 %v1285
    %1287 = vmatprep.subr.mxu0 0.0
    %v1288 = vand.u32 %v1214, 4294901760
    %1289 = vmatpush1.msra.mxu0 %v1288
    %1290 = vmatprep.subr.mxu0 0.0
    %v1291 = vand.u32 %v1215, 4294901760
    %1292 = vmatpush1.msra.mxu0 %v1291
    %1293 = vmatprep.subr.mxu0 0.0
    %v1294 = vand.u32 %v1216, 4294901760
    %1295 = vmatpush1.msra.mxu0 %v1294
    %1296 = vmatprep.subr.mxu0 0.0
    %v1297 = vand.u32 %v1217, 4294901760
    %1298 = vmatpush1.msra.mxu0 %v1297
    %1299 = vmatprep.subr.mxu0 0.0
    %v1300 = vand.u32 %v1276, 4294901760
    %1301 = vmatpush1.msra.mxu0 %v1300
    %1302 = vmatprep.subr.mxu0 0.0
    %1303 = vmatpush1.msra.mxu0 0.0
    %1304 = vmatprep.subr.mxu0 0.0
    %1305 = vmatpush1.msra.mxu0 0.0
    %1306 = vmatprep.subr.mxu0 0.0
    %1307 = vmatpush1.msra.mxu0 0.0
    %1308 = vmatprep.subr.mxu0 0.0
    %1309 = vmatpush1.msra.mxu0 0.0
    %1310 = vmatprep.subr.mxu0 0.0
    %1311 = vmatpush1.msra.mxu0 0.0
    %1312 = vmatprep.subr.mxu0 0.0
    %1313 = vmatpush1.msra.mxu0 0.0
    %1314 = vmatprep.subr.mxu0 0.0
    %1315 = vmatpush1.msra.mxu0 0.0
    %1316 = vmatprep.subr.mxu0 0.0
    %1317 = vmatpush1.msra.mxu0 0.0
    %1318 = vmatprep.subr.mxu0 0.0
    %1319 = vmatpush1.msra.mxu0 0.0
    %1320 = vmatprep.subr.mxu0 0.0
    %1321 = vmatpush1.msra.mxu0 0.0
    %1322 = vmatprep.subr.mxu0 0.0
    %1323 = vmatpush1.msra.mxu0 0.0
    %1324 = vmatprep.subr.mxu0 0.0
    %1325 = vmatpush1.msra.mxu0 0.0
    %1326 = vmatprep.subr.mxu0 0.0
    %1327 = vmatpush1.msra.mxu0 0.0
    %1328 = vmatprep.subr.mxu0 0.0
    %1329 = vmatpush1.msra.mxu0 0.0
    %1330 = vmatprep.subr.mxu0 0.0
    %1331 = vmatpush1.msra.mxu0 0.0
    %1332 = vmatprep.subr.mxu0 0.0
    %1333 = vmatpush1.msra.mxu0 0.0
    %1334 = vmatprep.subr.mxu0 0.0
    %1335 = vmatpush1.msra.mxu0 0.0
    %1336 = vmatprep.subr.mxu0 0.0
    %1337 = vmatpush1.msra.mxu0 0.0
    %1338 = vmatprep.subr.mxu0 0.0
    %1339 = vmatpush1.msra.mxu0 0.0
    %1340 = vmatprep.subr.mxu0 0.0
    %1341 = vmatpush1.msra.mxu0 0.0
    %1342 = vmatprep.subr.mxu0 0.0
    %1343 = vmatpush1.msra.mxu0 0.0
    %1344 = vmatprep.subr.mxu0 0.0
    %1345 = vmatpush1.msra.mxu0 0.0
    %1346 = vmatprep.subr.mxu0 0.0
    %1347 = vmatpush1.msra.mxu0 0.0
    %1348 = vmatprep.subr.mxu0 0.0
    %1349 = vmatpush1.msra.mxu0 0.0
    %1350 = vmatprep.mubr.f32.mxu0 0.0
    %v1351 = vand.u32 %v1228, 4294901760
    %v1352 = vsub.f32 %v1228, %v1351
    %v1353 = vand.u32 %v1352, 4294901760
    %v1354 = vsub.f32 %v1352, %v1353
    %v1355 = vand.u32 %v1354, 4294901760
    %1356 = vmatmul.mubr.f32.gmra.mrb[0].mxu0 %v1355
    %v1357 = vpop.f32.mrb[0].mxu0
    %v1358 = vadd.f32 %v1224, %v1357
    %v1359 = vpop.f32.mrb[0].mxu0
    %1360 = vmatprep.mubr.f32.mxu0 0.0
    %v1361 = vand.u32 %v1231, 4294901760
    %v1362 = vsub.f32 %v1231, %v1361
    %v1363 = vand.u32 %v1362, 4294901760
    %v1364 = vsub.f32 %v1362, %v1363
    %v1365 = vand.u32 %v1364, 4294901760
    %1366 = vmatmul.mubr.f32.gmra.mrb[0].mxu0 %v1365
    %v1367 = vpop.f32.mrb[0].mxu0
    %v1368 = vadd.f32 %v1224, %v1367
    %v1369 = vpop.f32.mrb[0].mxu0
    %1370 = vmatprep.mubr.f32.mxu0 0.0
    %v1371 = vand.u32 %v1234, 4294901760
    %v1372 = vsub.f32 %v1234, %v1371
    %v1373 = vand.u32 %v1372, 4294901760
    %v1374 = vsub.f32 %v1372, %v1373
    %v1375 = vand.u32 %v1374, 4294901760
    %1376 = vmatmul.mubr.f32.gmra.mrb[0].mxu0 %v1375
    %v1377 = vpop.f32.mrb[0].mxu0
    %v1378 = vadd.f32 %v1224, %v1377
    %v1379 = vpop.f32.mrb[0].mxu0
    %1380 = vmatprep.mubr.f32.mxu0 0.0
    %v1381 = vand.u32 %v1237, 4294901760
    %v1382 = vsub.f32 %v1237, %v1381
    %v1383 = vand.u32 %v1382, 4294901760
    %v1384 = vsub.f32 %v1382, %v1383
    %v1385 = vand.u32 %v1384, 4294901760
    %1386 = vmatmul.mubr.f32.gmra.mrb[0].mxu0 %v1385
    %v1387 = vpop.f32.mrb[0].mxu0
    %v1388 = vadd.f32 %v1224, %v1387
    %v1389 = vpop.f32.mrb[0].mxu0
    %1390 = vmatprep.mubr.f32.mxu0 0.0
    %v1391 = vand.u32 %v1240, 4294901760
    %v1392 = vsub.f32 %v1240, %v1391
    %v1393 = vand.u32 %v1392, 4294901760
    %v1394 = vsub.f32 %v1392, %v1393
    %v1395 = vand.u32 %v1394, 4294901760
    %1396 = vmatmul.mubr.f32.gmra.mrb[0].mxu0 %v1395
    %v1397 = vpop.f32.mrb[0].mxu0
    %v1398 = vadd.f32 %v1224, %v1397
    %v1399 = vpop.f32.mrb[0].mxu0
    %1400 = vmatprep.mubr.f32.mxu0 0.0
    %v1401 = vand.u32 %v1243, 4294901760
    %v1402 = vsub.f32 %v1243, %v1401
    %v1403 = vand.u32 %v1402, 4294901760
    %v1404 = vsub.f32 %v1402, %v1403
    %v1405 = vand.u32 %v1404, 4294901760
    %1406 = vmatmul.mubr.f32.gmra.mrb[0].mxu0 %v1405
    %v1407 = vpop.f32.mrb[0].mxu0
    %v1408 = vadd.f32 %v1224, %v1407
    %v1409 = vpop.f32.mrb[0].mxu0
    %1410 = vmatprep.mubr.f32.mxu0 0.0
    %v1411 = vand.u32 %v1246, 4294901760
    %v1412 = vsub.f32 %v1246, %v1411
    %v1413 = vand.u32 %v1412, 4294901760
    %v1414 = vsub.f32 %v1412, %v1413
    %v1415 = vand.u32 %v1414, 4294901760
    %1416 = vmatmul.mubr.f32.gmra.mrb[0].mxu0 %v1415
    %v1417 = vpop.f32.mrb[0].mxu0
    %v1418 = vadd.f32 %v1224, %v1417
    %v1419 = vpop.f32.mrb[0].mxu0
    %1420 = vmatprep.mubr.f32.mxu0 0.0
    %v1421 = vand.u32 %v1249, 4294901760
    %v1422 = vsub.f32 %v1249, %v1421
    %v1423 = vand.u32 %v1422, 4294901760
    %v1424 = vsub.f32 %v1422, %v1423
    %v1425 = vand.u32 %v1424, 4294901760
    %1426 = vmatmul.mubr.f32.gmra.mrb[0].mxu0 %v1425
    %v1427 = vpop.f32.mrb[0].mxu0
    %v1428 = vadd.f32 %v1224, %v1427
    %v1429 = vpop.f32.mrb[0].mxu0
    %1430 = vmatprep.mubr.f32.mxu0 0.0
    %v1431 = vand.u32 %v1252, 4294901760
    %v1432 = vsub.f32 %v1252, %v1431
    %v1433 = vand.u32 %v1432, 4294901760
    %v1434 = vsub.f32 %v1432, %v1433
    %v1435 = vand.u32 %v1434, 4294901760
    %1436 = vmatmul.mubr.f32.gmra.mrb[0].mxu0 %v1435
    %v1437 = vpop.f32.mrb[0].mxu0
    %v1438 = vadd.f32 %v1224, %v1437
    %v1439 = vpop.f32.mrb[0].mxu0
    %1440 = vmatprep.mubr.f32.mxu0 0.0
    %v1441 = vand.u32 %v1255, 4294901760
    %v1442 = vsub.f32 %v1255, %v1441
    %v1443 = vand.u32 %v1442, 4294901760
    %v1444 = vsub.f32 %v1442, %v1443
    %v1445 = vand.u32 %v1444, 4294901760
    %1446 = vmatmul.mubr.f32.gmra.mrb[0].mxu0 %v1445
    %v1447 = vpop.f32.mrb[0].mxu0
    %v1448 = vadd.f32 %v1224, %v1447
    %v1449 = vpop.f32.mrb[0].mxu0
    %1450 = vmatprep.mubr.f32.mxu0 0.0
    %v1451 = vand.u32 %v1258, 4294901760
    %v1452 = vsub.f32 %v1258, %v1451
    %v1453 = vand.u32 %v1452, 4294901760
    %v1454 = vsub.f32 %v1452, %v1453
    %v1455 = vand.u32 %v1454, 4294901760
    %1456 = vmatmul.mubr.f32.gmra.mrb[0].mxu0 %v1455
    %v1457 = vpop.f32.mrb[0].mxu0
    %v1458 = vadd.f32 %v1224, %v1457
    %v1459 = vpop.f32.mrb[0].mxu0
    %1460 = vmatprep.mubr.f32.mxu0 0.0
    %v1461 = vand.u32 %v1261, 4294901760
    %v1462 = vsub.f32 %v1261, %v1461
    %v1463 = vand.u32 %v1462, 4294901760
    %v1464 = vsub.f32 %v1462, %v1463
    %v1465 = vand.u32 %v1464, 4294901760
    %1466 = vmatmul.mubr.f32.gmra.mrb[0].mxu0 %v1465
    %v1467 = vpop.f32.mrb[0].mxu0
    %v1468 = vadd.f32 %v1224, %v1467
    %v1469 = vpop.f32.mrb[0].mxu0
    %1470 = vmatprep.mubr.f32.mxu0 0.0
    %v1471 = vand.u32 %v1264, 4294901760
    %v1472 = vsub.f32 %v1264, %v1471
    %v1473 = vand.u32 %v1472, 4294901760
    %v1474 = vsub.f32 %v1472, %v1473
    %v1475 = vand.u32 %v1474, 4294901760
    %1476 = vmatmul.mubr.f32.gmra.mrb[0].mxu0 %v1475
    %v1477 = vpop.f32.mrb[0].mxu0
    %v1478 = vadd.f32 %v1224, %v1477
    %v1479 = vpop.f32.mrb[0].mxu0
    %1480 = vmatprep.mubr.f32.mxu0 0.0
    %v1481 = vand.u32 %v1267, 4294901760
    %v1482 = vsub.f32 %v1267, %v1481
    %v1483 = vand.u32 %v1482, 4294901760
    %v1484 = vsub.f32 %v1482, %v1483
    %v1485 = vand.u32 %v1484, 4294901760
    %1486 = vmatmul.mubr.f32.gmra.mrb[0].mxu0 %v1485
    %v1487 = vpop.f32.mrb[0].mxu0
    %v1488 = vadd.f32 %v1224, %v1487
    %v1489 = vpop.f32.mrb[0].mxu0
    %1490 = vmatprep.mubr.f32.mxu0 0.0
    %v1491 = vand.u32 %v1270, 4294901760
    %v1492 = vsub.f32 %v1270, %v1491
    %v1493 = vand.u32 %v1492, 4294901760
    %v1494 = vsub.f32 %v1492, %v1493
    %v1495 = vand.u32 %v1494, 4294901760
    %1496 = vmatmul.mubr.f32.gmra.mrb[0].mxu0 %v1495
    %v1497 = vpop.f32.mrb[0].mxu0
    %v1498 = vadd.f32 %v1224, %v1497
    %v1499 = vpop.f32.mrb[0].mxu0
    %1500 = vmatprep.mubr.f32.mxu0 0.0
    %v1501 = vand.u32 %v1273, 4294901760
    %v1502 = vsub.f32 %v1273, %v1501
    %v1503 = vand.u32 %v1502, 4294901760
    %v1504 = vsub.f32 %v1502, %v1503
    %v1505 = vand.u32 %v1504, 4294901760
    %1506 = vmatmul.mubr.f32.gmra.mrb[0].mxu0 %v1505
    %v1507 = vpop.f32.mrb[0].mxu0
    %v1508 = vadd.f32 %v1224, %v1507
    %v1509 = vpop.f32.mrb[0].mxu0
    %1510 = vdwg.mxu0
    %1511 = vmatprep.subr.mxu0 0.0
    %v1512 = vand.u32 %v1211, 4294901760
    %v1513 = vsub.f32 %v1211, %v1512
    %v1514 = vand.u32 %v1513, 4294901760
    %v1515 = vsub.f32 %v1513, %v1514
    %v1516 = vand.u32 %v1515, 4294901760
    %1517 = vmatpush1.msra.mxu0 %v1516
    %1518 = vmatprep.subr.mxu0 0.0
    %v1519 = vand.u32 %v1212, 4294901760
    %v1520 = vsub.f32 %v1212, %v1519
    %v1521 = vand.u32 %v1520, 4294901760
    %v1522 = vsub.f32 %v1520, %v1521
    %v1523 = vand.u32 %v1522, 4294901760
    %1524 = vmatpush1.msra.mxu0 %v1523
    %1525 = vmatprep.subr.mxu0 0.0
    %v1526 = vand.u32 %v1213, 4294901760
    %v1527 = vsub.f32 %v1213, %v1526
    %v1528 = vand.u32 %v1527, 4294901760
    %v1529 = vsub.f32 %v1527, %v1528
    %v1530 = vand.u32 %v1529, 4294901760
    %1531 = vmatpush1.msra.mxu0 %v1530
    %1532 = vmatprep.subr.mxu0 0.0
    %v1533 = vand.u32 %v1214, 4294901760
    %v1534 = vsub.f32 %v1214, %v1533
    %v1535 = vand.u32 %v1534, 4294901760
    %v1536 = vsub.f32 %v1534, %v1535
    %v1537 = vand.u32 %v1536, 4294901760
    %1538 = vmatpush1.msra.mxu0 %v1537
    %1539 = vmatprep.subr.mxu0 0.0
    %v1540 = vand.u32 %v1215, 4294901760
    %v1541 = vsub.f32 %v1215, %v1540
    %v1542 = vand.u32 %v1541, 4294901760
    %v1543 = vsub.f32 %v1541, %v1542
    %v1544 = vand.u32 %v1543, 4294901760
    %1545 = vmatpush1.msra.mxu0 %v1544
    %1546 = vmatprep.subr.mxu0 0.0
    %v1547 = vand.u32 %v1216, 4294901760
    %v1548 = vsub.f32 %v1216, %v1547
    %v1549 = vand.u32 %v1548, 4294901760
    %v1550 = vsub.f32 %v1548, %v1549
    %v1551 = vand.u32 %v1550, 4294901760
    %1552 = vmatpush1.msra.mxu0 %v1551
    %1553 = vmatprep.subr.mxu0 0.0
    %v1554 = vand.u32 %v1217, 4294901760
    %v1555 = vsub.f32 %v1217, %v1554
    %v1556 = vand.u32 %v1555, 4294901760
    %v1557 = vsub.f32 %v1555, %v1556
    %v1558 = vand.u32 %v1557, 4294901760
    %1559 = vmatpush1.msra.mxu0 %v1558
    %1560 = vmatprep.subr.mxu0 0.0
    %v1561 = vand.u32 %v1276, 4294901760
    %v1562 = vsub.f32 %v1276, %v1561
    %v1563 = vand.u32 %v1562, 4294901760
    %v1564 = vsub.f32 %v1562, %v1563
    %v1565 = vand.u32 %v1564, 4294901760
    %1566 = vmatpush1.msra.mxu0 %v1565
    %1567 = vmatprep.subr.mxu0 0.0
    %1568 = vmatpush1.msra.mxu0 0.0
    %1569 = vmatprep.subr.mxu0 0.0
    %1570 = vmatpush1.msra.mxu0 0.0
    %1571 = vmatprep.subr.mxu0 0.0
    %1572 = vmatpush1.msra.mxu0 0.0
    %1573 = vmatprep.subr.mxu0 0.0
    %1574 = vmatpush1.msra.mxu0 0.0
    %1575 = vmatprep.subr.mxu0 0.0
    %1576 = vmatpush1.msra.mxu0 0.0
    %1577 = vmatprep.subr.mxu0 0.0
    %1578 = vmatpush1.msra.mxu0 0.0
    %1579 = vmatprep.subr.mxu0 0.0
    %1580 = vmatpush1.msra.mxu0 0.0
    %1581 = vmatprep.subr.mxu0 0.0
    %1582 = vmatpush1.msra.mxu0 0.0
    %1583 = vmatprep.subr.mxu0 0.0
    %1584 = vmatpush1.msra.mxu0 0.0
    %1585 = vmatprep.subr.mxu0 0.0
    %1586 = vmatpush1.msra.mxu0 0.0
    %1587 = vmatprep.subr.mxu0 0.0
    %1588 = vmatpush1.msra.mxu0 0.0
    %1589 = vmatprep.subr.mxu0 0.0
    %1590 = vmatpush1.msra.mxu0 0.0
    %1591 = vmatprep.subr.mxu0 0.0
    %1592 = vmatpush1.msra.mxu0 0.0
    %1593 = vmatprep.subr.mxu0 0.0
    %1594 = vmatpush1.msra.mxu0 0.0
    %1595 = vmatprep.subr.mxu0 0.0
    %1596 = vmatpush1.msra.mxu0 0.0
    %1597 = vmatprep.subr.mxu0 0.0
    %1598 = vmatpush1.msra.mxu0 0.0
    %1599 = vmatprep.subr.mxu0 0.0
    %1600 = vmatpush1.msra.mxu0 0.0
    %1601 = vmatprep.subr.mxu0 0.0
    %1602 = vmatpush1.msra.mxu0 0.0
    %1603 = vmatprep.subr.mxu0 0.0
    %1604 = vmatpush1.msra.mxu0 0.0
    %1605 = vmatprep.subr.mxu0 0.0
    %1606 = vmatpush1.msra.mxu0 0.0
    %1607 = vmatprep.subr.mxu0 0.0
    %1608 = vmatpush1.msra.mxu0 0.0
    %1609 = vmatprep.subr.mxu0 0.0
    %1610 = vmatpush1.msra.mxu0 0.0
    %1611 = vmatprep.subr.mxu0 0.0
    %1612 = vmatpush1.msra.mxu0 0.0
    %1613 = vmatprep.subr.mxu0 0.0
    %1614 = vmatpush1.msra.mxu0 0.0
    %1615 = vmatprep.mubr.f32.mxu0 0.0
    %v1616 = vand.u32 %v1228, 4294901760
    %1617 = vmatmul.mubr.f32.gmra.mrb[0].mxu0 %v1616
    %v1618 = vpop.f32.mrb[0].mxu0
    %v1619 = vadd.f32 %v1358, %v1618
    %v1620 = vpop.f32.mrb[0].mxu0
    %1621 = vmatprep.mubr.f32.mxu0 0.0
    %v1622 = vand.u32 %v1231, 4294901760
    %1623 = vmatmul.mubr.f32.gmra.mrb[0].mxu0 %v1622
    %v1624 = vpop.f32.mrb[0].mxu0
    %v1625 = vadd.f32 %v1368, %v1624
    %v1626 = vpop.f32.mrb[0].mxu0
    %1627 = vmatprep.mubr.f32.mxu0 0.0
    %v1628 = vand.u32 %v1234, 4294901760
    %1629 = vmatmul.mubr.f32.gmra.mrb[0].mxu0 %v1628
    %v1630 = vpop.f32.mrb[0].mxu0
    %v1631 = vadd.f32 %v1378, %v1630
    %v1632 = vpop.f32.mrb[0].mxu0
    %1633 = vmatprep.mubr.f32.mxu0 0.0
    %v1634 = vand.u32 %v1237, 4294901760
    %1635 = vmatmul.mubr.f32.gmra.mrb[0].mxu0 %v1634
    %v1636 = vpop.f32.mrb[0].mxu0
    %v1637 = vadd.f32 %v1388, %v1636
    %v1638 = vpop.f32.mrb[0].mxu0
    %1639 = vmatprep.mubr.f32.mxu0 0.0
    %v1640 = vand.u32 %v1240, 4294901760
    %1641 = vmatmul.mubr.f32.gmra.mrb[0].mxu0 %v1640
    %v1642 = vpop.f32.mrb[0].mxu0
    %v1643 = vadd.f32 %v1398, %v1642
    %v1644 = vpop.f32.mrb[0].mxu0
    %1645 = vmatprep.mubr.f32.mxu0 0.0
    %v1646 = vand.u32 %v1243, 4294901760
    %1647 = vmatmul.mubr.f32.gmra.mrb[0].mxu0 %v1646
    %v1648 = vpop.f32.mrb[0].mxu0
    %v1649 = vadd.f32 %v1408, %v1648
    %v1650 = vpop.f32.mrb[0].mxu0
    %1651 = vmatprep.mubr.f32.mxu0 0.0
    %v1652 = vand.u32 %v1246, 4294901760
    %1653 = vmatmul.mubr.f32.gmra.mrb[0].mxu0 %v1652
    %v1654 = vpop.f32.mrb[0].mxu0
    %v1655 = vadd.f32 %v1418, %v1654
    %v1656 = vpop.f32.mrb[0].mxu0
    %1657 = vmatprep.mubr.f32.mxu0 0.0
    %v1658 = vand.u32 %v1249, 4294901760
    %1659 = vmatmul.mubr.f32.gmra.mrb[0].mxu0 %v1658
    %v1660 = vpop.f32.mrb[0].mxu0
    %v1661 = vadd.f32 %v1428, %v1660
    %v1662 = vpop.f32.mrb[0].mxu0
    %1663 = vmatprep.mubr.f32.mxu0 0.0
    %v1664 = vand.u32 %v1252, 4294901760
    %1665 = vmatmul.mubr.f32.gmra.mrb[0].mxu0 %v1664
    %v1666 = vpop.f32.mrb[0].mxu0
    %v1667 = vadd.f32 %v1438, %v1666
    %v1668 = vpop.f32.mrb[0].mxu0
    %1669 = vmatprep.mubr.f32.mxu0 0.0
    %v1670 = vand.u32 %v1255, 4294901760
    %1671 = vmatmul.mubr.f32.gmra.mrb[0].mxu0 %v1670
    %v1672 = vpop.f32.mrb[0].mxu0
    %v1673 = vadd.f32 %v1448, %v1672
    %v1674 = vpop.f32.mrb[0].mxu0
    %1675 = vmatprep.mubr.f32.mxu0 0.0
    %v1676 = vand.u32 %v1258, 4294901760
    %1677 = vmatmul.mubr.f32.gmra.mrb[0].mxu0 %v1676
    %v1678 = vpop.f32.mrb[0].mxu0
    %v1679 = vadd.f32 %v1458, %v1678
    %v1680 = vpop.f32.mrb[0].mxu0
    %1681 = vmatprep.mubr.f32.mxu0 0.0
    %v1682 = vand.u32 %v1261, 4294901760
    %1683 = vmatmul.mubr.f32.gmra.mrb[0].mxu0 %v1682
    %v1684 = vpop.f32.mrb[0].mxu0
    %v1685 = vadd.f32 %v1468, %v1684
    %v1686 = vpop.f32.mrb[0].mxu0
    %1687 = vmatprep.mubr.f32.mxu0 0.0
    %v1688 = vand.u32 %v1264, 4294901760
    %1689 = vmatmul.mubr.f32.gmra.mrb[0].mxu0 %v1688
    %v1690 = vpop.f32.mrb[0].mxu0
    %v1691 = vadd.f32 %v1478, %v1690
    %v1692 = vpop.f32.mrb[0].mxu0
    %1693 = vmatprep.mubr.f32.mxu0 0.0
    %v1694 = vand.u32 %v1267, 4294901760
    %1695 = vmatmul.mubr.f32.gmra.mrb[0].mxu0 %v1694
    %v1696 = vpop.f32.mrb[0].mxu0
    %v1697 = vadd.f32 %v1488, %v1696
    %v1698 = vpop.f32.mrb[0].mxu0
    %1699 = vmatprep.mubr.f32.mxu0 0.0
    %v1700 = vand.u32 %v1270, 4294901760
    %1701 = vmatmul.mubr.f32.gmra.mrb[0].mxu0 %v1700
    %v1702 = vpop.f32.mrb[0].mxu0
    %v1703 = vadd.f32 %v1498, %v1702
    %v1704 = vpop.f32.mrb[0].mxu0
    %1705 = vmatprep.mubr.f32.mxu0 0.0
    %v1706 = vand.u32 %v1273, 4294901760
    %1707 = vmatmul.mubr.f32.gmra.mrb[0].mxu0 %v1706
    %v1708 = vpop.f32.mrb[0].mxu0
    %v1709 = vadd.f32 %v1508, %v1708
    %v1710 = vpop.f32.mrb[0].mxu0
    %1711 = vdwg.mxu0
    %1712 = vmatprep.subr.mxu0 0.0
    %v1713 = vand.u32 %v1211, 4294901760
    %v1714 = vsub.f32 %v1211, %v1713
    %1715 = vmatpush1.msra.mxu0 %v1714
    %1716 = vmatprep.subr.mxu0 0.0
    %v1717 = vand.u32 %v1212, 4294901760
    %v1718 = vsub.f32 %v1212, %v1717
    %1719 = vmatpush1.msra.mxu0 %v1718
    %1720 = vmatprep.subr.mxu0 0.0
    %v1721 = vand.u32 %v1213, 4294901760
    %v1722 = vsub.f32 %v1213, %v1721
    %1723 = vmatpush1.msra.mxu0 %v1722
    %1724 = vmatprep.subr.mxu0 0.0
    %v1725 = vand.u32 %v1214, 4294901760
    %v1726 = vsub.f32 %v1214, %v1725
    %1727 = vmatpush1.msra.mxu0 %v1726
    %1728 = vmatprep.subr.mxu0 0.0
    %v1729 = vand.u32 %v1215, 4294901760
    %v1730 = vsub.f32 %v1215, %v1729
    %1731 = vmatpush1.msra.mxu0 %v1730
    %1732 = vmatprep.subr.mxu0 0.0
    %v1733 = vand.u32 %v1216, 4294901760
    %v1734 = vsub.f32 %v1216, %v1733
    %1735 = vmatpush1.msra.mxu0 %v1734
    %1736 = vmatprep.subr.mxu0 0.0
    %v1737 = vand.u32 %v1217, 4294901760
    %v1738 = vsub.f32 %v1217, %v1737
    %1739 = vmatpush1.msra.mxu0 %v1738
    %1740 = vmatprep.subr.mxu0 0.0
    %v1741 = vand.u32 %v1276, 4294901760
    %v1742 = vsub.f32 %v1276, %v1741
    %1743 = vmatpush1.msra.mxu0 %v1742
    %1744 = vmatprep.subr.mxu0 0.0
    %1745 = vmatpush1.msra.mxu0 0.0
    %1746 = vmatprep.subr.mxu0 0.0
    %1747 = vmatpush1.msra.mxu0 0.0
    %1748 = vmatprep.subr.mxu0 0.0
    %1749 = vmatpush1.msra.mxu0 0.0
    %1750 = vmatprep.subr.mxu0 0.0
    %1751 = vmatpush1.msra.mxu0 0.0
    %1752 = vmatprep.subr.mxu0 0.0
    %1753 = vmatpush1.msra.mxu0 0.0
    %1754 = vmatprep.subr.mxu0 0.0
    %1755 = vmatpush1.msra.mxu0 0.0
    %1756 = vmatprep.subr.mxu0 0.0
    %1757 = vmatpush1.msra.mxu0 0.0
    %1758 = vmatprep.subr.mxu0 0.0
    %1759 = vmatpush1.msra.mxu0 0.0
    %1760 = vmatprep.subr.mxu0 0.0
    %1761 = vmatpush1.msra.mxu0 0.0
    %1762 = vmatprep.subr.mxu0 0.0
    %1763 = vmatpush1.msra.mxu0 0.0
    %1764 = vmatprep.subr.mxu0 0.0
    %1765 = vmatpush1.msra.mxu0 0.0
    %1766 = vmatprep.subr.mxu0 0.0
    %1767 = vmatpush1.msra.mxu0 0.0
    %1768 = vmatprep.subr.mxu0 0.0
    %1769 = vmatpush1.msra.mxu0 0.0
    %1770 = vmatprep.subr.mxu0 0.0
    %1771 = vmatpush1.msra.mxu0 0.0
    %1772 = vmatprep.subr.mxu0 0.0
    %1773 = vmatpush1.msra.mxu0 0.0
    %1774 = vmatprep.subr.mxu0 0.0
    %1775 = vmatpush1.msra.mxu0 0.0
    %1776 = vmatprep.subr.mxu0 0.0
    %1777 = vmatpush1.msra.mxu0 0.0
    %1778 = vmatprep.subr.mxu0 0.0
    %1779 = vmatpush1.msra.mxu0 0.0
    %1780 = vmatprep.subr.mxu0 0.0
    %1781 = vmatpush1.msra.mxu0 0.0
    %1782 = vmatprep.subr.mxu0 0.0
    %1783 = vmatpush1.msra.mxu0 0.0
    %1784 = vmatprep.subr.mxu0 0.0
    %1785 = vmatpush1.msra.mxu0 0.0
    %1786 = vmatprep.subr.mxu0 0.0
    %1787 = vmatpush1.msra.mxu0 0.0
    %1788 = vmatprep.subr.mxu0 0.0
    %1789 = vmatpush1.msra.mxu0 0.0
    %1790 = vmatprep.subr.mxu0 0.0
    %1791 = vmatpush1.msra.mxu0 0.0
    %1792 = vmatprep.mubr.f32.mxu0 0.0
    %v1793 = vand.u32 %v1228, 4294901760
    %v1794 = vsub.f32 %v1228, %v1793
    %1795 = vmatmul.mubr.f32.gmra.mrb[0].mxu0 %v1794
    %v1796 = vpop.f32.mrb[0].mxu0
    %v1797 = vadd.f32 %v1619, %v1796
    %v1798 = vpop.f32.mrb[0].mxu0
    %1799 = vmatprep.mubr.f32.mxu0 0.0
    %v1800 = vand.u32 %v1231, 4294901760
    %v1801 = vsub.f32 %v1231, %v1800
    %1802 = vmatmul.mubr.f32.gmra.mrb[0].mxu0 %v1801
    %v1803 = vpop.f32.mrb[0].mxu0
    %v1804 = vadd.f32 %v1625, %v1803
    %v1805 = vpop.f32.mrb[0].mxu0
    %1806 = vmatprep.mubr.f32.mxu0 0.0
    %v1807 = vand.u32 %v1234, 4294901760
    %v1808 = vsub.f32 %v1234, %v1807
    %1809 = vmatmul.mubr.f32.gmra.mrb[0].mxu0 %v1808
    %v1810 = vpop.f32.mrb[0].mxu0
    %v1811 = vadd.f32 %v1631, %v1810
    %v1812 = vpop.f32.mrb[0].mxu0
    %1813 = vmatprep.mubr.f32.mxu0 0.0
    %v1814 = vand.u32 %v1237, 4294901760
    %v1815 = vsub.f32 %v1237, %v1814
    %1816 = vmatmul.mubr.f32.gmra.mrb[0].mxu0 %v1815
    %v1817 = vpop.f32.mrb[0].mxu0
    %v1818 = vadd.f32 %v1637, %v1817
    %v1819 = vpop.f32.mrb[0].mxu0
    %1820 = vmatprep.mubr.f32.mxu0 0.0
    %v1821 = vand.u32 %v1240, 4294901760
    %v1822 = vsub.f32 %v1240, %v1821
    %1823 = vmatmul.mubr.f32.gmra.mrb[0].mxu0 %v1822
    %v1824 = vpop.f32.mrb[0].mxu0
    %v1825 = vadd.f32 %v1643, %v1824
    %v1826 = vpop.f32.mrb[0].mxu0
    %1827 = vmatprep.mubr.f32.mxu0 0.0
    %v1828 = vand.u32 %v1243, 4294901760
    %v1829 = vsub.f32 %v1243, %v1828
    %1830 = vmatmul.mubr.f32.gmra.mrb[0].mxu0 %v1829
    %v1831 = vpop.f32.mrb[0].mxu0
    %v1832 = vadd.f32 %v1649, %v1831
    %v1833 = vpop.f32.mrb[0].mxu0
    %1834 = vmatprep.mubr.f32.mxu0 0.0
    %v1835 = vand.u32 %v1246, 4294901760
    %v1836 = vsub.f32 %v1246, %v1835
    %1837 = vmatmul.mubr.f32.gmra.mrb[0].mxu0 %v1836
    %v1838 = vpop.f32.mrb[0].mxu0
    %v1839 = vadd.f32 %v1655, %v1838
    %v1840 = vpop.f32.mrb[0].mxu0
    %1841 = vmatprep.mubr.f32.mxu0 0.0
    %v1842 = vand.u32 %v1249, 4294901760
    %v1843 = vsub.f32 %v1249, %v1842
    %1844 = vmatmul.mubr.f32.gmra.mrb[0].mxu0 %v1843
    %v1845 = vpop.f32.mrb[0].mxu0
    %v1846 = vadd.f32 %v1661, %v1845
    %v1847 = vpop.f32.mrb[0].mxu0
    %1848 = vmatprep.mubr.f32.mxu0 0.0
    %v1849 = vand.u32 %v1252, 4294901760
    %v1850 = vsub.f32 %v1252, %v1849
    %1851 = vmatmul.mubr.f32.gmra.mrb[0].mxu0 %v1850
    %v1852 = vpop.f32.mrb[0].mxu0
    %v1853 = vadd.f32 %v1667, %v1852
    %v1854 = vpop.f32.mrb[0].mxu0
    %1855 = vmatprep.mubr.f32.mxu0 0.0
    %v1856 = vand.u32 %v1255, 4294901760
    %v1857 = vsub.f32 %v1255, %v1856
    %1858 = vmatmul.mubr.f32.gmra.mrb[0].mxu0 %v1857
    %v1859 = vpop.f32.mrb[0].mxu0
    %v1860 = vadd.f32 %v1673, %v1859
    %v1861 = vpop.f32.mrb[0].mxu0
    %1862 = vmatprep.mubr.f32.mxu0 0.0
    %v1863 = vand.u32 %v1258, 4294901760
    %v1864 = vsub.f32 %v1258, %v1863
    %1865 = vmatmul.mubr.f32.gmra.mrb[0].mxu0 %v1864
    %v1866 = vpop.f32.mrb[0].mxu0
    %v1867 = vadd.f32 %v1679, %v1866
    %v1868 = vpop.f32.mrb[0].mxu0
    %1869 = vmatprep.mubr.f32.mxu0 0.0
    %v1870 = vand.u32 %v1261, 4294901760
    %v1871 = vsub.f32 %v1261, %v1870
    %1872 = vmatmul.mubr.f32.gmra.mrb[0].mxu0 %v1871
    %v1873 = vpop.f32.mrb[0].mxu0
    %v1874 = vadd.f32 %v1685, %v1873
    %v1875 = vpop.f32.mrb[0].mxu0
    %1876 = vmatprep.mubr.f32.mxu0 0.0
    %v1877 = vand.u32 %v1264, 4294901760
    %v1878 = vsub.f32 %v1264, %v1877
    %1879 = vmatmul.mubr.f32.gmra.mrb[0].mxu0 %v1878
    %v1880 = vpop.f32.mrb[0].mxu0
    %v1881 = vadd.f32 %v1691, %v1880
    %v1882 = vpop.f32.mrb[0].mxu0
    %1883 = vmatprep.mubr.f32.mxu0 0.0
    %v1884 = vand.u32 %v1267, 4294901760
    %v1885 = vsub.f32 %v1267, %v1884
    %1886 = vmatmul.mubr.f32.gmra.mrb[0].mxu0 %v1885
    %v1887 = vpop.f32.mrb[0].mxu0
    %v1888 = vadd.f32 %v1697, %v1887
    %v1889 = vpop.f32.mrb[0].mxu0
    %1890 = vmatprep.mubr.f32.mxu0 0.0
    %v1891 = vand.u32 %v1270, 4294901760
    %v1892 = vsub.f32 %v1270, %v1891
    %1893 = vmatmul.mubr.f32.gmra.mrb[0].mxu0 %v1892
    %v1894 = vpop.f32.mrb[0].mxu0
    %v1895 = vadd.f32 %v1703, %v1894
    %v1896 = vpop.f32.mrb[0].mxu0
    %1897 = vmatprep.mubr.f32.mxu0 0.0
    %v1898 = vand.u32 %v1273, 4294901760
    %v1899 = vsub.f32 %v1273, %v1898
    %1900 = vmatmul.mubr.f32.gmra.mrb[0].mxu0 %v1899
    %v1901 = vpop.f32.mrb[0].mxu0
    %v1902 = vadd.f32 %v1709, %v1901
    %v1903 = vpop.f32.mrb[0].mxu0
    %1904 = vdwg.mxu0
    %1905 = vmatprep.subr.mxu0 0.0
    %v1906 = vand.u32 %v1211, 4294901760
    %1907 = vmatpush1.msra.mxu0 %v1906
    %1908 = vmatprep.subr.mxu0 0.0
    %v1909 = vand.u32 %v1212, 4294901760
    %1910 = vmatpush1.msra.mxu0 %v1909
    %1911 = vmatprep.subr.mxu0 0.0
    %v1912 = vand.u32 %v1213, 4294901760
    %1913 = vmatpush1.msra.mxu0 %v1912
    %1914 = vmatprep.subr.mxu0 0.0
    %v1915 = vand.u32 %v1214, 4294901760
    %1916 = vmatpush1.msra.mxu0 %v1915
    %1917 = vmatprep.subr.mxu0 0.0
    %v1918 = vand.u32 %v1215, 4294901760
    %1919 = vmatpush1.msra.mxu0 %v1918
    %1920 = vmatprep.subr.mxu0 0.0
    %v1921 = vand.u32 %v1216, 4294901760
    %1922 = vmatpush1.msra.mxu0 %v1921
    %1923 = vmatprep.subr.mxu0 0.0
    %v1924 = vand.u32 %v1217, 4294901760
    %1925 = vmatpush1.msra.mxu0 %v1924
    %1926 = vmatprep.subr.mxu0 0.0
    %v1927 = vand.u32 %v1276, 4294901760
    %1928 = vmatpush1.msra.mxu0 %v1927
    %1929 = vmatprep.subr.mxu0 0.0
    %1930 = vmatpush1.msra.mxu0 0.0
    %1931 = vmatprep.subr.mxu0 0.0
    %1932 = vmatpush1.msra.mxu0 0.0
    %1933 = vmatprep.subr.mxu0 0.0
    %1934 = vmatpush1.msra.mxu0 0.0
    %1935 = vmatprep.subr.mxu0 0.0
    %1936 = vmatpush1.msra.mxu0 0.0
    %1937 = vmatprep.subr.mxu0 0.0
    %1938 = vmatpush1.msra.mxu0 0.0
    %1939 = vmatprep.subr.mxu0 0.0
    %1940 = vmatpush1.msra.mxu0 0.0
    %1941 = vmatprep.subr.mxu0 0.0
    %1942 = vmatpush1.msra.mxu0 0.0
    %1943 = vmatprep.subr.mxu0 0.0
    %1944 = vmatpush1.msra.mxu0 0.0
    %1945 = vmatprep.subr.mxu0 0.0
    %1946 = vmatpush1.msra.mxu0 0.0
    %1947 = vmatprep.subr.mxu0 0.0
    %1948 = vmatpush1.msra.mxu0 0.0
    %1949 = vmatprep.subr.mxu0 0.0
    %1950 = vmatpush1.msra.mxu0 0.0
    %1951 = vmatprep.subr.mxu0 0.0
    %1952 = vmatpush1.msra.mxu0 0.0
    %1953 = vmatprep.subr.mxu0 0.0
    %1954 = vmatpush1.msra.mxu0 0.0
    %1955 = vmatprep.subr.mxu0 0.0
    %1956 = vmatpush1.msra.mxu0 0.0
    %1957 = vmatprep.subr.mxu0 0.0
    %1958 = vmatpush1.msra.mxu0 0.0
    %1959 = vmatprep.subr.mxu0 0.0
    %1960 = vmatpush1.msra.mxu0 0.0
    %1961 = vmatprep.subr.mxu0 0.0
    %1962 = vmatpush1.msra.mxu0 0.0
    %1963 = vmatprep.subr.mxu0 0.0
    %1964 = vmatpush1.msra.mxu0 0.0
    %1965 = vmatprep.subr.mxu0 0.0
    %1966 = vmatpush1.msra.mxu0 0.0
    %1967 = vmatprep.subr.mxu0 0.0
    %1968 = vmatpush1.msra.mxu0 0.0
    %1969 = vmatprep.subr.mxu0 0.0
    %1970 = vmatpush1.msra.mxu0 0.0
    %1971 = vmatprep.subr.mxu0 0.0
    %1972 = vmatpush1.msra.mxu0 0.0
    %1973 = vmatprep.subr.mxu0 0.0
    %1974 = vmatpush1.msra.mxu0 0.0
    %1975 = vmatprep.subr.mxu0 0.0
    %1976 = vmatpush1.msra.mxu0 0.0
    %1977 = vmatprep.mubr.f32.mxu0 0.0
    %v1978 = vand.u32 %v1228, 4294901760
    %v1979 = vsub.f32 %v1228, %v1978
    %v1980 = vand.u32 %v1979, 4294901760
    %1981 = vmatmul.mubr.f32.gmra.mrb[0].mxu0 %v1980
    %v1982 = vpop.f32.mrb[0].mxu0
    %v1983 = vadd.f32 %v1797, %v1982
    %v1984 = vpop.f32.mrb[0].mxu0
    %1985 = vmatprep.mubr.f32.mxu0 0.0
    %v1986 = vand.u32 %v1231, 4294901760
    %v1987 = vsub.f32 %v1231, %v1986
    %v1988 = vand.u32 %v1987, 4294901760
    %1989 = vmatmul.mubr.f32.gmra.mrb[0].mxu0 %v1988
    %v1990 = vpop.f32.mrb[0].mxu0
    %v1991 = vadd.f32 %v1804, %v1990
    %v1992 = vpop.f32.mrb[0].mxu0
    %1993 = vmatprep.mubr.f32.mxu0 0.0
    %v1994 = vand.u32 %v1234, 4294901760
    %v1995 = vsub.f32 %v1234, %v1994
    %v1996 = vand.u32 %v1995, 4294901760
    %1997 = vmatmul.mubr.f32.gmra.mrb[0].mxu0 %v1996
    %v1998 = vpop.f32.mrb[0].mxu0
    %v1999 = vadd.f32 %v1811, %v1998
    %v2000 = vpop.f32.mrb[0].mxu0
    %2001 = vmatprep.mubr.f32.mxu0 0.0
    %v2002 = vand.u32 %v1237, 4294901760
    %v2003 = vsub.f32 %v1237, %v2002
    %v2004 = vand.u32 %v2003, 4294901760
    %2005 = vmatmul.mubr.f32.gmra.mrb[0].mxu0 %v2004
    %v2006 = vpop.f32.mrb[0].mxu0
    %v2007 = vadd.f32 %v1818, %v2006
    %v2008 = vpop.f32.mrb[0].mxu0
    %2009 = vmatprep.mubr.f32.mxu0 0.0
    %v2010 = vand.u32 %v1240, 4294901760
    %v2011 = vsub.f32 %v1240, %v2010
    %v2012 = vand.u32 %v2011, 4294901760
    %2013 = vmatmul.mubr.f32.gmra.mrb[0].mxu0 %v2012
    %v2014 = vpop.f32.mrb[0].mxu0
    %v2015 = vadd.f32 %v1825, %v2014
    %v2016 = vpop.f32.mrb[0].mxu0
    %2017 = vmatprep.mubr.f32.mxu0 0.0
    %v2018 = vand.u32 %v1243, 4294901760
    %v2019 = vsub.f32 %v1243, %v2018
    %v2020 = vand.u32 %v2019, 4294901760
    %2021 = vmatmul.mubr.f32.gmra.mrb[0].mxu0 %v2020
    %v2022 = vpop.f32.mrb[0].mxu0
    %v2023 = vadd.f32 %v1832, %v2022
    %v2024 = vpop.f32.mrb[0].mxu0
    %2025 = vmatprep.mubr.f32.mxu0 0.0
    %v2026 = vand.u32 %v1246, 4294901760
    %v2027 = vsub.f32 %v1246, %v2026
    %v2028 = vand.u32 %v2027, 4294901760
    %2029 = vmatmul.mubr.f32.gmra.mrb[0].mxu0 %v2028
    %v2030 = vpop.f32.mrb[0].mxu0
    %v2031 = vadd.f32 %v1839, %v2030
    %v2032 = vpop.f32.mrb[0].mxu0
    %2033 = vmatprep.mubr.f32.mxu0 0.0
    %v2034 = vand.u32 %v1249, 4294901760
    %v2035 = vsub.f32 %v1249, %v2034
    %v2036 = vand.u32 %v2035, 4294901760
    %2037 = vmatmul.mubr.f32.gmra.mrb[0].mxu0 %v2036
    %v2038 = vpop.f32.mrb[0].mxu0
    %v2039 = vadd.f32 %v1846, %v2038
    %v2040 = vpop.f32.mrb[0].mxu0
    %2041 = vmatprep.mubr.f32.mxu0 0.0
    %v2042 = vand.u32 %v1252, 4294901760
    %v2043 = vsub.f32 %v1252, %v2042
    %v2044 = vand.u32 %v2043, 4294901760
    %2045 = vmatmul.mubr.f32.gmra.mrb[0].mxu0 %v2044
    %v2046 = vpop.f32.mrb[0].mxu0
    %v2047 = vadd.f32 %v1853, %v2046
    %v2048 = vpop.f32.mrb[0].mxu0
    %2049 = vmatprep.mubr.f32.mxu0 0.0
    %v2050 = vand.u32 %v1255, 4294901760
    %v2051 = vsub.f32 %v1255, %v2050
    %v2052 = vand.u32 %v2051, 4294901760
    %2053 = vmatmul.mubr.f32.gmra.mrb[0].mxu0 %v2052
    %v2054 = vpop.f32.mrb[0].mxu0
    %v2055 = vadd.f32 %v1860, %v2054
    %v2056 = vpop.f32.mrb[0].mxu0
    %2057 = vmatprep.mubr.f32.mxu0 0.0
    %v2058 = vand.u32 %v1258, 4294901760
    %v2059 = vsub.f32 %v1258, %v2058
    %v2060 = vand.u32 %v2059, 4294901760
    %2061 = vmatmul.mubr.f32.gmra.mrb[0].mxu0 %v2060
    %v2062 = vpop.f32.mrb[0].mxu0
    %v2063 = vadd.f32 %v1867, %v2062
    %v2064 = vpop.f32.mrb[0].mxu0
    %2065 = vmatprep.mubr.f32.mxu0 0.0
    %v2066 = vand.u32 %v1261, 4294901760
    %v2067 = vsub.f32 %v1261, %v2066
    %v2068 = vand.u32 %v2067, 4294901760
    %2069 = vmatmul.mubr.f32.gmra.mrb[0].mxu0 %v2068
    %v2070 = vpop.f32.mrb[0].mxu0
    %v2071 = vadd.f32 %v1874, %v2070
    %v2072 = vpop.f32.mrb[0].mxu0
    %2073 = vmatprep.mubr.f32.mxu0 0.0
    %v2074 = vand.u32 %v1264, 4294901760
    %v2075 = vsub.f32 %v1264, %v2074
    %v2076 = vand.u32 %v2075, 4294901760
    %2077 = vmatmul.mubr.f32.gmra.mrb[0].mxu0 %v2076
    %v2078 = vpop.f32.mrb[0].mxu0
    %v2079 = vadd.f32 %v1881, %v2078
    %v2080 = vpop.f32.mrb[0].mxu0
    %2081 = vmatprep.mubr.f32.mxu0 0.0
    %v2082 = vand.u32 %v1267, 4294901760
    %v2083 = vsub.f32 %v1267, %v2082
    %v2084 = vand.u32 %v2083, 4294901760
    %2085 = vmatmul.mubr.f32.gmra.mrb[0].mxu0 %v2084
    %v2086 = vpop.f32.mrb[0].mxu0
    %v2087 = vadd.f32 %v1888, %v2086
    %v2088 = vpop.f32.mrb[0].mxu0
    %2089 = vmatprep.mubr.f32.mxu0 0.0
    %v2090 = vand.u32 %v1270, 4294901760
    %v2091 = vsub.f32 %v1270, %v2090
    %v2092 = vand.u32 %v2091, 4294901760
    %2093 = vmatmul.mubr.f32.gmra.mrb[0].mxu0 %v2092
    %v2094 = vpop.f32.mrb[0].mxu0
    %v2095 = vadd.f32 %v1895, %v2094
    %v2096 = vpop.f32.mrb[0].mxu0
    %2097 = vmatprep.mubr.f32.mxu0 0.0
    %v2098 = vand.u32 %v1273, 4294901760
    %v2099 = vsub.f32 %v1273, %v2098
    %v2100 = vand.u32 %v2099, 4294901760
    %2101 = vmatmul.mubr.f32.gmra.mrb[0].mxu0 %v2100
    %v2102 = vpop.f32.mrb[0].mxu0
    %v2103 = vadd.f32 %v1902, %v2102
    %v2104 = vpop.f32.mrb[0].mxu0
    %2105 = vdwg.mxu0
    %2106 = vmatprep.subr.mxu0 0.0
    %v2107 = vand.u32 %v1211, 4294901760
    %v2108 = vsub.f32 %v1211, %v2107
    %v2109 = vand.u32 %v2108, 4294901760
    %2110 = vmatpush1.msra.mxu0 %v2109
    %2111 = vmatprep.subr.mxu0 0.0
    %v2112 = vand.u32 %v1212, 4294901760
    %v2113 = vsub.f32 %v1212, %v2112
    %v2114 = vand.u32 %v2113, 4294901760
    %2115 = vmatpush1.msra.mxu0 %v2114
    %2116 = vmatprep.subr.mxu0 0.0
    %v2117 = vand.u32 %v1213, 4294901760
    %v2118 = vsub.f32 %v1213, %v2117
    %v2119 = vand.u32 %v2118, 4294901760
    %2120 = vmatpush1.msra.mxu0 %v2119
    %2121 = vmatprep.subr.mxu0 0.0
    %v2122 = vand.u32 %v1214, 4294901760
    %v2123 = vsub.f32 %v1214, %v2122
    %v2124 = vand.u32 %v2123, 4294901760
    %2125 = vmatpush1.msra.mxu0 %v2124
    %2126 = vmatprep.subr.mxu0 0.0
    %v2127 = vand.u32 %v1215, 4294901760
    %v2128 = vsub.f32 %v1215, %v2127
    %v2129 = vand.u32 %v2128, 4294901760
    %2130 = vmatpush1.msra.mxu0 %v2129
    %2131 = vmatprep.subr.mxu0 0.0
    %v2132 = vand.u32 %v1216, 4294901760
    %v2133 = vsub.f32 %v1216, %v2132
    %v2134 = vand.u32 %v2133, 4294901760
    %2135 = vmatpush1.msra.mxu0 %v2134
    %2136 = vmatprep.subr.mxu0 0.0
    %v2137 = vand.u32 %v1217, 4294901760
    %v2138 = vsub.f32 %v1217, %v2137
    %v2139 = vand.u32 %v2138, 4294901760
    %2140 = vmatpush1.msra.mxu0 %v2139
    %2141 = vmatprep.subr.mxu0 0.0
    %v2142 = vand.u32 %v1276, 4294901760
    %v2143 = vsub.f32 %v1276, %v2142
    %v2144 = vand.u32 %v2143, 4294901760
    %2145 = vmatpush1.msra.mxu0 %v2144
    %2146 = vmatprep.subr.mxu0 0.0
    %2147 = vmatpush1.msra.mxu0 0.0
    %2148 = vmatprep.subr.mxu0 0.0
    %2149 = vmatpush1.msra.mxu0 0.0
    %2150 = vmatprep.subr.mxu0 0.0
    %2151 = vmatpush1.msra.mxu0 0.0
    %2152 = vmatprep.subr.mxu0 0.0
    %2153 = vmatpush1.msra.mxu0 0.0
    %2154 = vmatprep.subr.mxu0 0.0
    %2155 = vmatpush1.msra.mxu0 0.0
    %2156 = vmatprep.subr.mxu0 0.0
    %2157 = vmatpush1.msra.mxu0 0.0
    %2158 = vmatprep.subr.mxu0 0.0
    %2159 = vmatpush1.msra.mxu0 0.0
    %2160 = vmatprep.subr.mxu0 0.0
    %2161 = vmatpush1.msra.mxu0 0.0
    %2162 = vmatprep.subr.mxu0 0.0
    %2163 = vmatpush1.msra.mxu0 0.0
    %2164 = vmatprep.subr.mxu0 0.0
    %2165 = vmatpush1.msra.mxu0 0.0
    %2166 = vmatprep.subr.mxu0 0.0
    %2167 = vmatpush1.msra.mxu0 0.0
    %2168 = vmatprep.subr.mxu0 0.0
    %2169 = vmatpush1.msra.mxu0 0.0
    %2170 = vmatprep.subr.mxu0 0.0
    %2171 = vmatpush1.msra.mxu0 0.0
    %2172 = vmatprep.subr.mxu0 0.0
    %2173 = vmatpush1.msra.mxu0 0.0
    %2174 = vmatprep.subr.mxu0 0.0
    %2175 = vmatpush1.msra.mxu0 0.0
    %2176 = vmatprep.subr.mxu0 0.0
    %2177 = vmatpush1.msra.mxu0 0.0
    %2178 = vmatprep.subr.mxu0 0.0
    %2179 = vmatpush1.msra.mxu0 0.0
    %2180 = vmatprep.subr.mxu0 0.0
    %2181 = vmatpush1.msra.mxu0 0.0
    %2182 = vmatprep.subr.mxu0 0.0
    %2183 = vmatpush1.msra.mxu0 0.0
    %2184 = vmatprep.subr.mxu0 0.0
    %2185 = vmatpush1.msra.mxu0 0.0
    %2186 = vmatprep.subr.mxu0 0.0
    %2187 = vmatpush1.msra.mxu0 0.0
    %2188 = vmatprep.subr.mxu0 0.0
    %2189 = vmatpush1.msra.mxu0 0.0
    %2190 = vmatprep.subr.mxu0 0.0
    %2191 = vmatpush1.msra.mxu0 0.0
    %2192 = vmatprep.subr.mxu0 0.0
    %2193 = vmatpush1.msra.mxu0 0.0
    %2194 = vmatprep.mubr.f32.mxu0 0.0
    %v2195 = vand.u32 %v1228, 4294901760
    %2196 = vmatmul.mubr.f32.gmra.mrb[0].mxu0 %v2195
    %v2197 = vpop.f32.mrb[0].mxu0
    %v2198 = vadd.f32 %v1983, %v2197
    %v2199 = vpop.f32.mrb[0].mxu0
    %2200 = vmatprep.mubr.f32.mxu0 0.0
    %v2201 = vand.u32 %v1231, 4294901760
    %2202 = vmatmul.mubr.f32.gmra.mrb[0].mxu0 %v2201
    %v2203 = vpop.f32.mrb[0].mxu0
    %v2204 = vadd.f32 %v1991, %v2203
    %v2205 = vpop.f32.mrb[0].mxu0
    %2206 = vmatprep.mubr.f32.mxu0 0.0
    %v2207 = vand.u32 %v1234, 4294901760
    %2208 = vmatmul.mubr.f32.gmra.mrb[0].mxu0 %v2207
    %v2209 = vpop.f32.mrb[0].mxu0
    %v2210 = vadd.f32 %v1999, %v2209
    %v2211 = vpop.f32.mrb[0].mxu0
    %2212 = vmatprep.mubr.f32.mxu0 0.0
    %v2213 = vand.u32 %v1237, 4294901760
    %2214 = vmatmul.mubr.f32.gmra.mrb[0].mxu0 %v2213
    %v2215 = vpop.f32.mrb[0].mxu0
    %v2216 = vadd.f32 %v2007, %v2215
    %v2217 = vpop.f32.mrb[0].mxu0
    %2218 = vmatprep.mubr.f32.mxu0 0.0
    %v2219 = vand.u32 %v1240, 4294901760
    %2220 = vmatmul.mubr.f32.gmra.mrb[0].mxu0 %v2219
    %v2221 = vpop.f32.mrb[0].mxu0
    %v2222 = vadd.f32 %v2015, %v2221
    %v2223 = vpop.f32.mrb[0].mxu0
    %2224 = vmatprep.mubr.f32.mxu0 0.0
    %v2225 = vand.u32 %v1243, 4294901760
    %2226 = vmatmul.mubr.f32.gmra.mrb[0].mxu0 %v2225
    %v2227 = vpop.f32.mrb[0].mxu0
    %v2228 = vadd.f32 %v2023, %v2227
    %v2229 = vpop.f32.mrb[0].mxu0
    %2230 = vmatprep.mubr.f32.mxu0 0.0
    %v2231 = vand.u32 %v1246, 4294901760
    %2232 = vmatmul.mubr.f32.gmra.mrb[0].mxu0 %v2231
    %v2233 = vpop.f32.mrb[0].mxu0
    %v2234 = vadd.f32 %v2031, %v2233
    %v2235 = vpop.f32.mrb[0].mxu0
    %2236 = vmatprep.mubr.f32.mxu0 0.0
    %v2237 = vand.u32 %v1249, 4294901760
    %2238 = vmatmul.mubr.f32.gmra.mrb[0].mxu0 %v2237
    %v2239 = vpop.f32.mrb[0].mxu0
    %v2240 = vadd.f32 %v2039, %v2239
    %v2241 = vpop.f32.mrb[0].mxu0
    %2242 = vmatprep.mubr.f32.mxu0 0.0
    %v2243 = vand.u32 %v1252, 4294901760
    %2244 = vmatmul.mubr.f32.gmra.mrb[0].mxu0 %v2243
    %v2245 = vpop.f32.mrb[0].mxu0
    %v2246 = vadd.f32 %v2047, %v2245
    %v2247 = vpop.f32.mrb[0].mxu0
    %2248 = vmatprep.mubr.f32.mxu0 0.0
    %v2249 = vand.u32 %v1255, 4294901760
    %2250 = vmatmul.mubr.f32.gmra.mrb[0].mxu0 %v2249
    %v2251 = vpop.f32.mrb[0].mxu0
    %v2252 = vadd.f32 %v2055, %v2251
    %v2253 = vpop.f32.mrb[0].mxu0
    %2254 = vmatprep.mubr.f32.mxu0 0.0
    %v2255 = vand.u32 %v1258, 4294901760
    %2256 = vmatmul.mubr.f32.gmra.mrb[0].mxu0 %v2255
    %v2257 = vpop.f32.mrb[0].mxu0
    %v2258 = vadd.f32 %v2063, %v2257
    %v2259 = vpop.f32.mrb[0].mxu0
    %2260 = vmatprep.mubr.f32.mxu0 0.0
    %v2261 = vand.u32 %v1261, 4294901760
    %2262 = vmatmul.mubr.f32.gmra.mrb[0].mxu0 %v2261
    %v2263 = vpop.f32.mrb[0].mxu0
    %v2264 = vadd.f32 %v2071, %v2263
    %v2265 = vpop.f32.mrb[0].mxu0
    %2266 = vmatprep.mubr.f32.mxu0 0.0
    %v2267 = vand.u32 %v1264, 4294901760
    %2268 = vmatmul.mubr.f32.gmra.mrb[0].mxu0 %v2267
    %v2269 = vpop.f32.mrb[0].mxu0
    %v2270 = vadd.f32 %v2079, %v2269
    %v2271 = vpop.f32.mrb[0].mxu0
    %2272 = vmatprep.mubr.f32.mxu0 0.0
    %v2273 = vand.u32 %v1267, 4294901760
    %2274 = vmatmul.mubr.f32.gmra.mrb[0].mxu0 %v2273
    %v2275 = vpop.f32.mrb[0].mxu0
    %v2276 = vadd.f32 %v2087, %v2275
    %v2277 = vpop.f32.mrb[0].mxu0
    %2278 = vmatprep.mubr.f32.mxu0 0.0
    %v2279 = vand.u32 %v1270, 4294901760
    %2280 = vmatmul.mubr.f32.gmra.mrb[0].mxu0 %v2279
    %v2281 = vpop.f32.mrb[0].mxu0
    %v2282 = vadd.f32 %v2095, %v2281
    %v2283 = vpop.f32.mrb[0].mxu0
    %2284 = vmatprep.mubr.f32.mxu0 0.0
    %v2285 = vand.u32 %v1273, 4294901760
    %2286 = vmatmul.mubr.f32.gmra.mrb[0].mxu0 %v2285
    %v2287 = vpop.f32.mrb[0].mxu0
    %v2288 = vadd.f32 %v2103, %v2287
    %v2289 = vpop.f32.mrb[0].mxu0
    %2290 = vdwg.mxu0
    %2291 = vmatprep.subr.mxu0 0.0
    %v2292 = vand.u32 %v1211, 4294901760
    %2293 = vmatpush1.msra.mxu0 %v2292
    %2294 = vmatprep.subr.mxu0 0.0
    %v2295 = vand.u32 %v1212, 4294901760
    %2296 = vmatpush1.msra.mxu0 %v2295
    %2297 = vmatprep.subr.mxu0 0.0
    %v2298 = vand.u32 %v1213, 4294901760
    %2299 = vmatpush1.msra.mxu0 %v2298
    %2300 = vmatprep.subr.mxu0 0.0
    %v2301 = vand.u32 %v1214, 4294901760
    %2302 = vmatpush1.msra.mxu0 %v2301
    %2303 = vmatprep.subr.mxu0 0.0
    %v2304 = vand.u32 %v1215, 4294901760
    %2305 = vmatpush1.msra.mxu0 %v2304
    %2306 = vmatprep.subr.mxu0 0.0
    %v2307 = vand.u32 %v1216, 4294901760
    %2308 = vmatpush1.msra.mxu0 %v2307
    %2309 = vmatprep.subr.mxu0 0.0
    %v2310 = vand.u32 %v1217, 4294901760
    %2311 = vmatpush1.msra.mxu0 %v2310
    %2312 = vmatprep.subr.mxu0 0.0
    %v2313 = vand.u32 %v1276, 4294901760
    %2314 = vmatpush1.msra.mxu0 %v2313
    %2315 = vmatprep.subr.mxu0 0.0
    %2316 = vmatpush1.msra.mxu0 0.0
    %2317 = vmatprep.subr.mxu0 0.0
    %2318 = vmatpush1.msra.mxu0 0.0
    %2319 = vmatprep.subr.mxu0 0.0
    %2320 = vmatpush1.msra.mxu0 0.0
    %2321 = vmatprep.subr.mxu0 0.0
    %2322 = vmatpush1.msra.mxu0 0.0
    %2323 = vmatprep.subr.mxu0 0.0
    %2324 = vmatpush1.msra.mxu0 0.0
    %2325 = vmatprep.subr.mxu0 0.0
    %2326 = vmatpush1.msra.mxu0 0.0
    %2327 = vmatprep.subr.mxu0 0.0
    %2328 = vmatpush1.msra.mxu0 0.0
    %2329 = vmatprep.subr.mxu0 0.0
    %2330 = vmatpush1.msra.mxu0 0.0
    %2331 = vmatprep.subr.mxu0 0.0
    %2332 = vmatpush1.msra.mxu0 0.0
    %2333 = vmatprep.subr.mxu0 0.0
    %2334 = vmatpush1.msra.mxu0 0.0
    %2335 = vmatprep.subr.mxu0 0.0
    %2336 = vmatpush1.msra.mxu0 0.0
    %2337 = vmatprep.subr.mxu0 0.0
    %2338 = vmatpush1.msra.mxu0 0.0
    %2339 = vmatprep.subr.mxu0 0.0
    %2340 = vmatpush1.msra.mxu0 0.0
    %2341 = vmatprep.subr.mxu0 0.0
    %2342 = vmatpush1.msra.mxu0 0.0
    %2343 = vmatprep.subr.mxu0 0.0
    %2344 = vmatpush1.msra.mxu0 0.0
    %2345 = vmatprep.subr.mxu0 0.0
    %2346 = vmatpush1.msra.mxu0 0.0
    %2347 = vmatprep.subr.mxu0 0.0
    %2348 = vmatpush1.msra.mxu0 0.0
    %2349 = vmatprep.subr.mxu0 0.0
    %2350 = vmatpush1.msra.mxu0 0.0
    %2351 = vmatprep.subr.mxu0 0.0
    %2352 = vmatpush1.msra.mxu0 0.0
    %2353 = vmatprep.subr.mxu0 0.0
    %2354 = vmatpush1.msra.mxu0 0.0
    %2355 = vmatprep.subr.mxu0 0.0
    %2356 = vmatpush1.msra.mxu0 0.0
    %2357 = vmatprep.subr.mxu0 0.0
    %2358 = vmatpush1.msra.mxu0 0.0
    %2359 = vmatprep.subr.mxu0 0.0
    %2360 = vmatpush1.msra.mxu0 0.0
    %2361 = vmatprep.subr.mxu0 0.0
    %2362 = vmatpush1.msra.mxu0 0.0
    %2363 = vmatprep.mubr.f32.mxu0 0.0
    %v2364 = vand.u32 %v1228, 4294901760
    %2365 = vmatmul.mubr.f32.gmra.mrb[0].mxu0 %v2364
    %v2366 = vpop.f32.mrb[0].mxu0
    %v2367 = vadd.f32 %v2198, %v2366
    %v2368 = vpop.f32.mrb[0].mxu0
    %2369 = vmatprep.mubr.f32.mxu0 0.0
    %v2370 = vand.u32 %v1231, 4294901760
    %2371 = vmatmul.mubr.f32.gmra.mrb[0].mxu0 %v2370
    %v2372 = vpop.f32.mrb[0].mxu0
    %v2373 = vadd.f32 %v2204, %v2372
    %v2374 = vpop.f32.mrb[0].mxu0
    %2375 = vmatprep.mubr.f32.mxu0 0.0
    %v2376 = vand.u32 %v1234, 4294901760
    %2377 = vmatmul.mubr.f32.gmra.mrb[0].mxu0 %v2376
    %v2378 = vpop.f32.mrb[0].mxu0
    %v2379 = vadd.f32 %v2210, %v2378
    %v2380 = vpop.f32.mrb[0].mxu0
    %2381 = vmatprep.mubr.f32.mxu0 0.0
    %v2382 = vand.u32 %v1237, 4294901760
    %2383 = vmatmul.mubr.f32.gmra.mrb[0].mxu0 %v2382
    %v2384 = vpop.f32.mrb[0].mxu0
    %v2385 = vadd.f32 %v2216, %v2384
    %v2386 = vpop.f32.mrb[0].mxu0
    %2387 = vmatprep.mubr.f32.mxu0 0.0
    %v2388 = vand.u32 %v1240, 4294901760
    %2389 = vmatmul.mubr.f32.gmra.mrb[0].mxu0 %v2388
    %v2390 = vpop.f32.mrb[0].mxu0
    %v2391 = vadd.f32 %v2222, %v2390
    %v2392 = vpop.f32.mrb[0].mxu0
    %2393 = vmatprep.mubr.f32.mxu0 0.0
    %v2394 = vand.u32 %v1243, 4294901760
    %2395 = vmatmul.mubr.f32.gmra.mrb[0].mxu0 %v2394
    %v2396 = vpop.f32.mrb[0].mxu0
    %v2397 = vadd.f32 %v2228, %v2396
    %v2398 = vpop.f32.mrb[0].mxu0
    %2399 = vmatprep.mubr.f32.mxu0 0.0
    %v2400 = vand.u32 %v1246, 4294901760
    %2401 = vmatmul.mubr.f32.gmra.mrb[0].mxu0 %v2400
    %v2402 = vpop.f32.mrb[0].mxu0
    %v2403 = vadd.f32 %v2234, %v2402
    %v2404 = vpop.f32.mrb[0].mxu0
    %2405 = vmatprep.mubr.f32.mxu0 0.0
    %v2406 = vand.u32 %v1249, 4294901760
    %2407 = vmatmul.mubr.f32.gmra.mrb[0].mxu0 %v2406
    %v2408 = vpop.f32.mrb[0].mxu0
    %v2409 = vadd.f32 %v2240, %v2408
    %v2410 = vpop.f32.mrb[0].mxu0
    %2411 = vmatprep.mubr.f32.mxu0 0.0
    %v2412 = vand.u32 %v1252, 4294901760
    %2413 = vmatmul.mubr.f32.gmra.mrb[0].mxu0 %v2412
    %v2414 = vpop.f32.mrb[0].mxu0
    %v2415 = vadd.f32 %v2246, %v2414
    %v2416 = vpop.f32.mrb[0].mxu0
    %2417 = vmatprep.mubr.f32.mxu0 0.0
    %v2418 = vand.u32 %v1255, 4294901760
    %2419 = vmatmul.mubr.f32.gmra.mrb[0].mxu0 %v2418
    %v2420 = vpop.f32.mrb[0].mxu0
    %v2421 = vadd.f32 %v2252, %v2420
    %v2422 = vpop.f32.mrb[0].mxu0
    %2423 = vmatprep.mubr.f32.mxu0 0.0
    %v2424 = vand.u32 %v1258, 4294901760
    %2425 = vmatmul.mubr.f32.gmra.mrb[0].mxu0 %v2424
    %v2426 = vpop.f32.mrb[0].mxu0
    %v2427 = vadd.f32 %v2258, %v2426
    %v2428 = vpop.f32.mrb[0].mxu0
    %2429 = vmatprep.mubr.f32.mxu0 0.0
    %v2430 = vand.u32 %v1261, 4294901760
    %2431 = vmatmul.mubr.f32.gmra.mrb[0].mxu0 %v2430
    %v2432 = vpop.f32.mrb[0].mxu0
    %v2433 = vadd.f32 %v2264, %v2432
    %v2434 = vpop.f32.mrb[0].mxu0
    %2435 = vmatprep.mubr.f32.mxu0 0.0
    %v2436 = vand.u32 %v1264, 4294901760
    %2437 = vmatmul.mubr.f32.gmra.mrb[0].mxu0 %v2436
    %v2438 = vpop.f32.mrb[0].mxu0
    %v2439 = vadd.f32 %v2270, %v2438
    %v2440 = vpop.f32.mrb[0].mxu0
    %2441 = vmatprep.mubr.f32.mxu0 0.0
    %v2442 = vand.u32 %v1267, 4294901760
    %2443 = vmatmul.mubr.f32.gmra.mrb[0].mxu0 %v2442
    %v2444 = vpop.f32.mrb[0].mxu0
    %v2445 = vadd.f32 %v2276, %v2444
    %v2446 = vpop.f32.mrb[0].mxu0
    %2447 = vmatprep.mubr.f32.mxu0 0.0
    %v2448 = vand.u32 %v1270, 4294901760
    %2449 = vmatmul.mubr.f32.gmra.mrb[0].mxu0 %v2448
    %v2450 = vpop.f32.mrb[0].mxu0
    %v2451 = vadd.f32 %v2282, %v2450
    %v2452 = vpop.f32.mrb[0].mxu0
    %2453 = vmatprep.mubr.f32.mxu0 0.0
    %v2454 = vand.u32 %v1273, 4294901760
    %2455 = vmatmul.mubr.f32.gmra.mrb[0].mxu0 %v2454
    %v2456 = vpop.f32.mrb[0].mxu0
    %v2457 = vadd.f32 %v2288, %v2456
    %v2458 = vpop.f32.mrb[0].mxu0
    %2459 = vdwg.mxu0
    %v2460 = vtanh.pop %v2367
    %v2461 = vtanh.pop %v2373
    %v2462 = vtanh.pop %v2379
    %v2463 = vtanh.pop %v2385
    %v2464 = vtanh.pop %v2391
    %v2465 = vtanh.pop %v2397
    %v2466 = vtanh.pop %v2403
    %v2467 = vtanh.pop %v2409
    %v2468 = vtanh.pop %v2415
    %v2469 = vtanh.pop %v2421
    %v2470 = vtanh.pop %v2427
    %v2471 = vtanh.pop %v2433
    %v2472 = vtanh.pop %v2439
    %v2473 = vtanh.pop %v2445
    %v2474 = vtanh.pop %v2451
    %v2475 = vtanh.pop %v2457
    %v2476 = vld [vmem:[%s5] sm:$0x3]
    %v2477 = vld [vmem:[%s6] sm:$0x3]
    %2479 = vset.pattern.permute.xlu0 0
    %2480 = vperm.xlu0 %2479, %v2477
    %v2481 = vpop.permute.xlu0 %2480
    %vm2483 = vcmask 982016
    %v2485 = vsel %vm2483, %v2476, 0
    %v2488 = vsel %vm2483, %v2460, 0
    %v2491 = vsel %vm2483, %v2461, 0
    %v2494 = vsel %vm2483, %v2462, 0
    %v2497 = vsel %vm2483, %v2463, 0
    %v2500 = vsel %vm2483, %v2464, 0
    %v2503 = vsel %vm2483, %v2465, 0
    %v2506 = vsel %vm2483, %v2466, 0
    %v2509 = vsel %vm2483, %v2467, 0
    %v2512 = vsel %vm2483, %v2468, 0
    %v2515 = vsel %vm2483, %v2469, 0
    %v2518 = vsel %vm2483, %v2470, 0
    %v2521 = vsel %vm2483, %v2471, 0
    %v2524 = vsel %vm2483, %v2472, 0
    %v2527 = vsel %vm2483, %v2473, 0
    %v2530 = vsel %vm2483, %v2474, 0
    %v2533 = vsel %vm2483, %v2475, 0
    %2535 = vmatprep.subr.mxu0 0.0
    %v2536 = vand.u32 %v2488, 4294901760
    %2537 = vmatpush1.xpose.msra.mxu0 %v2536
    %2538 = vmatprep.subr.mxu0 0.0
    %v2539 = vand.u32 %v2491, 4294901760
    %2540 = vmatpush1.xpose.msra.mxu0 %v2539
    %2541 = vmatprep.subr.mxu0 0.0
    %v2542 = vand.u32 %v2494, 4294901760
    %2543 = vmatpush1.xpose.msra.mxu0 %v2542
    %2544 = vmatprep.subr.mxu0 0.0
    %v2545 = vand.u32 %v2497, 4294901760
    %2546 = vmatpush1.xpose.msra.mxu0 %v2545
    %2547 = vmatprep.subr.mxu0 0.0
    %v2548 = vand.u32 %v2500, 4294901760
    %2549 = vmatpush1.xpose.msra.mxu0 %v2548
    %2550 = vmatprep.subr.mxu0 0.0
    %v2551 = vand.u32 %v2503, 4294901760
    %2552 = vmatpush1.xpose.msra.mxu0 %v2551
    %2553 = vmatprep.subr.mxu0 0.0
    %v2554 = vand.u32 %v2506, 4294901760
    %2555 = vmatpush1.xpose.msra.mxu0 %v2554
    %2556 = vmatprep.subr.mxu0 0.0
    %v2557 = vand.u32 %v2509, 4294901760
    %2558 = vmatpush1.xpose.msra.mxu0 %v2557
    %2559 = vmatprep.subr.mxu0 0.0
    %v2560 = vand.u32 %v2512, 4294901760
    %2561 = vmatpush1.xpose.msra.mxu0 %v2560
    %2562 = vmatprep.subr.mxu0 0.0
    %v2563 = vand.u32 %v2515, 4294901760
    %2564 = vmatpush1.xpose.msra.mxu0 %v2563
    %2565 = vmatprep.subr.mxu0 0.0
    %v2566 = vand.u32 %v2518, 4294901760
    %2567 = vmatpush1.xpose.msra.mxu0 %v2566
    %2568 = vmatprep.subr.mxu0 0.0
    %v2569 = vand.u32 %v2521, 4294901760
    %2570 = vmatpush1.xpose.msra.mxu0 %v2569
    %2571 = vmatprep.subr.mxu0 0.0
    %v2572 = vand.u32 %v2524, 4294901760
    %2573 = vmatpush1.xpose.msra.mxu0 %v2572
    %2574 = vmatprep.subr.mxu0 0.0
    %v2575 = vand.u32 %v2527, 4294901760
    %2576 = vmatpush1.xpose.msra.mxu0 %v2575
    %2577 = vmatprep.subr.mxu0 0.0
    %v2578 = vand.u32 %v2530, 4294901760
    %2579 = vmatpush1.xpose.msra.mxu0 %v2578
    %2580 = vmatprep.subr.mxu0 0.0
    %v2581 = vand.u32 %v2533, 4294901760
    %2582 = vmatpush1.xpose.msra.mxu0 %v2581
    %2583 = vmatprep.subr.mxu0 0.0
    %2584 = vmatpush1.xpose.msra.mxu0 0.0
    %2585 = vmatprep.subr.mxu0 0.0
    %2586 = vmatpush1.xpose.msra.mxu0 0.0
    %2587 = vmatprep.subr.mxu0 0.0
    %2588 = vmatpush1.xpose.msra.mxu0 0.0
    %2589 = vmatprep.subr.mxu0 0.0
    %2590 = vmatpush1.xpose.msra.mxu0 0.0
    %2591 = vmatprep.subr.mxu0 0.0
    %2592 = vmatpush1.xpose.msra.mxu0 0.0
    %2593 = vmatprep.subr.mxu0 0.0
    %2594 = vmatpush1.xpose.msra.mxu0 0.0
    %2595 = vmatprep.subr.mxu0 0.0
    %2596 = vmatpush1.xpose.msra.mxu0 0.0
    %2597 = vmatprep.subr.mxu0 0.0
    %2598 = vmatpush1.xpose.msra.mxu0 0.0
    %2599 = vmatprep.subr.mxu0 0.0
    %2600 = vmatpush1.xpose.msra.mxu0 0.0
    %2601 = vmatprep.subr.mxu0 0.0
    %2602 = vmatpush1.xpose.msra.mxu0 0.0
    %2603 = vmatprep.subr.mxu0 0.0
    %2604 = vmatpush1.xpose.msra.mxu0 0.0
    %2605 = vmatprep.subr.mxu0 0.0
    %2606 = vmatpush1.xpose.msra.mxu0 0.0
    %2607 = vmatprep.subr.mxu0 0.0
    %2608 = vmatpush1.xpose.msra.mxu0 0.0
    %2609 = vmatprep.subr.mxu0 0.0
    %2610 = vmatpush1.xpose.msra.mxu0 0.0
    %2611 = vmatprep.subr.mxu0 0.0
    %2612 = vmatpush1.xpose.msra.mxu0 0.0
    %2613 = vmatprep.subr.mxu0 0.0
    %2614 = vmatpush1.xpose.msra.mxu0 0.0
    %2615 = vmatprep.mubr.f32.mxu0 0.0
    %v2616 = vand.u32 %v2485, 4294901760
    %v2617 = vsub.f32 %v2485, %v2616
    %v2618 = vand.u32 %v2617, 4294901760
    %v2619 = vsub.f32 %v2617, %v2618
    %v2620 = vand.u32 %v2619, 4294901760
    %2621 = vmatmul.mubr.f32.gmra.mrb[0].mxu0 %v2620
    %v2622 = vpop.f32.mrb[0].mxu0
    %v2623 = vadd.f32 %v2481, %v2622
    %v2624 = vpop.f32.mrb[0].mxu0
    %2625 = vdwg.mxu0
    %2626 = vmatprep.subr.mxu0 0.0
    %v2627 = vand.u32 %v2488, 4294901760
    %v2628 = vsub.f32 %v2488, %v2627
    %v2629 = vand.u32 %v2628, 4294901760
    %v2630 = vsub.f32 %v2628, %v2629
    %v2631 = vand.u32 %v2630, 4294901760
    %2632 = vmatpush1.xpose.msra.mxu0 %v2631
    %2633 = vmatprep.subr.mxu0 0.0
    %v2634 = vand.u32 %v2491, 4294901760
    %v2635 = vsub.f32 %v2491, %v2634
    %v2636 = vand.u32 %v2635, 4294901760
    %v2637 = vsub.f32 %v2635, %v2636
    %v2638 = vand.u32 %v2637, 4294901760
    %2639 = vmatpush1.xpose.msra.mxu0 %v2638
    %2640 = vmatprep.subr.mxu0 0.0
    %v2641 = vand.u32 %v2494, 4294901760
    %v2642 = vsub.f32 %v2494, %v2641
    %v2643 = vand.u32 %v2642, 4294901760
    %v2644 = vsub.f32 %v2642, %v2643
    %v2645 = vand.u32 %v2644, 4294901760
    %2646 = vmatpush1.xpose.msra.mxu0 %v2645
    %2647 = vmatprep.subr.mxu0 0.0
    %v2648 = vand.u32 %v2497, 4294901760
    %v2649 = vsub.f32 %v2497, %v2648
    %v2650 = vand.u32 %v2649, 4294901760
    %v2651 = vsub.f32 %v2649, %v2650
    %v2652 = vand.u32 %v2651, 4294901760
    %2653 = vmatpush1.xpose.msra.mxu0 %v2652
    %2654 = vmatprep.subr.mxu0 0.0
    %v2655 = vand.u32 %v2500, 4294901760
    %v2656 = vsub.f32 %v2500, %v2655
    %v2657 = vand.u32 %v2656, 4294901760
    %v2658 = vsub.f32 %v2656, %v2657
    %v2659 = vand.u32 %v2658, 4294901760
    %2660 = vmatpush1.xpose.msra.mxu0 %v2659
    %2661 = vmatprep.subr.mxu0 0.0
    %v2662 = vand.u32 %v2503, 4294901760
    %v2663 = vsub.f32 %v2503, %v2662
    %v2664 = vand.u32 %v2663, 4294901760
    %v2665 = vsub.f32 %v2663, %v2664
    %v2666 = vand.u32 %v2665, 4294901760
    %2667 = vmatpush1.xpose.msra.mxu0 %v2666
    %2668 = vmatprep.subr.mxu0 0.0
    %v2669 = vand.u32 %v2506, 4294901760
    %v2670 = vsub.f32 %v2506, %v2669
    %v2671 = vand.u32 %v2670, 4294901760
    %v2672 = vsub.f32 %v2670, %v2671
    %v2673 = vand.u32 %v2672, 4294901760
    %2674 = vmatpush1.xpose.msra.mxu0 %v2673
    %2675 = vmatprep.subr.mxu0 0.0
    %v2676 = vand.u32 %v2509, 4294901760
    %v2677 = vsub.f32 %v2509, %v2676
    %v2678 = vand.u32 %v2677, 4294901760
    %v2679 = vsub.f32 %v2677, %v2678
    %v2680 = vand.u32 %v2679, 4294901760
    %2681 = vmatpush1.xpose.msra.mxu0 %v2680
    %2682 = vmatprep.subr.mxu0 0.0
    %v2683 = vand.u32 %v2512, 4294901760
    %v2684 = vsub.f32 %v2512, %v2683
    %v2685 = vand.u32 %v2684, 4294901760
    %v2686 = vsub.f32 %v2684, %v2685
    %v2687 = vand.u32 %v2686, 4294901760
    %2688 = vmatpush1.xpose.msra.mxu0 %v2687
    %2689 = vmatprep.subr.mxu0 0.0
    %v2690 = vand.u32 %v2515, 4294901760
    %v2691 = vsub.f32 %v2515, %v2690
    %v2692 = vand.u32 %v2691, 4294901760
    %v2693 = vsub.f32 %v2691, %v2692
    %v2694 = vand.u32 %v2693, 4294901760
    %2695 = vmatpush1.xpose.msra.mxu0 %v2694
    %2696 = vmatprep.subr.mxu0 0.0
    %v2697 = vand.u32 %v2518, 4294901760
    %v2698 = vsub.f32 %v2518, %v2697
    %v2699 = vand.u32 %v2698, 4294901760
    %v2700 = vsub.f32 %v2698, %v2699
    %v2701 = vand.u32 %v2700, 4294901760
    %2702 = vmatpush1.xpose.msra.mxu0 %v2701
    %2703 = vmatprep.subr.mxu0 0.0
    %v2704 = vand.u32 %v2521, 4294901760
    %v2705 = vsub.f32 %v2521, %v2704
    %v2706 = vand.u32 %v2705, 4294901760
    %v2707 = vsub.f32 %v2705, %v2706
    %v2708 = vand.u32 %v2707, 4294901760
    %2709 = vmatpush1.xpose.msra.mxu0 %v2708
    %2710 = vmatprep.subr.mxu0 0.0
    %v2711 = vand.u32 %v2524, 4294901760
    %v2712 = vsub.f32 %v2524, %v2711
    %v2713 = vand.u32 %v2712, 4294901760
    %v2714 = vsub.f32 %v2712, %v2713
    %v2715 = vand.u32 %v2714, 4294901760
    %2716 = vmatpush1.xpose.msra.mxu0 %v2715
    %2717 = vmatprep.subr.mxu0 0.0
    %v2718 = vand.u32 %v2527, 4294901760
    %v2719 = vsub.f32 %v2527, %v2718
    %v2720 = vand.u32 %v2719, 4294901760
    %v2721 = vsub.f32 %v2719, %v2720
    %v2722 = vand.u32 %v2721, 4294901760
    %2723 = vmatpush1.xpose.msra.mxu0 %v2722
    %2724 = vmatprep.subr.mxu0 0.0
    %v2725 = vand.u32 %v2530, 4294901760
    %v2726 = vsub.f32 %v2530, %v2725
    %v2727 = vand.u32 %v2726, 4294901760
    %v2728 = vsub.f32 %v2726, %v2727
    %v2729 = vand.u32 %v2728, 4294901760
    %2730 = vmatpush1.xpose.msra.mxu0 %v2729
    %2731 = vmatprep.subr.mxu0 0.0
    %v2732 = vand.u32 %v2533, 4294901760
    %v2733 = vsub.f32 %v2533, %v2732
    %v2734 = vand.u32 %v2733, 4294901760
    %v2735 = vsub.f32 %v2733, %v2734
    %v2736 = vand.u32 %v2735, 4294901760
    %2737 = vmatpush1.xpose.msra.mxu0 %v2736
    %2738 = vmatprep.subr.mxu0 0.0
    %2739 = vmatpush1.xpose.msra.mxu0 0.0
    %2740 = vmatprep.subr.mxu0 0.0
    %2741 = vmatpush1.xpose.msra.mxu0 0.0
    %2742 = vmatprep.subr.mxu0 0.0
    %2743 = vmatpush1.xpose.msra.mxu0 0.0
    %2744 = vmatprep.subr.mxu0 0.0
    %2745 = vmatpush1.xpose.msra.mxu0 0.0
    %2746 = vmatprep.subr.mxu0 0.0
    %2747 = vmatpush1.xpose.msra.mxu0 0.0
    %2748 = vmatprep.subr.mxu0 0.0
    %2749 = vmatpush1.xpose.msra.mxu0 0.0
    %2750 = vmatprep.subr.mxu0 0.0
    %2751 = vmatpush1.xpose.msra.mxu0 0.0
    %2752 = vmatprep.subr.mxu0 0.0
    %2753 = vmatpush1.xpose.msra.mxu0 0.0
    %2754 = vmatprep.subr.mxu0 0.0
    %2755 = vmatpush1.xpose.msra.mxu0 0.0
    %2756 = vmatprep.subr.mxu0 0.0
    %2757 = vmatpush1.xpose.msra.mxu0 0.0
    %2758 = vmatprep.subr.mxu0 0.0
    %2759 = vmatpush1.xpose.msra.mxu0 0.0
    %2760 = vmatprep.subr.mxu0 0.0
    %2761 = vmatpush1.xpose.msra.mxu0 0.0
    %2762 = vmatprep.subr.mxu0 0.0
    %2763 = vmatpush1.xpose.msra.mxu0 0.0
    %2764 = vmatprep.subr.mxu0 0.0
    %2765 = vmatpush1.xpose.msra.mxu0 0.0
    %2766 = vmatprep.subr.mxu0 0.0
    %2767 = vmatpush1.xpose.msra.mxu0 0.0
    %2768 = vmatprep.subr.mxu0 0.0
    %2769 = vmatpush1.xpose.msra.mxu0 0.0
    %2770 = vmatprep.mubr.f32.mxu0 0.0
    %v2771 = vand.u32 %v2485, 4294901760
    %2772 = vmatmul.mubr.f32.gmra.mrb[0].mxu0 %v2771
    %v2773 = vpop.f32.mrb[0].mxu0
    %v2774 = vadd.f32 %v2623, %v2773
    %v2775 = vpop.f32.mrb[0].mxu0
    %2776 = vdwg.mxu0
    %2777 = vmatprep.subr.mxu0 0.0
    %v2778 = vand.u32 %v2488, 4294901760
    %v2779 = vsub.f32 %v2488, %v2778
    %2780 = vmatpush1.xpose.msra.mxu0 %v2779
    %2781 = vmatprep.subr.mxu0 0.0
    %v2782 = vand.u32 %v2491, 4294901760
    %v2783 = vsub.f32 %v2491, %v2782
    %2784 = vmatpush1.xpose.msra.mxu0 %v2783
    %2785 = vmatprep.subr.mxu0 0.0
    %v2786 = vand.u32 %v2494, 4294901760
    %v2787 = vsub.f32 %v2494, %v2786
    %2788 = vmatpush1.xpose.msra.mxu0 %v2787
    %2789 = vmatprep.subr.mxu0 0.0
    %v2790 = vand.u32 %v2497, 4294901760
    %v2791 = vsub.f32 %v2497, %v2790
    %2792 = vmatpush1.xpose.msra.mxu0 %v2791
    %2793 = vmatprep.subr.mxu0 0.0
    %v2794 = vand.u32 %v2500, 4294901760
    %v2795 = vsub.f32 %v2500, %v2794
    %2796 = vmatpush1.xpose.msra.mxu0 %v2795
    %2797 = vmatprep.subr.mxu0 0.0
    %v2798 = vand.u32 %v2503, 4294901760
    %v2799 = vsub.f32 %v2503, %v2798
    %2800 = vmatpush1.xpose.msra.mxu0 %v2799
    %2801 = vmatprep.subr.mxu0 0.0
    %v2802 = vand.u32 %v2506, 4294901760
    %v2803 = vsub.f32 %v2506, %v2802
    %2804 = vmatpush1.xpose.msra.mxu0 %v2803
    %2805 = vmatprep.subr.mxu0 0.0
    %v2806 = vand.u32 %v2509, 4294901760
    %v2807 = vsub.f32 %v2509, %v2806
    %2808 = vmatpush1.xpose.msra.mxu0 %v2807
    %2809 = vmatprep.subr.mxu0 0.0
    %v2810 = vand.u32 %v2512, 4294901760
    %v2811 = vsub.f32 %v2512, %v2810
    %2812 = vmatpush1.xpose.msra.mxu0 %v2811
    %2813 = vmatprep.subr.mxu0 0.0
    %v2814 = vand.u32 %v2515, 4294901760
    %v2815 = vsub.f32 %v2515, %v2814
    %2816 = vmatpush1.xpose.msra.mxu0 %v2815
    %2817 = vmatprep.subr.mxu0 0.0
    %v2818 = vand.u32 %v2518, 4294901760
    %v2819 = vsub.f32 %v2518, %v2818
    %2820 = vmatpush1.xpose.msra.mxu0 %v2819
    %2821 = vmatprep.subr.mxu0 0.0
    %v2822 = vand.u32 %v2521, 4294901760
    %v2823 = vsub.f32 %v2521, %v2822
    %2824 = vmatpush1.xpose.msra.mxu0 %v2823
    %2825 = vmatprep.subr.mxu0 0.0
    %v2826 = vand.u32 %v2524, 4294901760
    %v2827 = vsub.f32 %v2524, %v2826
    %2828 = vmatpush1.xpose.msra.mxu0 %v2827
    %2829 = vmatprep.subr.mxu0 0.0
    %v2830 = vand.u32 %v2527, 4294901760
    %v2831 = vsub.f32 %v2527, %v2830
    %2832 = vmatpush1.xpose.msra.mxu0 %v2831
    %2833 = vmatprep.subr.mxu0 0.0
    %v2834 = vand.u32 %v2530, 4294901760
    %v2835 = vsub.f32 %v2530, %v2834
    %2836 = vmatpush1.xpose.msra.mxu0 %v2835
    %2837 = vmatprep.subr.mxu0 0.0
    %v2838 = vand.u32 %v2533, 4294901760
    %v2839 = vsub.f32 %v2533, %v2838
    %2840 = vmatpush1.xpose.msra.mxu0 %v2839
    %2841 = vmatprep.subr.mxu0 0.0
    %2842 = vmatpush1.xpose.msra.mxu0 0.0
    %2843 = vmatprep.subr.mxu0 0.0
    %2844 = vmatpush1.xpose.msra.mxu0 0.0
    %2845 = vmatprep.subr.mxu0 0.0
    %2846 = vmatpush1.xpose.msra.mxu0 0.0
    %2847 = vmatprep.subr.mxu0 0.0
    %2848 = vmatpush1.xpose.msra.mxu0 0.0
    %2849 = vmatprep.subr.mxu0 0.0
    %2850 = vmatpush1.xpose.msra.mxu0 0.0
    %2851 = vmatprep.subr.mxu0 0.0
    %2852 = vmatpush1.xpose.msra.mxu0 0.0
    %2853 = vmatprep.subr.mxu0 0.0
    %2854 = vmatpush1.xpose.msra.mxu0 0.0
    %2855 = vmatprep.subr.mxu0 0.0
    %2856 = vmatpush1.xpose.msra.mxu0 0.0
    %2857 = vmatprep.subr.mxu0 0.0
    %2858 = vmatpush1.xpose.msra.mxu0 0.0
    %2859 = vmatprep.subr.mxu0 0.0
    %2860 = vmatpush1.xpose.msra.mxu0 0.0
    %2861 = vmatprep.subr.mxu0 0.0
    %2862 = vmatpush1.xpose.msra.mxu0 0.0
    %2863 = vmatprep.subr.mxu0 0.0
    %2864 = vmatpush1.xpose.msra.mxu0 0.0
    %2865 = vmatprep.subr.mxu0 0.0
    %2866 = vmatpush1.xpose.msra.mxu0 0.0
    %2867 = vmatprep.subr.mxu0 0.0
    %2868 = vmatpush1.xpose.msra.mxu0 0.0
    %2869 = vmatprep.subr.mxu0 0.0
    %2870 = vmatpush1.xpose.msra.mxu0 0.0
    %2871 = vmatprep.subr.mxu0 0.0
    %2872 = vmatpush1.xpose.msra.mxu0 0.0
    %2873 = vmatprep.mubr.f32.mxu0 0.0
    %v2874 = vand.u32 %v2485, 4294901760
    %v2875 = vsub.f32 %v2485, %v2874
    %2876 = vmatmul.mubr.f32.gmra.mrb[0].mxu0 %v2875
    %v2877 = vpop.f32.mrb[0].mxu0
    %v2878 = vadd.f32 %v2774, %v2877
    %v2879 = vpop.f32.mrb[0].mxu0
    %2880 = vdwg.mxu0
    %2881 = vmatprep.subr.mxu0 0.0
    %v2882 = vand.u32 %v2488, 4294901760
    %2883 = vmatpush1.xpose.msra.mxu0 %v2882
    %2884 = vmatprep.subr.mxu0 0.0
    %v2885 = vand.u32 %v2491, 4294901760
    %2886 = vmatpush1.xpose.msra.mxu0 %v2885
    %2887 = vmatprep.subr.mxu0 0.0
    %v2888 = vand.u32 %v2494, 4294901760
    %2889 = vmatpush1.xpose.msra.mxu0 %v2888
    %2890 = vmatprep.subr.mxu0 0.0
    %v2891 = vand.u32 %v2497, 4294901760
    %2892 = vmatpush1.xpose.msra.mxu0 %v2891
    %2893 = vmatprep.subr.mxu0 0.0
    %v2894 = vand.u32 %v2500, 4294901760
    %2895 = vmatpush1.xpose.msra.mxu0 %v2894
    %2896 = vmatprep.subr.mxu0 0.0
    %v2897 = vand.u32 %v2503, 4294901760
    %2898 = vmatpush1.xpose.msra.mxu0 %v2897
    %2899 = vmatprep.subr.mxu0 0.0
    %v2900 = vand.u32 %v2506, 4294901760
    %2901 = vmatpush1.xpose.msra.mxu0 %v2900
    %2902 = vmatprep.subr.mxu0 0.0
    %v2903 = vand.u32 %v2509, 4294901760
    %2904 = vmatpush1.xpose.msra.mxu0 %v2903
    %2905 = vmatprep.subr.mxu0 0.0
    %v2906 = vand.u32 %v2512, 4294901760
    %2907 = vmatpush1.xpose.msra.mxu0 %v2906
    %2908 = vmatprep.subr.mxu0 0.0
    %v2909 = vand.u32 %v2515, 4294901760
    %2910 = vmatpush1.xpose.msra.mxu0 %v2909
    %2911 = vmatprep.subr.mxu0 0.0
    %v2912 = vand.u32 %v2518, 4294901760
    %2913 = vmatpush1.xpose.msra.mxu0 %v2912
    %2914 = vmatprep.subr.mxu0 0.0
    %v2915 = vand.u32 %v2521, 4294901760
    %2916 = vmatpush1.xpose.msra.mxu0 %v2915
    %2917 = vmatprep.subr.mxu0 0.0
    %v2918 = vand.u32 %v2524, 4294901760
    %2919 = vmatpush1.xpose.msra.mxu0 %v2918
    %2920 = vmatprep.subr.mxu0 0.0
    %v2921 = vand.u32 %v2527, 4294901760
    %2922 = vmatpush1.xpose.msra.mxu0 %v2921
    %2923 = vmatprep.subr.mxu0 0.0
    %v2924 = vand.u32 %v2530, 4294901760
    %2925 = vmatpush1.xpose.msra.mxu0 %v2924
    %2926 = vmatprep.subr.mxu0 0.0
    %v2927 = vand.u32 %v2533, 4294901760
    %2928 = vmatpush1.xpose.msra.mxu0 %v2927
    %2929 = vmatprep.subr.mxu0 0.0
    %2930 = vmatpush1.xpose.msra.mxu0 0.0
    %2931 = vmatprep.subr.mxu0 0.0
    %2932 = vmatpush1.xpose.msra.mxu0 0.0
    %2933 = vmatprep.subr.mxu0 0.0
    %2934 = vmatpush1.xpose.msra.mxu0 0.0
    %2935 = vmatprep.subr.mxu0 0.0
    %2936 = vmatpush1.xpose.msra.mxu0 0.0
    %2937 = vmatprep.subr.mxu0 0.0
    %2938 = vmatpush1.xpose.msra.mxu0 0.0
    %2939 = vmatprep.subr.mxu0 0.0
    %2940 = vmatpush1.xpose.msra.mxu0 0.0
    %2941 = vmatprep.subr.mxu0 0.0
    %2942 = vmatpush1.xpose.msra.mxu0 0.0
    %2943 = vmatprep.subr.mxu0 0.0
    %2944 = vmatpush1.xpose.msra.mxu0 0.0
    %2945 = vmatprep.subr.mxu0 0.0
    %2946 = vmatpush1.xpose.msra.mxu0 0.0
    %2947 = vmatprep.subr.mxu0 0.0
    %2948 = vmatpush1.xpose.msra.mxu0 0.0
    %2949 = vmatprep.subr.mxu0 0.0
    %2950 = vmatpush1.xpose.msra.mxu0 0.0
    %2951 = vmatprep.subr.mxu0 0.0
    %2952 = vmatpush1.xpose.msra.mxu0 0.0
    %2953 = vmatprep.subr.mxu0 0.0
    %2954 = vmatpush1.xpose.msra.mxu0 0.0
    %2955 = vmatprep.subr.mxu0 0.0
    %2956 = vmatpush1.xpose.msra.mxu0 0.0
    %2957 = vmatprep.subr.mxu0 0.0
    %2958 = vmatpush1.xpose.msra.mxu0 0.0
    %2959 = vmatprep.subr.mxu0 0.0
    %2960 = vmatpush1.xpose.msra.mxu0 0.0
    %2961 = vmatprep.mubr.f32.mxu0 0.0
    %v2962 = vand.u32 %v2485, 4294901760
    %v2963 = vsub.f32 %v2485, %v2962
    %v2964 = vand.u32 %v2963, 4294901760
    %2965 = vmatmul.mubr.f32.gmra.mrb[0].mxu0 %v2964
    %v2966 = vpop.f32.mrb[0].mxu0
    %v2967 = vadd.f32 %v2878, %v2966
    %v2968 = vpop.f32.mrb[0].mxu0
    %2969 = vdwg.mxu0
    %2970 = vmatprep.subr.mxu0 0.0
    %v2971 = vand.u32 %v2488, 4294901760
    %v2972 = vsub.f32 %v2488, %v2971
    %v2973 = vand.u32 %v2972, 4294901760
    %2974 = vmatpush1.xpose.msra.mxu0 %v2973
    %2975 = vmatprep.subr.mxu0 0.0
    %v2976 = vand.u32 %v2491, 4294901760
    %v2977 = vsub.f32 %v2491, %v2976
    %v2978 = vand.u32 %v2977, 4294901760
    %2979 = vmatpush1.xpose.msra.mxu0 %v2978
    %2980 = vmatprep.subr.mxu0 0.0
    %v2981 = vand.u32 %v2494, 4294901760
    %v2982 = vsub.f32 %v2494, %v2981
    %v2983 = vand.u32 %v2982, 4294901760
    %2984 = vmatpush1.xpose.msra.mxu0 %v2983
    %2985 = vmatprep.subr.mxu0 0.0
    %v2986 = vand.u32 %v2497, 4294901760
    %v2987 = vsub.f32 %v2497, %v2986
    %v2988 = vand.u32 %v2987, 4294901760
    %2989 = vmatpush1.xpose.msra.mxu0 %v2988
    %2990 = vmatprep.subr.mxu0 0.0
    %v2991 = vand.u32 %v2500, 4294901760
    %v2992 = vsub.f32 %v2500, %v2991
    %v2993 = vand.u32 %v2992, 4294901760
    %2994 = vmatpush1.xpose.msra.mxu0 %v2993
    %2995 = vmatprep.subr.mxu0 0.0
    %v2996 = vand.u32 %v2503, 4294901760
    %v2997 = vsub.f32 %v2503, %v2996
    %v2998 = vand.u32 %v2997, 4294901760
    %2999 = vmatpush1.xpose.msra.mxu0 %v2998
    %3000 = vmatprep.subr.mxu0 0.0
    %v3001 = vand.u32 %v2506, 4294901760
    %v3002 = vsub.f32 %v2506, %v3001
    %v3003 = vand.u32 %v3002, 4294901760
    %3004 = vmatpush1.xpose.msra.mxu0 %v3003
    %3005 = vmatprep.subr.mxu0 0.0
    %v3006 = vand.u32 %v2509, 4294901760
    %v3007 = vsub.f32 %v2509, %v3006
    %v3008 = vand.u32 %v3007, 4294901760
    %3009 = vmatpush1.xpose.msra.mxu0 %v3008
    %3010 = vmatprep.subr.mxu0 0.0
    %v3011 = vand.u32 %v2512, 4294901760
    %v3012 = vsub.f32 %v2512, %v3011
    %v3013 = vand.u32 %v3012, 4294901760
    %3014 = vmatpush1.xpose.msra.mxu0 %v3013
    %3015 = vmatprep.subr.mxu0 0.0
    %v3016 = vand.u32 %v2515, 4294901760
    %v3017 = vsub.f32 %v2515, %v3016
    %v3018 = vand.u32 %v3017, 4294901760
    %3019 = vmatpush1.xpose.msra.mxu0 %v3018
    %3020 = vmatprep.subr.mxu0 0.0
    %v3021 = vand.u32 %v2518, 4294901760
    %v3022 = vsub.f32 %v2518, %v3021
    %v3023 = vand.u32 %v3022, 4294901760
    %3024 = vmatpush1.xpose.msra.mxu0 %v3023
    %3025 = vmatprep.subr.mxu0 0.0
    %v3026 = vand.u32 %v2521, 4294901760
    %v3027 = vsub.f32 %v2521, %v3026
    %v3028 = vand.u32 %v3027, 4294901760
    %3029 = vmatpush1.xpose.msra.mxu0 %v3028
    %3030 = vmatprep.subr.mxu0 0.0
    %v3031 = vand.u32 %v2524, 4294901760
    %v3032 = vsub.f32 %v2524, %v3031
    %v3033 = vand.u32 %v3032, 4294901760
    %3034 = vmatpush1.xpose.msra.mxu0 %v3033
    %3035 = vmatprep.subr.mxu0 0.0
    %v3036 = vand.u32 %v2527, 4294901760
    %v3037 = vsub.f32 %v2527, %v3036
    %v3038 = vand.u32 %v3037, 4294901760
    %3039 = vmatpush1.xpose.msra.mxu0 %v3038
    %3040 = vmatprep.subr.mxu0 0.0
    %v3041 = vand.u32 %v2530, 4294901760
    %v3042 = vsub.f32 %v2530, %v3041
    %v3043 = vand.u32 %v3042, 4294901760
    %3044 = vmatpush1.xpose.msra.mxu0 %v3043
    %3045 = vmatprep.subr.mxu0 0.0
    %v3046 = vand.u32 %v2533, 4294901760
    %v3047 = vsub.f32 %v2533, %v3046
    %v3048 = vand.u32 %v3047, 4294901760
    %3049 = vmatpush1.xpose.msra.mxu0 %v3048
    %3050 = vmatprep.subr.mxu0 0.0
    %3051 = vmatpush1.xpose.msra.mxu0 0.0
    %3052 = vmatprep.subr.mxu0 0.0
    %3053 = vmatpush1.xpose.msra.mxu0 0.0
    %3054 = vmatprep.subr.mxu0 0.0
    %3055 = vmatpush1.xpose.msra.mxu0 0.0
    %3056 = vmatprep.subr.mxu0 0.0
    %3057 = vmatpush1.xpose.msra.mxu0 0.0
    %3058 = vmatprep.subr.mxu0 0.0
    %3059 = vmatpush1.xpose.msra.mxu0 0.0
    %3060 = vmatprep.subr.mxu0 0.0
    %3061 = vmatpush1.xpose.msra.mxu0 0.0
    %3062 = vmatprep.subr.mxu0 0.0
    %3063 = vmatpush1.xpose.msra.mxu0 0.0
    %3064 = vmatprep.subr.mxu0 0.0
    %3065 = vmatpush1.xpose.msra.mxu0 0.0
    %3066 = vmatprep.subr.mxu0 0.0
    %3067 = vmatpush1.xpose.msra.mxu0 0.0
    %3068 = vmatprep.subr.mxu0 0.0
    %3069 = vmatpush1.xpose.msra.mxu0 0.0
    %3070 = vmatprep.subr.mxu0 0.0
    %3071 = vmatpush1.xpose.msra.mxu0 0.0
    %3072 = vmatprep.subr.mxu0 0.0
    %3073 = vmatpush1.xpose.msra.mxu0 0.0
    %3074 = vmatprep.subr.mxu0 0.0
    %3075 = vmatpush1.xpose.msra.mxu0 0.0
    %3076 = vmatprep.subr.mxu0 0.0
    %3077 = vmatpush1.xpose.msra.mxu0 0.0
    %3078 = vmatprep.subr.mxu0 0.0
    %3079 = vmatpush1.xpose.msra.mxu0 0.0
    %3080 = vmatprep.subr.mxu0 0.0
    %3081 = vmatpush1.xpose.msra.mxu0 0.0
    %3082 = vmatprep.mubr.f32.mxu0 0.0
    %v3083 = vand.u32 %v2485, 4294901760
    %3084 = vmatmul.mubr.f32.gmra.mrb[0].mxu0 %v3083
    %v3085 = vpop.f32.mrb[0].mxu0
    %v3086 = vadd.f32 %v2967, %v3085
    %v3087 = vpop.f32.mrb[0].mxu0
    %3088 = vdwg.mxu0
    %3089 = vmatprep.subr.mxu0 0.0
    %v3090 = vand.u32 %v2488, 4294901760
    %3091 = vmatpush1.xpose.msra.mxu0 %v3090
    %3092 = vmatprep.subr.mxu0 0.0
    %v3093 = vand.u32 %v2491, 4294901760
    %3094 = vmatpush1.xpose.msra.mxu0 %v3093
    %3095 = vmatprep.subr.mxu0 0.0
    %v3096 = vand.u32 %v2494, 4294901760
    %3097 = vmatpush1.xpose.msra.mxu0 %v3096
    %3098 = vmatprep.subr.mxu0 0.0
    %v3099 = vand.u32 %v2497, 4294901760
    %3100 = vmatpush1.xpose.msra.mxu0 %v3099
    %3101 = vmatprep.subr.mxu0 0.0
    %v3102 = vand.u32 %v2500, 4294901760
    %3103 = vmatpush1.xpose.msra.mxu0 %v3102
    %3104 = vmatprep.subr.mxu0 0.0
    %v3105 = vand.u32 %v2503, 4294901760
    %3106 = vmatpush1.xpose.msra.mxu0 %v3105
    %3107 = vmatprep.subr.mxu0 0.0
    %v3108 = vand.u32 %v2506, 4294901760
    %3109 = vmatpush1.xpose.msra.mxu0 %v3108
    %3110 = vmatprep.subr.mxu0 0.0
    %v3111 = vand.u32 %v2509, 4294901760
    %3112 = vmatpush1.xpose.msra.mxu0 %v3111
    %3113 = vmatprep.subr.mxu0 0.0
    %v3114 = vand.u32 %v2512, 4294901760
    %3115 = vmatpush1.xpose.msra.mxu0 %v3114
    %3116 = vmatprep.subr.mxu0 0.0
    %v3117 = vand.u32 %v2515, 4294901760
    %3118 = vmatpush1.xpose.msra.mxu0 %v3117
    %3119 = vmatprep.subr.mxu0 0.0
    %v3120 = vand.u32 %v2518, 4294901760
    %3121 = vmatpush1.xpose.msra.mxu0 %v3120
    %3122 = vmatprep.subr.mxu0 0.0
    %v3123 = vand.u32 %v2521, 4294901760
    %3124 = vmatpush1.xpose.msra.mxu0 %v3123
    %3125 = vmatprep.subr.mxu0 0.0
    %v3126 = vand.u32 %v2524, 4294901760
    %3127 = vmatpush1.xpose.msra.mxu0 %v3126
    %3128 = vmatprep.subr.mxu0 0.0
    %v3129 = vand.u32 %v2527, 4294901760
    %3130 = vmatpush1.xpose.msra.mxu0 %v3129
    %3131 = vmatprep.subr.mxu0 0.0
    %v3132 = vand.u32 %v2530, 4294901760
    %3133 = vmatpush1.xpose.msra.mxu0 %v3132
    %3134 = vmatprep.subr.mxu0 0.0
    %v3135 = vand.u32 %v2533, 4294901760
    %3136 = vmatpush1.xpose.msra.mxu0 %v3135
    %3137 = vmatprep.subr.mxu0 0.0
    %3138 = vmatpush1.xpose.msra.mxu0 0.0
    %3139 = vmatprep.subr.mxu0 0.0
    %3140 = vmatpush1.xpose.msra.mxu0 0.0
    %3141 = vmatprep.subr.mxu0 0.0
    %3142 = vmatpush1.xpose.msra.mxu0 0.0
    %3143 = vmatprep.subr.mxu0 0.0
    %3144 = vmatpush1.xpose.msra.mxu0 0.0
    %3145 = vmatprep.subr.mxu0 0.0
    %3146 = vmatpush1.xpose.msra.mxu0 0.0
    %3147 = vmatprep.subr.mxu0 0.0
    %3148 = vmatpush1.xpose.msra.mxu0 0.0
    %3149 = vmatprep.subr.mxu0 0.0
    %3150 = vmatpush1.xpose.msra.mxu0 0.0
    %3151 = vmatprep.subr.mxu0 0.0
    %3152 = vmatpush1.xpose.msra.mxu0 0.0
    %3153 = vmatprep.subr.mxu0 0.0
    %3154 = vmatpush1.xpose.msra.mxu0 0.0
    %3155 = vmatprep.subr.mxu0 0.0
    %3156 = vmatpush1.xpose.msra.mxu0 0.0
    %3157 = vmatprep.subr.mxu0 0.0
    %3158 = vmatpush1.xpose.msra.mxu0 0.0
    %3159 = vmatprep.subr.mxu0 0.0
    %3160 = vmatpush1.xpose.msra.mxu0 0.0
    %3161 = vmatprep.subr.mxu0 0.0
    %3162 = vmatpush1.xpose.msra.mxu0 0.0
    %3163 = vmatprep.subr.mxu0 0.0
    %3164 = vmatpush1.xpose.msra.mxu0 0.0
    %3165 = vmatprep.subr.mxu0 0.0
    %3166 = vmatpush1.xpose.msra.mxu0 0.0
    %3167 = vmatprep.subr.mxu0 0.0
    %3168 = vmatpush1.xpose.msra.mxu0 0.0
    %3169 = vmatprep.mubr.f32.mxu0 0.0
    %v3170 = vand.u32 %v2485, 4294901760
    %3171 = vmatmul.mubr.f32.gmra.mrb[0].mxu0 %v3170
    %v3172 = vpop.f32.mrb[0].mxu0
    %v3173 = vadd.f32 %v3086, %v3172
    %v3174 = vpop.f32.mrb[0].mxu0
    %3175 = vdwg.mxu0
    %3176 = vst [vmem:[#allocation2] sm:$0x3] %v3173
    // Predicated region
    $region30: #{tpu_custom_call.1} parent=1 // pred_check
      _
    $region31: #{tpu_custom_call.1} parent=1 // pred_check_branch
      %3178 = sbr.rel (0) target = $region33
    $region32: #{tpu_custom_call.1} parent=1 // pred_region
      %s3180 = ssub.s32 32, 32
      %3181 = vsyncadd [#allocation3], %s3180
      %s3183 = sshll.u32 [#allocation2], 4
      %s3184 = int_to_ptr.vmem [resolvable:$true] %s3183
      %3186 = dma.vmem_to_hbm [thread:$0]  %s3184, 32, %s7, [#allocation3]
    $region33: #{tpu_custom_call.1} parent=1 // pred_fallthru
      _
    // Predicated region
    $region34: #{tpu_custom_call.1} parent=1 // pred_check
      _
    $region35: #{tpu_custom_call.1} parent=1 // pred_check_branch
      %3188 = sbr.rel (0) target = $region37
    $region36: #{tpu_custom_call.1} parent=1 // pred_region
      %3189 = dma.done [#allocation3], 32
    $region37: #{tpu_custom_call.1} parent=1 // pred_fallthru
      _
    %3190 = vsyncpa [#allocation3], 1

</llo_original>
